<compile_context>
chip_gen: v7x
topology: tpu7x:2x2x1
jax: 0.10.0
libtpu: 0.0.40
codegen_flags: <defaults>
</compile_context>

<pallas_src>
import jax
import jax.numpy as jnp
from jax.experimental import pallas as pl
from jax.experimental.pallas import tpu as pltpu

OUT_CLASSES = 100 + 1          # true output width of the final Linear
OUT_PAD = 128                  # lane-dense padded output width
SMALL_BATCH_MAX = 256          # at/below this: gridless path (no pipeline bookkeeping)
VMEM_CAP = 64 * 1024 * 1024    # <= physical VMEM on every generation (v7x = 64 MiB)


def mlp_kernel(x_ref, w1, w2, w3, w4, w5, w6, o_ref):
    """Fused 6-layer MLP, ReLU after every layer (matches traff_net_clf.fc).

    x_ref is bf16 with a trailing ones column.  Hidden-layer weights are augmented
    (in+1, out+1) with the bias as the last row and a unit last column, so the bias-add
    rides the MXU and the ones column survives the ReLU.  The final weight is
    (in+1, OUT_PAD) with its bias row and zero padding past column 101.
    """
    h = x_ref[...]                                           # bf16 (tile, seq_len + 1)
    for w_ref in (w1, w2, w3, w4, w5):
        acc = jnp.dot(h, w_ref[...], preferred_element_type=jnp.float32)
        h = jnp.maximum(acc, 0.0).astype(jnp.bfloat16)       # ReLU; ones column survives
    acc = jnp.dot(h, w6[...], preferred_element_type=jnp.float32)
    o_ref[...] = jnp.maximum(acc, 0.0).astype(o_ref.dtype)   # final ReLU (per the spec)


def init_params(seq_len, key):
    """Deterministic synthetic f32 master params; weights stored as (in_dim, out_dim)."""
    dims = [seq_len, seq_len * 32, seq_len * 64, seq_len * 32,
            seq_len * 64, seq_len * 32, OUT_CLASSES]
    params = []
    for i in range(len(dims) - 1):
        key, kw, kb = jax.random.split(key, 3)
        scale = 1.0 / float(dims[i]) ** 0.5
        w = jax.random.uniform(kw, (dims[i], dims[i + 1]), jnp.float32, -scale, scale)
        b = jax.random.uniform(kb, (dims[i + 1],), jnp.float32, -scale, scale)
        params.append((w, b))
    return params


def prepare_params(params):
    """f32 (W, b) pairs -> bias-augmented bf16 weights consumed by the kernel."""
    ws = []
    last = len(params) - 1
    for i, (w, b) in enumerate(params):
        in_dim, out_dim = w.shape
        if i < last:
            w_aug = jnp.zeros((in_dim + 1, out_dim + 1), jnp.float32)
            w_aug = w_aug.at[:in_dim, :out_dim].set(w)
            w_aug = w_aug.at[in_dim, :out_dim].set(b)
            w_aug = w_aug.at[in_dim, out_dim].set(1.0)        # propagates the ones column
        else:
            w_aug = jnp.zeros((in_dim + 1, OUT_PAD), jnp.float32)
            w_aug = w_aug.at[:in_dim, :out_dim].set(w)
            w_aug = w_aug.at[in_dim, :out_dim].set(b)
        ws.append(w_aug.astype(jnp.bfloat16))
    return ws


def _vmem_budget_bytes(ws, rows, in_cols):
    """Rough VMEM need: resident weights + pipelined io tiles + widest intermediate."""
    w_bytes = sum(w.size * w.dtype.itemsize for w in ws)
    widest = max(w.shape[1] for w in ws)
    act_bytes = rows * widest * (4 + 2)                       # f32 accumulator + bf16 copy
    io_bytes = rows * (in_cols * 2 + OUT_PAD * 4) * 2         # double-buffered x / out tiles
    return w_bytes, act_bytes + io_bytes


def _vmem_limit(ws, rows, in_cols):
    w_bytes, dyn = _vmem_budget_bytes(ws, rows, in_cols)
    need = 2 * w_bytes + dyn                                  # conservative (weights 2x)
    return int(min(max(need * 3 // 2 + (2 << 20), 16 << 20), VMEM_CAP))


def _pick_batch_tile(ws, in_cols):
    w_bytes = sum(w.size * w.dtype.itemsize for w in ws)
    for bt in (1024, 512, 256, 128):
        _, dyn = _vmem_budget_bytes(ws, bt, in_cols)
        if 2 * w_bytes + dyn <= (VMEM_CAP * 3) // 4:
            return bt
    return 128


def traff_net_clf_forward(x, ws, *, batch_tile=None):
    """x: (batch, seq_len) f32 -> (batch, 101) f32 (ReLU'd logits, per the spec)."""
    batch, seq_len = x.shape
    assert ws[0].shape[0] == seq_len + 1, (ws[0].shape, seq_len)
    in_cols = seq_len + 1

    # Feed the MXU bf16 directly and append the "carry the 1" column once, in the wrapper.
    x_aug = jnp.concatenate(
        [x, jnp.ones((batch, 1), x.dtype)], axis=1).astype(jnp.bfloat16)

    flops = 2 * batch * sum(w.shape[0] * w.shape[1] for w in ws)
    bytes_accessed = (sum(w.size * w.dtype.itemsize for w in ws)
                      + x_aug.size * x_aug.dtype.itemsize
                      + batch * OUT_PAD * 4)
    cost = pl.CostEstimate(flops=flops, transcendentals=0,
                           bytes_accessed=bytes_accessed)
    out_shape = jax.ShapeDtypeStruct((batch, OUT_PAD), jnp.float32)

    if batch <= SMALL_BATCH_MAX:
        # Small batch: no grid -> whole operands as single VMEM blocks; no pipeline
        # prologue/epilogue, no pointless double-buffering.
        out = pl.pallas_call(
            mlp_kernel,
            out_shape=out_shape,
            compiler_params=pltpu.CompilerParams(
                vmem_limit_bytes=_vmem_limit(ws, batch, in_cols)),
            cost_estimate=cost,
        )(x_aug, *ws)
        return out[:, :OUT_CLASSES]

    # Large batch: batch-tiled grid.  Weights stay resident (constant block index) and
    # single-buffered; batch tiles pipeline; the "parallel" axis lets v7x shard rows
    # across both TensorCores; pl.cdiv handles a ragged last block.
    if batch_tile is None:
        batch_tile = _pick_batch_tile(ws, in_cols)
    batch_tile = min(batch_tile, batch)
    grid = (pl.cdiv(batch, batch_tile),)
    vmem_limit = _vmem_limit(ws, batch_tile, in_cols)

    def call(single_buffer_weights):
        wkw = ({"pipeline_mode": pl.Buffered(1)} if single_buffer_weights else {})
        in_specs = (
            [pl.BlockSpec((batch_tile, in_cols), lambda i: (i, 0))]
            + [pl.BlockSpec(w.shape, lambda i: (0, 0), **wkw) for w in ws]
        )
        return pl.pallas_call(
            mlp_kernel,
            out_shape=out_shape,
            grid=grid,
            in_specs=in_specs,
            out_specs=pl.BlockSpec((batch_tile, OUT_PAD), lambda i: (i, 0)),
            compiler_params=pltpu.CompilerParams(
                dimension_semantics=("parallel",),
                vmem_limit_bytes=vmem_limit),
            cost_estimate=cost,
        )(x_aug, *ws)

    # TODO(synk): for very large seq_len the all-resident weight set overflows v7x's
    # 64 MiB per-TC VMEM; stream the two big middle weights via pltpu.emit_pipeline there.
    try:
        out = call(True)
    except Exception:
        # Fallback for jax versions that reject Buffered(1): default double-buffering.
        out = call(False)
    return out[:, :OUT_CLASSES]


def reference_forward(x, ws):
    """Plain-JAX reference with identical numerics (bf16 augmented weights, f32 accum)."""
    batch = x.shape[0]
    h = jnp.concatenate(
        [x, jnp.ones((batch, 1), x.dtype)], axis=1).astype(jnp.bfloat16)
    for i, w in enumerate(ws):
        acc = jnp.dot(h, w, preferred_element_type=jnp.float32)
        h = jnp.maximum(acc, 0.0)
        if i < len(ws) - 1:
            h = h.astype(jnp.bfloat16)
    return h[:, :OUT_CLASSES]


if __name__ == "__main__":
    seq_len = 8
    kparams, kx1, kx2 = jax.random.split(jax.random.PRNGKey(0), 3)

    params_f32 = init_params(seq_len, kparams)   # f32 master copies
    ws = prepare_params(params_f32)              # bias-augmented bf16 weights

    # Small batch -> gridless path.
    x_small = jax.random.normal(kx1, (2, seq_len), jnp.float32)
    out_small = jax.block_until_ready(traff_net_clf_forward(x_small, ws))
    ref_small = reference_forward(x_small, ws)
    assert out_small.shape == (2, OUT_CLASSES), out_small.shape
    assert jnp.allclose(out_small, ref_small, atol=1e-2, rtol=1e-2), \
        f"max abs err {jnp.max(jnp.abs(out_small - ref_small))}"

    # Larger batch, NOT a multiple of the tile -> batch-tiled grid path (ragged last block).
    x_big = jax.random.normal(kx2, (640, seq_len), jnp.float32)
    out_big = jax.block_until_ready(traff_net_clf_forward(x_big, ws, batch_tile=256))
    ref_big = reference_forward(x_big, ws)
    assert out_big.shape == (640, OUT_CLASSES), out_big.shape
    assert jnp.allclose(out_big, ref_big, atol=1e-2, rtol=1e-2), \
        f"max abs err {jnp.max(jnp.abs(out_big - ref_big))}"

    print("KERNEL_OK")
</pallas_src>

<mosaic_0001>
module attributes {stable_mosaic.version = 11 : i64} {
  func.func @mlp_kernel(%arg0: memref<2x9xbf16, #tpu.memory_space<vmem>>, %arg1: memref<9x257xbf16, #tpu.memory_space<vmem>>, %arg2: memref<257x513xbf16, #tpu.memory_space<vmem>>, %arg3: memref<513x257xbf16, #tpu.memory_space<vmem>>, %arg4: memref<257x513xbf16, #tpu.memory_space<vmem>>, %arg5: memref<513x257xbf16, #tpu.memory_space<vmem>>, %arg6: memref<257x128xbf16, #tpu.memory_space<vmem>>, %arg7: memref<2x128xf32, #tpu.memory_space<vmem>>) attributes {dimension_semantics = [], scalar_prefetch = 0 : i64, scratch_operands = 0 : i64, tpu.core_type = #tpu.core_type<tc>} {
    %c0 = arith.constant 0 : index
    %c0_0 = arith.constant 0 : index
    %0 = vector.load %arg0[%c0, %c0_0] : memref<2x9xbf16, #tpu.memory_space<vmem>>, vector<2x9xbf16>
    %c0_1 = arith.constant 0 : index
    %c0_2 = arith.constant 0 : index
    %1 = vector.load %arg1[%c0_1, %c0_2] : memref<9x257xbf16, #tpu.memory_space<vmem>>, vector<9x257xbf16>
    %cst = arith.constant dense<0.000000e+00> : vector<2x257xf32>
    %2 = tpu.matmul %0, %1, %cst {dimension_numbers = #tpu.dot_dimension_numbers<[1], [0], [0], [1], [0, 0, 1, 1], [], []>} : vector<2x9xbf16>, vector<9x257xbf16>, vector<2x257xf32> -> vector<2x257xf32>
    %cst_3 = arith.constant 0.000000e+00 : f32
    %3 = vector.broadcast %cst_3 : f32 to vector<2x257xf32>
    %4 = arith.maximumf %2, %3 : vector<2x257xf32>
    %5 = arith.truncf %4 : vector<2x257xf32> to vector<2x257xbf16>
    %c0_4 = arith.constant 0 : index
    %c0_5 = arith.constant 0 : index
    %6 = vector.load %arg2[%c0_4, %c0_5] : memref<257x513xbf16, #tpu.memory_space<vmem>>, vector<257x513xbf16>
    %cst_6 = arith.constant dense<0.000000e+00> : vector<2x513xf32>
    %7 = tpu.matmul %5, %6, %cst_6 {dimension_numbers = #tpu.dot_dimension_numbers<[1], [0], [0], [1], [0, 0, 1, 1], [], []>} : vector<2x257xbf16>, vector<257x513xbf16>, vector<2x513xf32> -> vector<2x513xf32>
    %cst_7 = arith.constant 0.000000e+00 : f32
    %8 = vector.broadcast %cst_7 : f32 to vector<2x513xf32>
    %9 = arith.maximumf %7, %8 : vector<2x513xf32>
    %10 = arith.truncf %9 : vector<2x513xf32> to vector<2x513xbf16>
    %c0_8 = arith.constant 0 : index
    %c0_9 = arith.constant 0 : index
    %11 = vector.load %arg3[%c0_8, %c0_9] : memref<513x257xbf16, #tpu.memory_space<vmem>>, vector<513x257xbf16>
    %cst_10 = arith.constant dense<0.000000e+00> : vector<2x257xf32>
    %12 = tpu.matmul %10, %11, %cst_10 {dimension_numbers = #tpu.dot_dimension_numbers<[1], [0], [0], [1], [0, 0, 1, 1], [], []>} : vector<2x513xbf16>, vector<513x257xbf16>, vector<2x257xf32> -> vector<2x257xf32>
    %cst_11 = arith.constant 0.000000e+00 : f32
    %13 = vector.broadcast %cst_11 : f32 to vector<2x257xf32>
    %14 = arith.maximumf %12, %13 : vector<2x257xf32>
    %15 = arith.truncf %14 : vector<2x257xf32> to vector<2x257xbf16>
    %c0_12 = arith.constant 0 : index
    %c0_13 = arith.constant 0 : index
    %16 = vector.load %arg4[%c0_12, %c0_13] : memref<257x513xbf16, #tpu.memory_space<vmem>>, vector<257x513xbf16>
    %cst_14 = arith.constant dense<0.000000e+00> : vector<2x513xf32>
    %17 = tpu.matmul %15, %16, %cst_14 {dimension_numbers = #tpu.dot_dimension_numbers<[1], [0], [0], [1], [0, 0, 1, 1], [], []>} : vector<2x257xbf16>, vector<257x513xbf16>, vector<2x513xf32> -> vector<2x513xf32>
    %cst_15 = arith.constant 0.000000e+00 : f32
    %18 = vector.broadcast %cst_15 : f32 to vector<2x513xf32>
    %19 = arith.maximumf %17, %18 : vector<2x513xf32>
    %20 = arith.truncf %19 : vector<2x513xf32> to vector<2x513xbf16>
    %c0_16 = arith.constant 0 : index
    %c0_17 = arith.constant 0 : index
    %21 = vector.load %arg5[%c0_16, %c0_17] : memref<513x257xbf16, #tpu.memory_space<vmem>>, vector<513x257xbf16>
    %cst_18 = arith.constant dense<0.000000e+00> : vector<2x257xf32>
    %22 = tpu.matmul %20, %21, %cst_18 {dimension_numbers = #tpu.dot_dimension_numbers<[1], [0], [0], [1], [0, 0, 1, 1], [], []>} : vector<2x513xbf16>, vector<513x257xbf16>, vector<2x257xf32> -> vector<2x257xf32>
    %cst_19 = arith.constant 0.000000e+00 : f32
    %23 = vector.broadcast %cst_19 : f32 to vector<2x257xf32>
    %24 = arith.maximumf %22, %23 : vector<2x257xf32>
    %25 = arith.truncf %24 : vector<2x257xf32> to vector<2x257xbf16>
    %c0_20 = arith.constant 0 : index
    %c0_21 = arith.constant 0 : index
    %26 = vector.load %arg6[%c0_20, %c0_21] : memref<257x128xbf16, #tpu.memory_space<vmem>>, vector<257x128xbf16>
    %cst_22 = arith.constant dense<0.000000e+00> : vector<2x128xf32>
    %27 = tpu.matmul %25, %26, %cst_22 {dimension_numbers = #tpu.dot_dimension_numbers<[1], [0], [0], [1], [0, 0, 1, 1], [], []>} : vector<2x257xbf16>, vector<257x128xbf16>, vector<2x128xf32> -> vector<2x128xf32>
    %cst_23 = arith.constant 0.000000e+00 : f32
    %28 = vector.broadcast %cst_23 : f32 to vector<2x128xf32>
    %29 = arith.maximumf %27, %28 : vector<2x128xf32>
    %c0_24 = arith.constant 0 : index
    %c0_25 = arith.constant 0 : index
    %30 = vector.load %arg7[%c0_24, %c0_25] : memref<2x128xf32, #tpu.memory_space<vmem>>, vector<2x128xf32>
    tpu.vector_store %arg7[%c0_24, %c0_25], %29 {strides = array<i32>} : memref<2x128xf32, #tpu.memory_space<vmem>>, vector<2x128xf32>,
    return
  }
}

</mosaic_0001>

<llo_original>
// kernel: tpu_custom_call.1
$region0: #{tpu_custom_call.1}
  #allocation0 [shape = 'u32[]', space=smem, size = 0x4, offset = 0x4, fixed_abs, tag = 'smem constant byte address 0x4 - core index']
  #allocation1 [shape = 'u32[144,128]{1,0:T(1,128)}', space=vmem, size = 0x12000, scoped, tag = 'internal scratch']
  %s0 = inlined_call_operand.vmem [shape: bf16[2,9], index: 0, kind: input, shape index: {}]
  %s1 = inlined_call_operand.vmem [shape: bf16[9,257], index: 1, kind: input, shape index: {}]
  %s2 = inlined_call_operand.vmem [shape: bf16[257,513], index: 2, kind: input, shape index: {}]
  %s3 = inlined_call_operand.vmem [shape: bf16[513,257], index: 3, kind: input, shape index: {}]
  %s4 = inlined_call_operand.vmem [shape: bf16[257,513], index: 4, kind: input, shape index: {}]
  %s5 = inlined_call_operand.vmem [shape: bf16[513,257], index: 5, kind: input, shape index: {}]
  %s6 = inlined_call_operand.vmem [shape: bf16[257,128], index: 6, kind: input, shape index: {}]
  %s7 = inlined_call_operand.hbm [shape: f32[2,128], index: 7, kind: output, shape index: {}]
  %s8 = sld [smem:[#allocation0]]
  $region38: #{tpu_custom_call.1} parent=0
    _
  %s10 = ssub.s32 1, %s8
  %s11 = scalar_select 0, %s10, %s8
  $region1: #{tpu_custom_call.1} parent=0
    #allocation2 [shape = 'u8[1024]{0}', space=vmem, size = 0x400, scoped, tag = 'output window, operand 0, single buffered']
    #allocation3 [shape = 's32[1]{0}', space=sflag, size = 0x4, scoped, tag = 'scoped memory for tpu_custom_call.1']
    %12 = vsyncpa [#allocation3], 0
    // Predicated region
    $region2: #{tpu_custom_call.1} parent=1 // pred_check
      _
    $region3: #{tpu_custom_call.1} parent=1 // pred_check_branch
      %14 = sbr.rel (0) target = $region5
    $region4: #{tpu_custom_call.1} parent=1 // pred_region
      _
    $region5: #{tpu_custom_call.1} parent=1 // pred_fallthru
      _
    // Predicated region
    $region6: #{tpu_custom_call.1} parent=1 // pred_check
      _
    $region7: #{tpu_custom_call.1} parent=1 // pred_check_branch
      %16 = sbr.rel (0) target = $region9
    $region8: #{tpu_custom_call.1} parent=1 // pred_region
      _
    $region9: #{tpu_custom_call.1} parent=1 // pred_fallthru
      _
    // Predicated region
    $region10: #{tpu_custom_call.1} parent=1 // pred_check
      _
    $region11: #{tpu_custom_call.1} parent=1 // pred_check_branch
      %18 = sbr.rel (0) target = $region13
    $region12: #{tpu_custom_call.1} parent=1 // pred_region
      _
    $region13: #{tpu_custom_call.1} parent=1 // pred_fallthru
      _
    // Predicated region
    $region14: #{tpu_custom_call.1} parent=1 // pred_check
      _
    $region15: #{tpu_custom_call.1} parent=1 // pred_check_branch
      %20 = sbr.rel (0) target = $region17
    $region16: #{tpu_custom_call.1} parent=1 // pred_region
      _
    $region17: #{tpu_custom_call.1} parent=1 // pred_fallthru
      _
    // Predicated region
    $region18: #{tpu_custom_call.1} parent=1 // pred_check
      _
    $region19: #{tpu_custom_call.1} parent=1 // pred_check_branch
      %22 = sbr.rel (0) target = $region21
    $region20: #{tpu_custom_call.1} parent=1 // pred_region
      _
    $region21: #{tpu_custom_call.1} parent=1 // pred_fallthru
      _
    // Predicated region
    $region22: #{tpu_custom_call.1} parent=1 // pred_check
      _
    $region23: #{tpu_custom_call.1} parent=1 // pred_check_branch
      %24 = sbr.rel (0) target = $region25
    $region24: #{tpu_custom_call.1} parent=1 // pred_region
      _
    $region25: #{tpu_custom_call.1} parent=1 // pred_fallthru
      _
    // Predicated region
    $region26: #{tpu_custom_call.1} parent=1 // pred_check
      _
    $region27: #{tpu_custom_call.1} parent=1 // pred_check_branch
      %26 = sbr.rel (0) target = $region29
    $region28: #{tpu_custom_call.1} parent=1 // pred_region
      _
    $region29: #{tpu_custom_call.1} parent=1 // pred_fallthru
      _
    %v28 = vld [vmem:[%s0] sm:$0x1]
    %v29 = vld [vmem:[%s1] sm:$0xff]
    %v30 = vld [vmem:[%s1 + $0x8] sm:$0xf]
    %v31 = vld [vmem:[%s1 + $0xc] sm:$0x11]
    %v32 = vld [vmem:[%s1 + $0x14] sm:$0x1]
    %v37 = vunpack.c.l.b16 %v29
    %v38 = vunpack.c.h.b16 %v29
    %v39 = vunpack.c.l.b16 %v30
    %v40 = vunpack.c.l.b16 %v31
    %v41 = vunpack.c.h.b16 %v31
    %v42 = vunpack.c.l.b16 %v32
    %v43 = vpack.c.b16 %v40, %v37
    %v44 = vpack.c.b16 %v41, %v38
    %v45 = vpack.c.b16 %v42, %v39
    %vm46 = vcmask 72704
    %v48 = vsel %vm46, %v28, 0
    %vm50 = vcmask 1043456
    %vm51 = vcmask 1044480
    %v52 = vsel %vm50, 4294967295, 65535
    %v53 = vsel %vm51, %v52, 0
    %v55 = vand.u32 %v43, %v53
    %v58 = vand.u32 %v44, %v53
    %v61 = vand.u32 %v45, %v53
    %63 = vmatprep.subr.bf16.mxu0 %v58
    %64 = vmatpush1.bf16.msra.mxu0 %v55
    %65 = vmatprep.subr.bf16.mxu0 0
    %66 = vmatpush1.bf16.msra.mxu0 0
    %67 = vmatprep.subr.bf16.mxu0 0
    %68 = vmatpush1.bf16.msra.mxu0 0
    %69 = vmatprep.subr.bf16.mxu0 0
    %70 = vmatpush1.bf16.msra.mxu0 0
    %71 = vmatprep.subr.bf16.mxu0 0
    %72 = vmatpush1.bf16.msra.mxu0 0
    %73 = vmatprep.subr.bf16.mxu0 0
    %74 = vmatpush1.bf16.msra.mxu0 0
    %75 = vmatprep.subr.bf16.mxu0 0
    %76 = vmatpush1.bf16.msra.mxu0 0
    %77 = vmatprep.subr.bf16.mxu0 0
    %78 = vmatpush1.bf16.msra.mxu0 0
    %79 = vmatprep.subr.bf16.mxu0 0
    %80 = vmatpush1.bf16.msra.mxu0 0
    %81 = vmatprep.subr.bf16.mxu0 0
    %82 = vmatpush1.bf16.msra.mxu0 0
    %83 = vmatprep.subr.bf16.mxu0 0
    %84 = vmatpush1.bf16.msra.mxu0 0
    %85 = vmatprep.subr.bf16.mxu0 0
    %86 = vmatpush1.bf16.msra.mxu0 0
    %87 = vmatprep.subr.bf16.mxu0 0
    %88 = vmatpush1.bf16.msra.mxu0 0
    %89 = vmatprep.subr.bf16.mxu0 0
    %90 = vmatpush1.bf16.msra.mxu0 0
    %91 = vmatprep.subr.bf16.mxu0 0
    %92 = vmatpush1.bf16.msra.mxu0 0
    %93 = vmatprep.subr.bf16.mxu0 0
    %94 = vmatpush1.bf16.msra.mxu0 0
    %95 = vmatprep.mubr.bf16.mxu0 0
    %96 = vmatmul.mubr.bf16.gmra.mrb[0].mxu0 %v48
    %v97 = vpop.f32.mrb[0].mxu0
    %v98 = vadd.f32 0.0, %v97
    %v99 = vpop.f32.mrb[0].mxu0
    %v100 = vadd.f32 0.0, %v99
    %v101 = vpop.f32.mrb[0].mxu0
    %v102 = vpop.f32.mrb[0].mxu0
    %103 = vdwg.mxu0
    %104 = vmatprep.subr.bf16.mxu0 0
    %105 = vmatpush1.bf16.msra.mxu0 %v61
    %106 = vmatprep.subr.bf16.mxu0 0
    %107 = vmatpush1.bf16.msra.mxu0 0
    %108 = vmatprep.subr.bf16.mxu0 0
    %109 = vmatpush1.bf16.msra.mxu0 0
    %110 = vmatprep.subr.bf16.mxu0 0
    %111 = vmatpush1.bf16.msra.mxu0 0
    %112 = vmatprep.subr.bf16.mxu0 0
    %113 = vmatpush1.bf16.msra.mxu0 0
    %114 = vmatprep.subr.bf16.mxu0 0
    %115 = vmatpush1.bf16.msra.mxu0 0
    %116 = vmatprep.subr.bf16.mxu0 0
    %117 = vmatpush1.bf16.msra.mxu0 0
    %118 = vmatprep.subr.bf16.mxu0 0
    %119 = vmatpush1.bf16.msra.mxu0 0
    %120 = vmatprep.subr.bf16.mxu0 0
    %121 = vmatpush1.bf16.msra.mxu0 0
    %122 = vmatprep.subr.bf16.mxu0 0
    %123 = vmatpush1.bf16.msra.mxu0 0
    %124 = vmatprep.subr.bf16.mxu0 0
    %125 = vmatpush1.bf16.msra.mxu0 0
    %126 = vmatprep.subr.bf16.mxu0 0
    %127 = vmatpush1.bf16.msra.mxu0 0
    %128 = vmatprep.subr.bf16.mxu0 0
    %129 = vmatpush1.bf16.msra.mxu0 0
    %130 = vmatprep.subr.bf16.mxu0 0
    %131 = vmatpush1.bf16.msra.mxu0 0
    %132 = vmatprep.subr.bf16.mxu0 0
    %133 = vmatpush1.bf16.msra.mxu0 0
    %134 = vmatprep.subr.bf16.mxu0 0
    %135 = vmatpush1.bf16.msra.mxu0 0
    %136 = vmatprep.mubr.bf16.mxu0 0
    %137 = vmatmul.mubr.bf16.gmra.mrb[0].mxu0 %v48
    %v138 = vpop.f32.mrb[0].mxu0
    %v139 = vadd.f32 0.0, %v138
    %v140 = vpop.f32.mrb[0].mxu0
    %v141 = vpop.f32.mrb[0].mxu0
    %v142 = vpop.f32.mrb[0].mxu0
    %143 = vdwg.mxu0
    %v144 = vmax.f32 %v98, 0.0
    %v145 = vmax.f32 %v100, 0.0
    %v146 = vmax.f32 %v139, 0.0
    %v147 = vpack.c.bf16 %v144, %v144
    %v148 = vpack.c.bf16 %v145, %v145
    %v149 = vpack.c.bf16 %v146, %v146
    %v150 = vld [vmem:[%s2] sm:$0xff]
    %v151 = vld [vmem:[%s2 + $0x8] sm:$0xff]
    %v152 = vld [vmem:[%s2 + $0x10] sm:$0xf]
    %v153 = vld [vmem:[%s2 + $0x14] sm:$0xff]
    %v154 = vld [vmem:[%s2 + $0x1c] sm:$0xff]
    %v155 = vld [vmem:[%s2 + $0x24] sm:$0xf]
    %v156 = vld [vmem:[%s2 + $0x28] sm:$0xff]
    %v157 = vld [vmem:[%s2 + $0x30] sm:$0xff]
    %v158 = vld [vmem:[%s2 + $0x38] sm:$0xf]
    %v159 = vld [vmem:[%s2 + $0x3c] sm:$0xff]
    %v160 = vld [vmem:[%s2 + $0x44] sm:$0xff]
    %v161 = vld [vmem:[%s2 + $0x4c] sm:$0xf]
    %v162 = vld [vmem:[%s2 + $0x50] sm:$0xff]
    %v163 = vld [vmem:[%s2 + $0x58] sm:$0xff]
    %v164 = vld [vmem:[%s2 + $0x60] sm:$0xf]
    %v165 = vld [vmem:[%s2 + $0x64] sm:$0xff]
    %v166 = vld [vmem:[%s2 + $0x6c] sm:$0xff]
    %v167 = vld [vmem:[%s2 + $0x74] sm:$0xf]
    %v168 = vld [vmem:[%s2 + $0x78] sm:$0xff]
    %v169 = vld [vmem:[%s2 + $0x80] sm:$0xff]
    %v170 = vld [vmem:[%s2 + $0x88] sm:$0xf]
    %v171 = vld [vmem:[%s2 + $0x8c] sm:$0xff]
    %v172 = vld [vmem:[%s2 + $0x94] sm:$0xff]
    %v173 = vld [vmem:[%s2 + $0x9c] sm:$0xf]
    %v174 = vld [vmem:[%s2 + $0xa0] sm:$0xff]
    %v175 = vld [vmem:[%s2 + $0xa8] sm:$0xff]
    %v176 = vld [vmem:[%s2 + $0xb0] sm:$0xf]
    %v177 = vld [vmem:[%s2 + $0xb4] sm:$0xff]
    %v178 = vld [vmem:[%s2 + $0xbc] sm:$0xff]
    %v179 = vld [vmem:[%s2 + $0xc4] sm:$0xf]
    %v180 = vld [vmem:[%s2 + $0xc8] sm:$0xff]
    %v181 = vld [vmem:[%s2 + $0xd0] sm:$0xff]
    %v182 = vld [vmem:[%s2 + $0xd8] sm:$0xf]
    %v183 = vld [vmem:[%s2 + $0xdc] sm:$0xff]
    %v184 = vld [vmem:[%s2 + $0xe4] sm:$0xff]
    %v185 = vld [vmem:[%s2 + $0xec] sm:$0xf]
    %v186 = vld [vmem:[%s2 + $0xf0] sm:$0xff]
    %v187 = vld [vmem:[%s2 + $0xf8] sm:$0xff]
    %v188 = vld [vmem:[%s2 + $0x100] sm:$0xf]
    %v189 = vld [vmem:[%s2 + $0x104] sm:$0xff]
    %v190 = vld [vmem:[%s2 + $0x10c] sm:$0xff]
    %v191 = vld [vmem:[%s2 + $0x114] sm:$0xf]
    %v192 = vld [vmem:[%s2 + $0x118] sm:$0xff]
    %v193 = vld [vmem:[%s2 + $0x120] sm:$0xff]
    %v194 = vld [vmem:[%s2 + $0x128] sm:$0xf]
    %v195 = vld [vmem:[%s2 + $0x12c] sm:$0xff]
    %v196 = vld [vmem:[%s2 + $0x134] sm:$0xff]
    %v197 = vld [vmem:[%s2 + $0x13c] sm:$0xf]
    %v198 = vld [vmem:[%s2 + $0x140] sm:$0xff]
    %v199 = vld [vmem:[%s2 + $0x148] sm:$0xff]
    %v200 = vld [vmem:[%s2 + $0x150] sm:$0xf]
    %v201 = vld [vmem:[%s2 + $0x154] sm:$0xff]
    %v202 = vld [vmem:[%s2 + $0x15c] sm:$0xff]
    %v203 = vld [vmem:[%s2 + $0x164] sm:$0xf]
    %v204 = vld [vmem:[%s2 + $0x168] sm:$0xff]
    %v205 = vld [vmem:[%s2 + $0x170] sm:$0xff]
    %v206 = vld [vmem:[%s2 + $0x178] sm:$0xf]
    %v207 = vld [vmem:[%s2 + $0x17c] sm:$0xff]
    %v208 = vld [vmem:[%s2 + $0x184] sm:$0xff]
    %v209 = vld [vmem:[%s2 + $0x18c] sm:$0xf]
    %v210 = vld [vmem:[%s2 + $0x190] sm:$0xff]
    %v211 = vld [vmem:[%s2 + $0x198] sm:$0xff]
    %v212 = vld [vmem:[%s2 + $0x1a0] sm:$0xf]
    %v213 = vld [vmem:[%s2 + $0x1a4] sm:$0xff]
    %v214 = vld [vmem:[%s2 + $0x1ac] sm:$0xff]
    %v215 = vld [vmem:[%s2 + $0x1b4] sm:$0xf]
    %v216 = vld [vmem:[%s2 + $0x1b8] sm:$0xff]
    %v217 = vld [vmem:[%s2 + $0x1c0] sm:$0xff]
    %v218 = vld [vmem:[%s2 + $0x1c8] sm:$0xf]
    %v219 = vld [vmem:[%s2 + $0x1cc] sm:$0xff]
    %v220 = vld [vmem:[%s2 + $0x1d4] sm:$0xff]
    %v221 = vld [vmem:[%s2 + $0x1dc] sm:$0xf]
    %v222 = vld [vmem:[%s2 + $0x1e0] sm:$0xff]
    %v223 = vld [vmem:[%s2 + $0x1e8] sm:$0xff]
    %v224 = vld [vmem:[%s2 + $0x1f0] sm:$0xf]
    %v225 = vld [vmem:[%s2 + $0x1f4] sm:$0xff]
    %v226 = vld [vmem:[%s2 + $0x1fc] sm:$0xff]
    %v227 = vld [vmem:[%s2 + $0x204] sm:$0xf]
    %v228 = vld [vmem:[%s2 + $0x208] sm:$0xff]
    %v229 = vld [vmem:[%s2 + $0x210] sm:$0xff]
    %v230 = vld [vmem:[%s2 + $0x218] sm:$0xf]
    %v231 = vld [vmem:[%s2 + $0x21c] sm:$0xff]
    %v232 = vld [vmem:[%s2 + $0x224] sm:$0xff]
    %v233 = vld [vmem:[%s2 + $0x22c] sm:$0xf]
    %v234 = vld [vmem:[%s2 + $0x230] sm:$0xff]
    %v235 = vld [vmem:[%s2 + $0x238] sm:$0xff]
    %v236 = vld [vmem:[%s2 + $0x240] sm:$0xf]
    %v237 = vld [vmem:[%s2 + $0x244] sm:$0xff]
    %v238 = vld [vmem:[%s2 + $0x24c] sm:$0xff]
    %v239 = vld [vmem:[%s2 + $0x254] sm:$0xf]
    %v240 = vld [vmem:[%s2 + $0x258] sm:$0xff]
    %v241 = vld [vmem:[%s2 + $0x260] sm:$0xff]
    %v242 = vld [vmem:[%s2 + $0x268] sm:$0xf]
    %v243 = vld [vmem:[%s2 + $0x26c] sm:$0xff]
    %v244 = vld [vmem:[%s2 + $0x274] sm:$0xff]
    %v245 = vld [vmem:[%s2 + $0x27c] sm:$0xf]
    %v246 = vld [vmem:[%s2 + $0x280] sm:$0x11]
    %v247 = vld [vmem:[%s2 + $0x288] sm:$0x11]
    %v248 = vld [vmem:[%s2 + $0x290] sm:$0x1]
    %v348 = vunpack.c.l.b16 %v150
    %v349 = vunpack.c.h.b16 %v150
    %v350 = vunpack.c.l.b16 %v151
    %v351 = vunpack.c.h.b16 %v151
    %v352 = vunpack.c.l.b16 %v152
    %v353 = vunpack.c.l.b16 %v153
    %v354 = vunpack.c.h.b16 %v153
    %v355 = vunpack.c.l.b16 %v154
    %v356 = vunpack.c.h.b16 %v154
    %v357 = vunpack.c.l.b16 %v155
    %v358 = vunpack.c.l.b16 %v156
    %v359 = vunpack.c.h.b16 %v156
    %v360 = vunpack.c.l.b16 %v157
    %v361 = vunpack.c.h.b16 %v157
    %v362 = vunpack.c.l.b16 %v158
    %v363 = vunpack.c.l.b16 %v159
    %v364 = vunpack.c.h.b16 %v159
    %v365 = vunpack.c.l.b16 %v160
    %v366 = vunpack.c.h.b16 %v160
    %v367 = vunpack.c.l.b16 %v161
    %v368 = vunpack.c.l.b16 %v162
    %v369 = vunpack.c.h.b16 %v162
    %v370 = vunpack.c.l.b16 %v163
    %v371 = vunpack.c.h.b16 %v163
    %v372 = vunpack.c.l.b16 %v164
    %v373 = vunpack.c.l.b16 %v165
    %v374 = vunpack.c.h.b16 %v165
    %v375 = vunpack.c.l.b16 %v166
    %v376 = vunpack.c.h.b16 %v166
    %v377 = vunpack.c.l.b16 %v167
    %v378 = vunpack.c.l.b16 %v168
    %v379 = vunpack.c.h.b16 %v168
    %v380 = vunpack.c.l.b16 %v169
    %v381 = vunpack.c.h.b16 %v169
    %v382 = vunpack.c.l.b16 %v170
    %v383 = vunpack.c.l.b16 %v171
    %v384 = vunpack.c.h.b16 %v171
    %v385 = vunpack.c.l.b16 %v172
    %v386 = vunpack.c.h.b16 %v172
    %v387 = vunpack.c.l.b16 %v173
    %v388 = vunpack.c.l.b16 %v174
    %v389 = vunpack.c.h.b16 %v174
    %v390 = vunpack.c.l.b16 %v175
    %v391 = vunpack.c.h.b16 %v175
    %v392 = vunpack.c.l.b16 %v176
    %v393 = vunpack.c.l.b16 %v177
    %v394 = vunpack.c.h.b16 %v177
    %v395 = vunpack.c.l.b16 %v178
    %v396 = vunpack.c.h.b16 %v178
    %v397 = vunpack.c.l.b16 %v179
    %v398 = vunpack.c.l.b16 %v180
    %v399 = vunpack.c.h.b16 %v180
    %v400 = vunpack.c.l.b16 %v181
    %v401 = vunpack.c.h.b16 %v181
    %v402 = vunpack.c.l.b16 %v182
    %v403 = vunpack.c.l.b16 %v183
    %v404 = vunpack.c.h.b16 %v183
    %v405 = vunpack.c.l.b16 %v184
    %v406 = vunpack.c.h.b16 %v184
    %v407 = vunpack.c.l.b16 %v185
    %v408 = vunpack.c.l.b16 %v186
    %v409 = vunpack.c.h.b16 %v186
    %v410 = vunpack.c.l.b16 %v187
    %v411 = vunpack.c.h.b16 %v187
    %v412 = vunpack.c.l.b16 %v188
    %v413 = vunpack.c.l.b16 %v189
    %v414 = vunpack.c.h.b16 %v189
    %v415 = vunpack.c.l.b16 %v190
    %v416 = vunpack.c.h.b16 %v190
    %v417 = vunpack.c.l.b16 %v191
    %v418 = vunpack.c.l.b16 %v192
    %v419 = vunpack.c.h.b16 %v192
    %v420 = vunpack.c.l.b16 %v193
    %v421 = vunpack.c.h.b16 %v193
    %v422 = vunpack.c.l.b16 %v194
    %v423 = vunpack.c.l.b16 %v195
    %v424 = vunpack.c.h.b16 %v195
    %v425 = vunpack.c.l.b16 %v196
    %v426 = vunpack.c.h.b16 %v196
    %v427 = vunpack.c.l.b16 %v197
    %v428 = vunpack.c.l.b16 %v198
    %v429 = vunpack.c.h.b16 %v198
    %v430 = vunpack.c.l.b16 %v199
    %v431 = vunpack.c.h.b16 %v199
    %v432 = vunpack.c.l.b16 %v200
    %v433 = vunpack.c.l.b16 %v201
    %v434 = vunpack.c.h.b16 %v201
    %v435 = vunpack.c.l.b16 %v202
    %v436 = vunpack.c.h.b16 %v202
    %v437 = vunpack.c.l.b16 %v203
    %v438 = vunpack.c.l.b16 %v204
    %v439 = vunpack.c.h.b16 %v204
    %v440 = vunpack.c.l.b16 %v205
    %v441 = vunpack.c.h.b16 %v205
    %v442 = vunpack.c.l.b16 %v206
    %v443 = vunpack.c.l.b16 %v207
    %v444 = vunpack.c.h.b16 %v207
    %v445 = vunpack.c.l.b16 %v208
    %v446 = vunpack.c.h.b16 %v208
    %v447 = vunpack.c.l.b16 %v209
    %v448 = vunpack.c.l.b16 %v210
    %v449 = vunpack.c.h.b16 %v210
    %v450 = vunpack.c.l.b16 %v211
    %v451 = vunpack.c.h.b16 %v211
    %v452 = vunpack.c.l.b16 %v212
    %v453 = vunpack.c.l.b16 %v213
    %v454 = vunpack.c.h.b16 %v213
    %v455 = vunpack.c.l.b16 %v214
    %v456 = vunpack.c.h.b16 %v214
    %v457 = vunpack.c.l.b16 %v215
    %v458 = vunpack.c.l.b16 %v216
    %v459 = vunpack.c.h.b16 %v216
    %v460 = vunpack.c.l.b16 %v217
    %v461 = vunpack.c.h.b16 %v217
    %v462 = vunpack.c.l.b16 %v218
    %v463 = vunpack.c.l.b16 %v219
    %v464 = vunpack.c.h.b16 %v219
    %v465 = vunpack.c.l.b16 %v220
    %v466 = vunpack.c.h.b16 %v220
    %v467 = vunpack.c.l.b16 %v221
    %v468 = vunpack.c.l.b16 %v222
    %v469 = vunpack.c.h.b16 %v222
    %v470 = vunpack.c.l.b16 %v223
    %v471 = vunpack.c.h.b16 %v223
    %v472 = vunpack.c.l.b16 %v224
    %v473 = vunpack.c.l.b16 %v225
    %v474 = vunpack.c.h.b16 %v225
    %v475 = vunpack.c.l.b16 %v226
    %v476 = vunpack.c.h.b16 %v226
    %v477 = vunpack.c.l.b16 %v227
    %v478 = vunpack.c.l.b16 %v228
    %v479 = vunpack.c.h.b16 %v228
    %v480 = vunpack.c.l.b16 %v229
    %v481 = vunpack.c.h.b16 %v229
    %v482 = vunpack.c.l.b16 %v230
    %v483 = vunpack.c.l.b16 %v231
    %v484 = vunpack.c.h.b16 %v231
    %v485 = vunpack.c.l.b16 %v232
    %v486 = vunpack.c.h.b16 %v232
    %v487 = vunpack.c.l.b16 %v233
    %v488 = vunpack.c.l.b16 %v234
    %v489 = vunpack.c.h.b16 %v234
    %v490 = vunpack.c.l.b16 %v235
    %v491 = vunpack.c.h.b16 %v235
    %v492 = vunpack.c.l.b16 %v236
    %v493 = vunpack.c.l.b16 %v237
    %v494 = vunpack.c.h.b16 %v237
    %v495 = vunpack.c.l.b16 %v238
    %v496 = vunpack.c.h.b16 %v238
    %v497 = vunpack.c.l.b16 %v239
    %v498 = vunpack.c.l.b16 %v240
    %v499 = vunpack.c.h.b16 %v240
    %v500 = vunpack.c.l.b16 %v241
    %v501 = vunpack.c.h.b16 %v241
    %v502 = vunpack.c.l.b16 %v242
    %v503 = vunpack.c.l.b16 %v243
    %v504 = vunpack.c.h.b16 %v243
    %v505 = vunpack.c.l.b16 %v244
    %v506 = vunpack.c.h.b16 %v244
    %v507 = vunpack.c.l.b16 %v245
    %v508 = vunpack.c.l.b16 %v246
    %v509 = vunpack.c.h.b16 %v246
    %v510 = vunpack.c.l.b16 %v247
    %v511 = vunpack.c.h.b16 %v247
    %v512 = vunpack.c.l.b16 %v248
    %v513 = vpack.c.b16 %v353, %v348
    %v514 = vpack.c.b16 %v354, %v349
    %v515 = vpack.c.b16 %v355, %v350
    %v516 = vpack.c.b16 %v356, %v351
    %v517 = vpack.c.b16 %v357, %v352
    %v518 = vpack.c.b16 %v363, %v358
    %v519 = vpack.c.b16 %v364, %v359
    %v520 = vpack.c.b16 %v365, %v360
    %v521 = vpack.c.b16 %v366, %v361
    %v522 = vpack.c.b16 %v367, %v362
    %v523 = vpack.c.b16 %v373, %v368
    %v524 = vpack.c.b16 %v374, %v369
    %v525 = vpack.c.b16 %v375, %v370
    %v526 = vpack.c.b16 %v376, %v371
    %v527 = vpack.c.b16 %v377, %v372
    %v528 = vpack.c.b16 %v383, %v378
    %v529 = vpack.c.b16 %v384, %v379
    %v530 = vpack.c.b16 %v385, %v380
    %v531 = vpack.c.b16 %v386, %v381
    %v532 = vpack.c.b16 %v387, %v382
    %v533 = vpack.c.b16 %v393, %v388
    %v534 = vpack.c.b16 %v394, %v389
    %v535 = vpack.c.b16 %v395, %v390
    %v536 = vpack.c.b16 %v396, %v391
    %v537 = vpack.c.b16 %v397, %v392
    %v538 = vpack.c.b16 %v403, %v398
    %v539 = vpack.c.b16 %v404, %v399
    %v540 = vpack.c.b16 %v405, %v400
    %v541 = vpack.c.b16 %v406, %v401
    %v542 = vpack.c.b16 %v407, %v402
    %v543 = vpack.c.b16 %v413, %v408
    %v544 = vpack.c.b16 %v414, %v409
    %v545 = vpack.c.b16 %v415, %v410
    %v546 = vpack.c.b16 %v416, %v411
    %v547 = vpack.c.b16 %v417, %v412
    %v548 = vpack.c.b16 %v423, %v418
    %v549 = vpack.c.b16 %v424, %v419
    %v550 = vpack.c.b16 %v425, %v420
    %v551 = vpack.c.b16 %v426, %v421
    %v552 = vpack.c.b16 %v427, %v422
    %v553 = vpack.c.b16 %v433, %v428
    %v554 = vpack.c.b16 %v434, %v429
    %v555 = vpack.c.b16 %v435, %v430
    %v556 = vpack.c.b16 %v436, %v431
    %v557 = vpack.c.b16 %v437, %v432
    %v558 = vpack.c.b16 %v443, %v438
    %v559 = vpack.c.b16 %v444, %v439
    %v560 = vpack.c.b16 %v445, %v440
    %v561 = vpack.c.b16 %v446, %v441
    %v562 = vpack.c.b16 %v447, %v442
    %v563 = vpack.c.b16 %v453, %v448
    %v564 = vpack.c.b16 %v454, %v449
    %v565 = vpack.c.b16 %v455, %v450
    %v566 = vpack.c.b16 %v456, %v451
    %v567 = vpack.c.b16 %v457, %v452
    %v568 = vpack.c.b16 %v463, %v458
    %v569 = vpack.c.b16 %v464, %v459
    %v570 = vpack.c.b16 %v465, %v460
    %v571 = vpack.c.b16 %v466, %v461
    %v572 = vpack.c.b16 %v467, %v462
    %v573 = vpack.c.b16 %v473, %v468
    %v574 = vpack.c.b16 %v474, %v469
    %v575 = vpack.c.b16 %v475, %v470
    %v576 = vpack.c.b16 %v476, %v471
    %v577 = vpack.c.b16 %v477, %v472
    %v578 = vpack.c.b16 %v483, %v478
    %v579 = vpack.c.b16 %v484, %v479
    %v580 = vpack.c.b16 %v485, %v480
    %v581 = vpack.c.b16 %v486, %v481
    %v582 = vpack.c.b16 %v487, %v482
    %v583 = vpack.c.b16 %v493, %v488
    %v584 = vpack.c.b16 %v494, %v489
    %v585 = vpack.c.b16 %v495, %v490
    %v586 = vpack.c.b16 %v496, %v491
    %v587 = vpack.c.b16 %v497, %v492
    %v588 = vpack.c.b16 %v503, %v498
    %v589 = vpack.c.b16 %v504, %v499
    %v590 = vpack.c.b16 %v505, %v500
    %v591 = vpack.c.b16 %v506, %v501
    %v592 = vpack.c.b16 %v507, %v502
    %v593 = vpack.c.b16 %v508, %v508
    %v594 = vpack.c.b16 %v509, %v509
    %v595 = vpack.c.b16 %v510, %v510
    %v596 = vpack.c.b16 %v511, %v511
    %v597 = vpack.c.b16 %v512, %v512
    %vm678 = vcmask 7168
    %v680 = vsel %vm678, %v149, 0
    %vm682 = vcmask 1040384
    %v683 = vsel 0, 4294967295, 65535
    %v684 = vsel %vm682, %v683, 0
    %v686 = vand.u32 %v593, %v684
    %v689 = vand.u32 %v594, %v684
    %v692 = vand.u32 %v595, %v684
    %v695 = vand.u32 %v596, %v684
    %v698 = vand.u32 %v597, %v684
    %700 = vmatprep.subr.bf16.mxu0 %v514
    %701 = vmatpush1.bf16.msra.mxu0 %v513
    %702 = vmatprep.subr.bf16.mxu0 %v519
    %703 = vmatpush1.bf16.msra.mxu0 %v518
    %704 = vmatprep.subr.bf16.mxu0 %v524
    %705 = vmatpush1.bf16.msra.mxu0 %v523
    %706 = vmatprep.subr.bf16.mxu0 %v529
    %707 = vmatpush1.bf16.msra.mxu0 %v528
    %708 = vmatprep.subr.bf16.mxu0 %v534
    %709 = vmatpush1.bf16.msra.mxu0 %v533
    %710 = vmatprep.subr.bf16.mxu0 %v539
    %711 = vmatpush1.bf16.msra.mxu0 %v538
    %712 = vmatprep.subr.bf16.mxu0 %v544
    %713 = vmatpush1.bf16.msra.mxu0 %v543
    %714 = vmatprep.subr.bf16.mxu0 %v549
    %715 = vmatpush1.bf16.msra.mxu0 %v548
    %716 = vmatprep.subr.bf16.mxu0 %v554
    %717 = vmatpush1.bf16.msra.mxu0 %v553
    %718 = vmatprep.subr.bf16.mxu0 %v559
    %719 = vmatpush1.bf16.msra.mxu0 %v558
    %720 = vmatprep.subr.bf16.mxu0 %v564
    %721 = vmatpush1.bf16.msra.mxu0 %v563
    %722 = vmatprep.subr.bf16.mxu0 %v569
    %723 = vmatpush1.bf16.msra.mxu0 %v568
    %724 = vmatprep.subr.bf16.mxu0 %v574
    %725 = vmatpush1.bf16.msra.mxu0 %v573
    %726 = vmatprep.subr.bf16.mxu0 %v579
    %727 = vmatpush1.bf16.msra.mxu0 %v578
    %728 = vmatprep.subr.bf16.mxu0 %v584
    %729 = vmatpush1.bf16.msra.mxu0 %v583
    %730 = vmatprep.subr.bf16.mxu0 %v589
    %731 = vmatpush1.bf16.msra.mxu0 %v588
    %732 = vmatprep.mubr.bf16.mxu0 %v148
    %733 = vmatmul.mubr.bf16.gmra.mrb[0].mxu0 %v147
    %v734 = vpop.f32.mrb[0].mxu0
    %v735 = vadd.f32 0.0, %v734
    %v736 = vpop.f32.mrb[0].mxu0
    %v737 = vadd.f32 0.0, %v736
    %v738 = vpop.f32.mrb[0].mxu0
    %v739 = vpop.f32.mrb[0].mxu0
    %740 = vdwg.mxu0
    %741 = vmatprep.subr.bf16.mxu0 %v689
    %742 = vmatpush1.bf16.msra.mxu0 %v686
    %743 = vmatprep.subr.bf16.mxu0 0
    %744 = vmatpush1.bf16.msra.mxu0 0
    %745 = vmatprep.subr.bf16.mxu0 0
    %746 = vmatpush1.bf16.msra.mxu0 0
    %747 = vmatprep.subr.bf16.mxu0 0
    %748 = vmatpush1.bf16.msra.mxu0 0
    %749 = vmatprep.subr.bf16.mxu0 0
    %750 = vmatpush1.bf16.msra.mxu0 0
    %751 = vmatprep.subr.bf16.mxu0 0
    %752 = vmatpush1.bf16.msra.mxu0 0
    %753 = vmatprep.subr.bf16.mxu0 0
    %754 = vmatpush1.bf16.msra.mxu0 0
    %755 = vmatprep.subr.bf16.mxu0 0
    %756 = vmatpush1.bf16.msra.mxu0 0
    %757 = vmatprep.subr.bf16.mxu0 0
    %758 = vmatpush1.bf16.msra.mxu0 0
    %759 = vmatprep.subr.bf16.mxu0 0
    %760 = vmatpush1.bf16.msra.mxu0 0
    %761 = vmatprep.subr.bf16.mxu0 0
    %762 = vmatpush1.bf16.msra.mxu0 0
    %763 = vmatprep.subr.bf16.mxu0 0
    %764 = vmatpush1.bf16.msra.mxu0 0
    %765 = vmatprep.subr.bf16.mxu0 0
    %766 = vmatpush1.bf16.msra.mxu0 0
    %767 = vmatprep.subr.bf16.mxu0 0
    %768 = vmatpush1.bf16.msra.mxu0 0
    %769 = vmatprep.subr.bf16.mxu0 0
    %770 = vmatpush1.bf16.msra.mxu0 0
    %771 = vmatprep.subr.bf16.mxu0 0
    %772 = vmatpush1.bf16.msra.mxu0 0
    %773 = vmatprep.mubr.bf16.mxu0 0
    %774 = vmatmul.mubr.bf16.gmra.mrb[0].mxu0 %v680
    %v775 = vpop.f32.mrb[0].mxu0
    %v776 = vadd.f32 %v735, %v775
    %v777 = vpop.f32.mrb[0].mxu0
    %v778 = vadd.f32 %v737, %v777
    %v779 = vpop.f32.mrb[0].mxu0
    %v780 = vpop.f32.mrb[0].mxu0
    %781 = vdwg.mxu0
    %782 = vmatprep.subr.bf16.mxu0 %v516
    %783 = vmatpush1.bf16.msra.mxu0 %v515
    %784 = vmatprep.subr.bf16.mxu0 %v521
    %785 = vmatpush1.bf16.msra.mxu0 %v520
    %786 = vmatprep.subr.bf16.mxu0 %v526
    %787 = vmatpush1.bf16.msra.mxu0 %v525
    %788 = vmatprep.subr.bf16.mxu0 %v531
    %789 = vmatpush1.bf16.msra.mxu0 %v530
    %790 = vmatprep.subr.bf16.mxu0 %v536
    %791 = vmatpush1.bf16.msra.mxu0 %v535
    %792 = vmatprep.subr.bf16.mxu0 %v541
    %793 = vmatpush1.bf16.msra.mxu0 %v540
    %794 = vmatprep.subr.bf16.mxu0 %v546
    %795 = vmatpush1.bf16.msra.mxu0 %v545
    %796 = vmatprep.subr.bf16.mxu0 %v551
    %797 = vmatpush1.bf16.msra.mxu0 %v550
    %798 = vmatprep.subr.bf16.mxu0 %v556
    %799 = vmatpush1.bf16.msra.mxu0 %v555
    %800 = vmatprep.subr.bf16.mxu0 %v561
    %801 = vmatpush1.bf16.msra.mxu0 %v560
    %802 = vmatprep.subr.bf16.mxu0 %v566
    %803 = vmatpush1.bf16.msra.mxu0 %v565
    %804 = vmatprep.subr.bf16.mxu0 %v571
    %805 = vmatpush1.bf16.msra.mxu0 %v570
    %806 = vmatprep.subr.bf16.mxu0 %v576
    %807 = vmatpush1.bf16.msra.mxu0 %v575
    %808 = vmatprep.subr.bf16.mxu0 %v581
    %809 = vmatpush1.bf16.msra.mxu0 %v580
    %810 = vmatprep.subr.bf16.mxu0 %v586
    %811 = vmatpush1.bf16.msra.mxu0 %v585
    %812 = vmatprep.subr.bf16.mxu0 %v591
    %813 = vmatpush1.bf16.msra.mxu0 %v590
    %814 = vmatprep.mubr.bf16.mxu0 %v148
    %815 = vmatmul.mubr.bf16.gmra.mrb[0].mxu0 %v147
    %v816 = vpop.f32.mrb[0].mxu0
    %v817 = vadd.f32 0.0, %v816
    %v818 = vpop.f32.mrb[0].mxu0
    %v819 = vadd.f32 0.0, %v818
    %v820 = vpop.f32.mrb[0].mxu0
    %v821 = vpop.f32.mrb[0].mxu0
    %822 = vdwg.mxu0
    %823 = vmatprep.subr.bf16.mxu0 %v695
    %824 = vmatpush1.bf16.msra.mxu0 %v692
    %825 = vmatprep.subr.bf16.mxu0 0
    %826 = vmatpush1.bf16.msra.mxu0 0
    %827 = vmatprep.subr.bf16.mxu0 0
    %828 = vmatpush1.bf16.msra.mxu0 0
    %829 = vmatprep.subr.bf16.mxu0 0
    %830 = vmatpush1.bf16.msra.mxu0 0
    %831 = vmatprep.subr.bf16.mxu0 0
    %832 = vmatpush1.bf16.msra.mxu0 0
    %833 = vmatprep.subr.bf16.mxu0 0
    %834 = vmatpush1.bf16.msra.mxu0 0
    %835 = vmatprep.subr.bf16.mxu0 0
    %836 = vmatpush1.bf16.msra.mxu0 0
    %837 = vmatprep.subr.bf16.mxu0 0
    %838 = vmatpush1.bf16.msra.mxu0 0
    %839 = vmatprep.subr.bf16.mxu0 0
    %840 = vmatpush1.bf16.msra.mxu0 0
    %841 = vmatprep.subr.bf16.mxu0 0
    %842 = vmatpush1.bf16.msra.mxu0 0
    %843 = vmatprep.subr.bf16.mxu0 0
    %844 = vmatpush1.bf16.msra.mxu0 0
    %845 = vmatprep.subr.bf16.mxu0 0
    %846 = vmatpush1.bf16.msra.mxu0 0
    %847 = vmatprep.subr.bf16.mxu0 0
    %848 = vmatpush1.bf16.msra.mxu0 0
    %849 = vmatprep.subr.bf16.mxu0 0
    %850 = vmatpush1.bf16.msra.mxu0 0
    %851 = vmatprep.subr.bf16.mxu0 0
    %852 = vmatpush1.bf16.msra.mxu0 0
    %853 = vmatprep.subr.bf16.mxu0 0
    %854 = vmatpush1.bf16.msra.mxu0 0
    %855 = vmatprep.mubr.bf16.mxu0 0
    %856 = vmatmul.mubr.bf16.gmra.mrb[0].mxu0 %v680
    %v857 = vpop.f32.mrb[0].mxu0
    %v858 = vadd.f32 %v817, %v857
    %v859 = vpop.f32.mrb[0].mxu0
    %v860 = vadd.f32 %v819, %v859
    %v861 = vpop.f32.mrb[0].mxu0
    %v862 = vpop.f32.mrb[0].mxu0
    %863 = vdwg.mxu0
    %864 = vmatprep.subr.bf16.mxu0 0
    %865 = vmatpush1.bf16.msra.mxu0 %v517
    %866 = vmatprep.subr.bf16.mxu0 0
    %867 = vmatpush1.bf16.msra.mxu0 %v522
    %868 = vmatprep.subr.bf16.mxu0 0
    %869 = vmatpush1.bf16.msra.mxu0 %v527
    %870 = vmatprep.subr.bf16.mxu0 0
    %871 = vmatpush1.bf16.msra.mxu0 %v532
    %872 = vmatprep.subr.bf16.mxu0 0
    %873 = vmatpush1.bf16.msra.mxu0 %v537
    %874 = vmatprep.subr.bf16.mxu0 0
    %875 = vmatpush1.bf16.msra.mxu0 %v542
    %876 = vmatprep.subr.bf16.mxu0 0
    %877 = vmatpush1.bf16.msra.mxu0 %v547
    %878 = vmatprep.subr.bf16.mxu0 0
    %879 = vmatpush1.bf16.msra.mxu0 %v552
    %880 = vmatprep.subr.bf16.mxu0 0
    %881 = vmatpush1.bf16.msra.mxu0 %v557
    %882 = vmatprep.subr.bf16.mxu0 0
    %883 = vmatpush1.bf16.msra.mxu0 %v562
    %884 = vmatprep.subr.bf16.mxu0 0
    %885 = vmatpush1.bf16.msra.mxu0 %v567
    %886 = vmatprep.subr.bf16.mxu0 0
    %887 = vmatpush1.bf16.msra.mxu0 %v572
    %888 = vmatprep.subr.bf16.mxu0 0
    %889 = vmatpush1.bf16.msra.mxu0 %v577
    %890 = vmatprep.subr.bf16.mxu0 0
    %891 = vmatpush1.bf16.msra.mxu0 %v582
    %892 = vmatprep.subr.bf16.mxu0 0
    %893 = vmatpush1.bf16.msra.mxu0 %v587
    %894 = vmatprep.subr.bf16.mxu0 0
    %895 = vmatpush1.bf16.msra.mxu0 %v592
    %896 = vmatprep.mubr.bf16.mxu0 %v148
    %897 = vmatmul.mubr.bf16.gmra.mrb[0].mxu0 %v147
    %v898 = vpop.f32.mrb[0].mxu0
    %v899 = vadd.f32 0.0, %v898
    %v900 = vpop.f32.mrb[0].mxu0
    %v901 = vpop.f32.mrb[0].mxu0
    %v902 = vpop.f32.mrb[0].mxu0
    %903 = vdwg.mxu0
    %904 = vmatprep.subr.bf16.mxu0 0
    %905 = vmatpush1.bf16.msra.mxu0 %v698
    %906 = vmatprep.subr.bf16.mxu0 0
    %907 = vmatpush1.bf16.msra.mxu0 0
    %908 = vmatprep.subr.bf16.mxu0 0
    %909 = vmatpush1.bf16.msra.mxu0 0
    %910 = vmatprep.subr.bf16.mxu0 0
    %911 = vmatpush1.bf16.msra.mxu0 0
    %912 = vmatprep.subr.bf16.mxu0 0
    %913 = vmatpush1.bf16.msra.mxu0 0
    %914 = vmatprep.subr.bf16.mxu0 0
    %915 = vmatpush1.bf16.msra.mxu0 0
    %916 = vmatprep.subr.bf16.mxu0 0
    %917 = vmatpush1.bf16.msra.mxu0 0
    %918 = vmatprep.subr.bf16.mxu0 0
    %919 = vmatpush1.bf16.msra.mxu0 0
    %920 = vmatprep.subr.bf16.mxu0 0
    %921 = vmatpush1.bf16.msra.mxu0 0
    %922 = vmatprep.subr.bf16.mxu0 0
    %923 = vmatpush1.bf16.msra.mxu0 0
    %924 = vmatprep.subr.bf16.mxu0 0
    %925 = vmatpush1.bf16.msra.mxu0 0
    %926 = vmatprep.subr.bf16.mxu0 0
    %927 = vmatpush1.bf16.msra.mxu0 0
    %928 = vmatprep.subr.bf16.mxu0 0
    %929 = vmatpush1.bf16.msra.mxu0 0
    %930 = vmatprep.subr.bf16.mxu0 0
    %931 = vmatpush1.bf16.msra.mxu0 0
    %932 = vmatprep.subr.bf16.mxu0 0
    %933 = vmatpush1.bf16.msra.mxu0 0
    %934 = vmatprep.subr.bf16.mxu0 0
    %935 = vmatpush1.bf16.msra.mxu0 0
    %936 = vmatprep.mubr.bf16.mxu0 0
    %937 = vmatmul.mubr.bf16.gmra.mrb[0].mxu0 %v680
    %v938 = vpop.f32.mrb[0].mxu0
    %v939 = vadd.f32 %v899, %v938
    %v940 = vpop.f32.mrb[0].mxu0
    %v941 = vpop.f32.mrb[0].mxu0
    %v942 = vpop.f32.mrb[0].mxu0
    %943 = vdwg.mxu0
    %v944 = vmax.f32 %v776, 0.0
    %v945 = vmax.f32 %v778, 0.0
    %v946 = vmax.f32 %v858, 0.0
    %v947 = vmax.f32 %v860, 0.0
    %v948 = vmax.f32 %v939, 0.0
    %v949 = vpack.c.bf16 %v944, %v944
    %v950 = vpack.c.bf16 %v945, %v945
    %v951 = vpack.c.bf16 %v946, %v946
    %v952 = vpack.c.bf16 %v947, %v947
    %v953 = vpack.c.bf16 %v948, %v948
    %v954 = vld [vmem:[%s3] sm:$0xff]
    %v955 = vld [vmem:[%s3 + $0x8] sm:$0xf]
    %v956 = vld [vmem:[%s3 + $0xc] sm:$0xff]
    %v957 = vld [vmem:[%s3 + $0x14] sm:$0xf]
    %v958 = vld [vmem:[%s3 + $0x18] sm:$0xff]
    %v959 = vld [vmem:[%s3 + $0x20] sm:$0xf]
    %v960 = vld [vmem:[%s3 + $0x24] sm:$0xff]
    %v961 = vld [vmem:[%s3 + $0x2c] sm:$0xf]
    %v962 = vld [vmem:[%s3 + $0x30] sm:$0xff]
    %v963 = vld [vmem:[%s3 + $0x38] sm:$0xf]
    %v964 = vld [vmem:[%s3 + $0x3c] sm:$0xff]
    %v965 = vld [vmem:[%s3 + $0x44] sm:$0xf]
    %v966 = vld [vmem:[%s3 + $0x48] sm:$0xff]
    %v967 = vld [vmem:[%s3 + $0x50] sm:$0xf]
    %v968 = vld [vmem:[%s3 + $0x54] sm:$0xff]
    %v969 = vld [vmem:[%s3 + $0x5c] sm:$0xf]
    %v970 = vld [vmem:[%s3 + $0x60] sm:$0xff]
    %v971 = vld [vmem:[%s3 + $0x68] sm:$0xf]
    %v972 = vld [vmem:[%s3 + $0x6c] sm:$0xff]
    %v973 = vld [vmem:[%s3 + $0x74] sm:$0xf]
    %v974 = vld [vmem:[%s3 + $0x78] sm:$0xff]
    %v975 = vld [vmem:[%s3 + $0x80] sm:$0xf]
    %v976 = vld [vmem:[%s3 + $0x84] sm:$0xff]
    %v977 = vld [vmem:[%s3 + $0x8c] sm:$0xf]
    %v978 = vld [vmem:[%s3 + $0x90] sm:$0xff]
    %v979 = vld [vmem:[%s3 + $0x98] sm:$0xf]
    %v980 = vld [vmem:[%s3 + $0x9c] sm:$0xff]
    %v981 = vld [vmem:[%s3 + $0xa4] sm:$0xf]
    %v982 = vld [vmem:[%s3 + $0xa8] sm:$0xff]
    %v983 = vld [vmem:[%s3 + $0xb0] sm:$0xf]
    %v984 = vld [vmem:[%s3 + $0xb4] sm:$0xff]
    %v985 = vld [vmem:[%s3 + $0xbc] sm:$0xf]
    %v986 = vld [vmem:[%s3 + $0xc0] sm:$0xff]
    %v987 = vld [vmem:[%s3 + $0xc8] sm:$0xf]
    %v988 = vld [vmem:[%s3 + $0xcc] sm:$0xff]
    %v989 = vld [vmem:[%s3 + $0xd4] sm:$0xf]
    %v990 = vld [vmem:[%s3 + $0xd8] sm:$0xff]
    %v991 = vld [vmem:[%s3 + $0xe0] sm:$0xf]
    %v992 = vld [vmem:[%s3 + $0xe4] sm:$0xff]
    %v993 = vld [vmem:[%s3 + $0xec] sm:$0xf]
    %v994 = vld [vmem:[%s3 + $0xf0] sm:$0xff]
    %v995 = vld [vmem:[%s3 + $0xf8] sm:$0xf]
    %v996 = vld [vmem:[%s3 + $0xfc] sm:$0xff]
    %v997 = vld [vmem:[%s3 + $0x104] sm:$0xf]
    %v998 = vld [vmem:[%s3 + $0x108] sm:$0xff]
    %v999 = vld [vmem:[%s3 + $0x110] sm:$0xf]
    %v1000 = vld [vmem:[%s3 + $0x114] sm:$0xff]
    %v1001 = vld [vmem:[%s3 + $0x11c] sm:$0xf]
    %v1002 = vld [vmem:[%s3 + $0x120] sm:$0xff]
    %v1003 = vld [vmem:[%s3 + $0x128] sm:$0xf]
    %v1004 = vld [vmem:[%s3 + $0x12c] sm:$0xff]
    %v1005 = vld [vmem:[%s3 + $0x134] sm:$0xf]
    %v1006 = vld [vmem:[%s3 + $0x138] sm:$0xff]
    %v1007 = vld [vmem:[%s3 + $0x140] sm:$0xf]
    %v1008 = vld [vmem:[%s3 + $0x144] sm:$0xff]
    %v1009 = vld [vmem:[%s3 + $0x14c] sm:$0xf]
    %v1010 = vld [vmem:[%s3 + $0x150] sm:$0xff]
    %v1011 = vld [vmem:[%s3 + $0x158] sm:$0xf]
    %v1012 = vld [vmem:[%s3 + $0x15c] sm:$0xff]
    %v1013 = vld [vmem:[%s3 + $0x164] sm:$0xf]
    %v1014 = vld [vmem:[%s3 + $0x168] sm:$0xff]
    %v1015 = vld [vmem:[%s3 + $0x170] sm:$0xf]
    %v1016 = vld [vmem:[%s3 + $0x174] sm:$0xff]
    %v1017 = vld [vmem:[%s3 + $0x17c] sm:$0xf]
    %v1018 = vld [vmem:[%s3 + $0x180] sm:$0xff]
    %v1019 = vld [vmem:[%s3 + $0x188] sm:$0xf]
    %v1020 = vld [vmem:[%s3 + $0x18c] sm:$0xff]
    %v1021 = vld [vmem:[%s3 + $0x194] sm:$0xf]
    %v1022 = vld [vmem:[%s3 + $0x198] sm:$0xff]
    %v1023 = vld [vmem:[%s3 + $0x1a0] sm:$0xf]
    %v1024 = vld [vmem:[%s3 + $0x1a4] sm:$0xff]
    %v1025 = vld [vmem:[%s3 + $0x1ac] sm:$0xf]
    %v1026 = vld [vmem:[%s3 + $0x1b0] sm:$0xff]
    %v1027 = vld [vmem:[%s3 + $0x1b8] sm:$0xf]
    %v1028 = vld [vmem:[%s3 + $0x1bc] sm:$0xff]
    %v1029 = vld [vmem:[%s3 + $0x1c4] sm:$0xf]
    %v1030 = vld [vmem:[%s3 + $0x1c8] sm:$0xff]
    %v1031 = vld [vmem:[%s3 + $0x1d0] sm:$0xf]
    %v1032 = vld [vmem:[%s3 + $0x1d4] sm:$0xff]
    %v1033 = vld [vmem:[%s3 + $0x1dc] sm:$0xf]
    %v1034 = vld [vmem:[%s3 + $0x1e0] sm:$0xff]
    %v1035 = vld [vmem:[%s3 + $0x1e8] sm:$0xf]
    %v1036 = vld [vmem:[%s3 + $0x1ec] sm:$0xff]
    %v1037 = vld [vmem:[%s3 + $0x1f4] sm:$0xf]
    %v1038 = vld [vmem:[%s3 + $0x1f8] sm:$0xff]
    %v1039 = vld [vmem:[%s3 + $0x200] sm:$0xf]
    %v1040 = vld [vmem:[%s3 + $0x204] sm:$0xff]
    %v1041 = vld [vmem:[%s3 + $0x20c] sm:$0xf]
    %v1042 = vld [vmem:[%s3 + $0x210] sm:$0xff]
    %v1043 = vld [vmem:[%s3 + $0x218] sm:$0xf]
    %v1044 = vld [vmem:[%s3 + $0x21c] sm:$0xff]
    %v1045 = vld [vmem:[%s3 + $0x224] sm:$0xf]
    %v1046 = vld [vmem:[%s3 + $0x228] sm:$0xff]
    %v1047 = vld [vmem:[%s3 + $0x230] sm:$0xf]
    %v1048 = vld [vmem:[%s3 + $0x234] sm:$0xff]
    %v1049 = vld [vmem:[%s3 + $0x23c] sm:$0xf]
    %v1050 = vld [vmem:[%s3 + $0x240] sm:$0xff]
    %v1051 = vld [vmem:[%s3 + $0x248] sm:$0xf]
    %v1052 = vld [vmem:[%s3 + $0x24c] sm:$0xff]
    %v1053 = vld [vmem:[%s3 + $0x254] sm:$0xf]
    %v1054 = vld [vmem:[%s3 + $0x258] sm:$0xff]
    %v1055 = vld [vmem:[%s3 + $0x260] sm:$0xf]
    %v1056 = vld [vmem:[%s3 + $0x264] sm:$0xff]
    %v1057 = vld [vmem:[%s3 + $0x26c] sm:$0xf]
    %v1058 = vld [vmem:[%s3 + $0x270] sm:$0xff]
    %v1059 = vld [vmem:[%s3 + $0x278] sm:$0xf]
    %v1060 = vld [vmem:[%s3 + $0x27c] sm:$0xff]
    %v1061 = vld [vmem:[%s3 + $0x284] sm:$0xf]
    %v1062 = vld [vmem:[%s3 + $0x288] sm:$0xff]
    %v1063 = vld [vmem:[%s3 + $0x290] sm:$0xf]
    %v1064 = vld [vmem:[%s3 + $0x294] sm:$0xff]
    %v1065 = vld [vmem:[%s3 + $0x29c] sm:$0xf]
    %v1066 = vld [vmem:[%s3 + $0x2a0] sm:$0xff]
    %v1067 = vld [vmem:[%s3 + $0x2a8] sm:$0xf]
    %v1068 = vld [vmem:[%s3 + $0x2ac] sm:$0xff]
    %v1069 = vld [vmem:[%s3 + $0x2b4] sm:$0xf]
    %v1070 = vld [vmem:[%s3 + $0x2b8] sm:$0xff]
    %v1071 = vld [vmem:[%s3 + $0x2c0] sm:$0xf]
    %v1072 = vld [vmem:[%s3 + $0x2c4] sm:$0xff]
    %v1073 = vld [vmem:[%s3 + $0x2cc] sm:$0xf]
    %v1074 = vld [vmem:[%s3 + $0x2d0] sm:$0xff]
    %v1075 = vld [vmem:[%s3 + $0x2d8] sm:$0xf]
    %v1076 = vld [vmem:[%s3 + $0x2dc] sm:$0xff]
    %v1077 = vld [vmem:[%s3 + $0x2e4] sm:$0xf]
    %v1078 = vld [vmem:[%s3 + $0x2e8] sm:$0xff]
    %v1079 = vld [vmem:[%s3 + $0x2f0] sm:$0xf]
    %v1080 = vld [vmem:[%s3 + $0x2f4] sm:$0xff]
    %v1081 = vld [vmem:[%s3 + $0x2fc] sm:$0xf]
    %v1082 = vld [vmem:[%s3 + $0x300] sm:$0x11]
    %v1083 = vld [vmem:[%s3 + $0x308] sm:$0x1]
    %v1214 = vunpack.c.l.b16 %v954
    %v1215 = vunpack.c.h.b16 %v954
    %v1216 = vunpack.c.l.b16 %v955
    %v1217 = vunpack.c.l.b16 %v956
    %v1218 = vunpack.c.h.b16 %v956
    %v1219 = vunpack.c.l.b16 %v957
    %v1220 = vunpack.c.l.b16 %v958
    %v1221 = vunpack.c.h.b16 %v958
    %v1222 = vunpack.c.l.b16 %v959
    %v1223 = vunpack.c.l.b16 %v960
    %v1224 = vunpack.c.h.b16 %v960
    %v1225 = vunpack.c.l.b16 %v961
    %v1226 = vunpack.c.l.b16 %v962
    %v1227 = vunpack.c.h.b16 %v962
    %v1228 = vunpack.c.l.b16 %v963
    %v1229 = vunpack.c.l.b16 %v964
    %v1230 = vunpack.c.h.b16 %v964
    %v1231 = vunpack.c.l.b16 %v965
    %v1232 = vunpack.c.l.b16 %v966
    %v1233 = vunpack.c.h.b16 %v966
    %v1234 = vunpack.c.l.b16 %v967
    %v1235 = vunpack.c.l.b16 %v968
    %v1236 = vunpack.c.h.b16 %v968
    %v1237 = vunpack.c.l.b16 %v969
    %v1238 = vunpack.c.l.b16 %v970
    %v1239 = vunpack.c.h.b16 %v970
    %v1240 = vunpack.c.l.b16 %v971
    %v1241 = vunpack.c.l.b16 %v972
    %v1242 = vunpack.c.h.b16 %v972
    %v1243 = vunpack.c.l.b16 %v973
    %v1244 = vunpack.c.l.b16 %v974
    %v1245 = vunpack.c.h.b16 %v974
    %v1246 = vunpack.c.l.b16 %v975
    %v1247 = vunpack.c.l.b16 %v976
    %v1248 = vunpack.c.h.b16 %v976
    %v1249 = vunpack.c.l.b16 %v977
    %v1250 = vunpack.c.l.b16 %v978
    %v1251 = vunpack.c.h.b16 %v978
    %v1252 = vunpack.c.l.b16 %v979
    %v1253 = vunpack.c.l.b16 %v980
    %v1254 = vunpack.c.h.b16 %v980
    %v1255 = vunpack.c.l.b16 %v981
    %v1256 = vunpack.c.l.b16 %v982
    %v1257 = vunpack.c.h.b16 %v982
    %v1258 = vunpack.c.l.b16 %v983
    %v1259 = vunpack.c.l.b16 %v984
    %v1260 = vunpack.c.h.b16 %v984
    %v1261 = vunpack.c.l.b16 %v985
    %v1262 = vunpack.c.l.b16 %v986
    %v1263 = vunpack.c.h.b16 %v986
    %v1264 = vunpack.c.l.b16 %v987
    %v1265 = vunpack.c.l.b16 %v988
    %v1266 = vunpack.c.h.b16 %v988
    %v1267 = vunpack.c.l.b16 %v989
    %v1268 = vunpack.c.l.b16 %v990
    %v1269 = vunpack.c.h.b16 %v990
    %v1270 = vunpack.c.l.b16 %v991
    %v1271 = vunpack.c.l.b16 %v992
    %v1272 = vunpack.c.h.b16 %v992
    %v1273 = vunpack.c.l.b16 %v993
    %v1274 = vunpack.c.l.b16 %v994
    %v1275 = vunpack.c.h.b16 %v994
    %v1276 = vunpack.c.l.b16 %v995
    %v1277 = vunpack.c.l.b16 %v996
    %v1278 = vunpack.c.h.b16 %v996
    %v1279 = vunpack.c.l.b16 %v997
    %v1280 = vunpack.c.l.b16 %v998
    %v1281 = vunpack.c.h.b16 %v998
    %v1282 = vunpack.c.l.b16 %v999
    %v1283 = vunpack.c.l.b16 %v1000
    %v1284 = vunpack.c.h.b16 %v1000
    %v1285 = vunpack.c.l.b16 %v1001
    %v1286 = vunpack.c.l.b16 %v1002
    %v1287 = vunpack.c.h.b16 %v1002
    %v1288 = vunpack.c.l.b16 %v1003
    %v1289 = vunpack.c.l.b16 %v1004
    %v1290 = vunpack.c.h.b16 %v1004
    %v1291 = vunpack.c.l.b16 %v1005
    %v1292 = vunpack.c.l.b16 %v1006
    %v1293 = vunpack.c.h.b16 %v1006
    %v1294 = vunpack.c.l.b16 %v1007
    %v1295 = vunpack.c.l.b16 %v1008
    %v1296 = vunpack.c.h.b16 %v1008
    %v1297 = vunpack.c.l.b16 %v1009
    %v1298 = vunpack.c.l.b16 %v1010
    %v1299 = vunpack.c.h.b16 %v1010
    %v1300 = vunpack.c.l.b16 %v1011
    %v1301 = vunpack.c.l.b16 %v1012
    %v1302 = vunpack.c.h.b16 %v1012
    %v1303 = vunpack.c.l.b16 %v1013
    %v1304 = vunpack.c.l.b16 %v1014
    %v1305 = vunpack.c.h.b16 %v1014
    %v1306 = vunpack.c.l.b16 %v1015
    %v1307 = vunpack.c.l.b16 %v1016
    %v1308 = vunpack.c.h.b16 %v1016
    %v1309 = vunpack.c.l.b16 %v1017
    %v1310 = vunpack.c.l.b16 %v1018
    %v1311 = vunpack.c.h.b16 %v1018
    %v1312 = vunpack.c.l.b16 %v1019
    %v1313 = vunpack.c.l.b16 %v1020
    %v1314 = vunpack.c.h.b16 %v1020
    %v1315 = vunpack.c.l.b16 %v1021
    %v1316 = vunpack.c.l.b16 %v1022
    %v1317 = vunpack.c.h.b16 %v1022
    %v1318 = vunpack.c.l.b16 %v1023
    %v1319 = vunpack.c.l.b16 %v1024
    %v1320 = vunpack.c.h.b16 %v1024
    %v1321 = vunpack.c.l.b16 %v1025
    %v1322 = vunpack.c.l.b16 %v1026
    %v1323 = vunpack.c.h.b16 %v1026
    %v1324 = vunpack.c.l.b16 %v1027
    %v1325 = vunpack.c.l.b16 %v1028
    %v1326 = vunpack.c.h.b16 %v1028
    %v1327 = vunpack.c.l.b16 %v1029
    %v1328 = vunpack.c.l.b16 %v1030
    %v1329 = vunpack.c.h.b16 %v1030
    %v1330 = vunpack.c.l.b16 %v1031
    %v1331 = vunpack.c.l.b16 %v1032
    %v1332 = vunpack.c.h.b16 %v1032
    %v1333 = vunpack.c.l.b16 %v1033
    %v1334 = vunpack.c.l.b16 %v1034
    %v1335 = vunpack.c.h.b16 %v1034
    %v1336 = vunpack.c.l.b16 %v1035
    %v1337 = vunpack.c.l.b16 %v1036
    %v1338 = vunpack.c.h.b16 %v1036
    %v1339 = vunpack.c.l.b16 %v1037
    %v1340 = vunpack.c.l.b16 %v1038
    %v1341 = vunpack.c.h.b16 %v1038
    %v1342 = vunpack.c.l.b16 %v1039
    %v1343 = vunpack.c.l.b16 %v1040
    %v1344 = vunpack.c.h.b16 %v1040
    %v1345 = vunpack.c.l.b16 %v1041
    %v1346 = vunpack.c.l.b16 %v1042
    %v1347 = vunpack.c.h.b16 %v1042
    %v1348 = vunpack.c.l.b16 %v1043
    %v1349 = vunpack.c.l.b16 %v1044
    %v1350 = vunpack.c.h.b16 %v1044
    %v1351 = vunpack.c.l.b16 %v1045
    %v1352 = vunpack.c.l.b16 %v1046
    %v1353 = vunpack.c.h.b16 %v1046
    %v1354 = vunpack.c.l.b16 %v1047
    %v1355 = vunpack.c.l.b16 %v1048
    %v1356 = vunpack.c.h.b16 %v1048
    %v1357 = vunpack.c.l.b16 %v1049
    %v1358 = vunpack.c.l.b16 %v1050
    %v1359 = vunpack.c.h.b16 %v1050
    %v1360 = vunpack.c.l.b16 %v1051
    %v1361 = vunpack.c.l.b16 %v1052
    %v1362 = vunpack.c.h.b16 %v1052
    %v1363 = vunpack.c.l.b16 %v1053
    %v1364 = vunpack.c.l.b16 %v1054
    %v1365 = vunpack.c.h.b16 %v1054
    %v1366 = vunpack.c.l.b16 %v1055
    %v1367 = vunpack.c.l.b16 %v1056
    %v1368 = vunpack.c.h.b16 %v1056
    %v1369 = vunpack.c.l.b16 %v1057
    %v1370 = vunpack.c.l.b16 %v1058
    %v1371 = vunpack.c.h.b16 %v1058
    %v1372 = vunpack.c.l.b16 %v1059
    %v1373 = vunpack.c.l.b16 %v1060
    %v1374 = vunpack.c.h.b16 %v1060
    %v1375 = vunpack.c.l.b16 %v1061
    %v1376 = vunpack.c.l.b16 %v1062
    %v1377 = vunpack.c.h.b16 %v1062
    %v1378 = vunpack.c.l.b16 %v1063
    %v1379 = vunpack.c.l.b16 %v1064
    %v1380 = vunpack.c.h.b16 %v1064
    %v1381 = vunpack.c.l.b16 %v1065
    %v1382 = vunpack.c.l.b16 %v1066
    %v1383 = vunpack.c.h.b16 %v1066
    %v1384 = vunpack.c.l.b16 %v1067
    %v1385 = vunpack.c.l.b16 %v1068
    %v1386 = vunpack.c.h.b16 %v1068
    %v1387 = vunpack.c.l.b16 %v1069
    %v1388 = vunpack.c.l.b16 %v1070
    %v1389 = vunpack.c.h.b16 %v1070
    %v1390 = vunpack.c.l.b16 %v1071
    %v1391 = vunpack.c.l.b16 %v1072
    %v1392 = vunpack.c.h.b16 %v1072
    %v1393 = vunpack.c.l.b16 %v1073
    %v1394 = vunpack.c.l.b16 %v1074
    %v1395 = vunpack.c.h.b16 %v1074
    %v1396 = vunpack.c.l.b16 %v1075
    %v1397 = vunpack.c.l.b16 %v1076
    %v1398 = vunpack.c.h.b16 %v1076
    %v1399 = vunpack.c.l.b16 %v1077
    %v1400 = vunpack.c.l.b16 %v1078
    %v1401 = vunpack.c.h.b16 %v1078
    %v1402 = vunpack.c.l.b16 %v1079
    %v1403 = vunpack.c.l.b16 %v1080
    %v1404 = vunpack.c.h.b16 %v1080
    %v1405 = vunpack.c.l.b16 %v1081
    %v1406 = vunpack.c.l.b16 %v1082
    %v1407 = vunpack.c.h.b16 %v1082
    %v1408 = vunpack.c.l.b16 %v1083
    %v1409 = vpack.c.b16 %v1217, %v1214
    %v1410 = vpack.c.b16 %v1218, %v1215
    %v1411 = vpack.c.b16 %v1219, %v1216
    %v1412 = vpack.c.b16 %v1223, %v1220
    %v1413 = vpack.c.b16 %v1224, %v1221
    %v1414 = vpack.c.b16 %v1225, %v1222
    %v1415 = vpack.c.b16 %v1229, %v1226
    %v1416 = vpack.c.b16 %v1230, %v1227
    %v1417 = vpack.c.b16 %v1231, %v1228
    %v1418 = vpack.c.b16 %v1235, %v1232
    %v1419 = vpack.c.b16 %v1236, %v1233
    %v1420 = vpack.c.b16 %v1237, %v1234
    %v1421 = vpack.c.b16 %v1241, %v1238
    %v1422 = vpack.c.b16 %v1242, %v1239
    %v1423 = vpack.c.b16 %v1243, %v1240
    %v1424 = vpack.c.b16 %v1247, %v1244
    %v1425 = vpack.c.b16 %v1248, %v1245
    %v1426 = vpack.c.b16 %v1249, %v1246
    %v1427 = vpack.c.b16 %v1253, %v1250
    %v1428 = vpack.c.b16 %v1254, %v1251
    %v1429 = vpack.c.b16 %v1255, %v1252
    %v1430 = vpack.c.b16 %v1259, %v1256
    %v1431 = vpack.c.b16 %v1260, %v1257
    %v1432 = vpack.c.b16 %v1261, %v1258
    %v1433 = vpack.c.b16 %v1265, %v1262
    %v1434 = vpack.c.b16 %v1266, %v1263
    %v1435 = vpack.c.b16 %v1267, %v1264
    %v1436 = vpack.c.b16 %v1271, %v1268
    %v1437 = vpack.c.b16 %v1272, %v1269
    %v1438 = vpack.c.b16 %v1273, %v1270
    %v1439 = vpack.c.b16 %v1277, %v1274
    %v1440 = vpack.c.b16 %v1278, %v1275
    %v1441 = vpack.c.b16 %v1279, %v1276
    %v1442 = vpack.c.b16 %v1283, %v1280
    %v1443 = vpack.c.b16 %v1284, %v1281
    %v1444 = vpack.c.b16 %v1285, %v1282
    %v1445 = vpack.c.b16 %v1289, %v1286
    %v1446 = vpack.c.b16 %v1290, %v1287
    %v1447 = vpack.c.b16 %v1291, %v1288
    %v1448 = vpack.c.b16 %v1295, %v1292
    %v1449 = vpack.c.b16 %v1296, %v1293
    %v1450 = vpack.c.b16 %v1297, %v1294
    %v1451 = vpack.c.b16 %v1301, %v1298
    %v1452 = vpack.c.b16 %v1302, %v1299
    %v1453 = vpack.c.b16 %v1303, %v1300
    %v1454 = vpack.c.b16 %v1307, %v1304
    %v1455 = vpack.c.b16 %v1308, %v1305
    %v1456 = vpack.c.b16 %v1309, %v1306
    %v1457 = vpack.c.b16 %v1313, %v1310
    %v1458 = vpack.c.b16 %v1314, %v1311
    %v1459 = vpack.c.b16 %v1315, %v1312
    %v1460 = vpack.c.b16 %v1319, %v1316
    %v1461 = vpack.c.b16 %v1320, %v1317
    %v1462 = vpack.c.b16 %v1321, %v1318
    %v1463 = vpack.c.b16 %v1325, %v1322
    %v1464 = vpack.c.b16 %v1326, %v1323
    %v1465 = vpack.c.b16 %v1327, %v1324
    %v1466 = vpack.c.b16 %v1331, %v1328
    %v1467 = vpack.c.b16 %v1332, %v1329
    %v1468 = vpack.c.b16 %v1333, %v1330
    %v1469 = vpack.c.b16 %v1337, %v1334
    %v1470 = vpack.c.b16 %v1338, %v1335
    %v1471 = vpack.c.b16 %v1339, %v1336
    %v1472 = vpack.c.b16 %v1343, %v1340
    %v1473 = vpack.c.b16 %v1344, %v1341
    %v1474 = vpack.c.b16 %v1345, %v1342
    %v1475 = vpack.c.b16 %v1349, %v1346
    %v1476 = vpack.c.b16 %v1350, %v1347
    %v1477 = vpack.c.b16 %v1351, %v1348
    %v1478 = vpack.c.b16 %v1355, %v1352
    %v1479 = vpack.c.b16 %v1356, %v1353
    %v1480 = vpack.c.b16 %v1357, %v1354
    %v1481 = vpack.c.b16 %v1361, %v1358
    %v1482 = vpack.c.b16 %v1362, %v1359
    %v1483 = vpack.c.b16 %v1363, %v1360
    %v1484 = vpack.c.b16 %v1367, %v1364
    %v1485 = vpack.c.b16 %v1368, %v1365
    %v1486 = vpack.c.b16 %v1369, %v1366
    %v1487 = vpack.c.b16 %v1373, %v1370
    %v1488 = vpack.c.b16 %v1374, %v1371
    %v1489 = vpack.c.b16 %v1375, %v1372
    %v1490 = vpack.c.b16 %v1379, %v1376
    %v1491 = vpack.c.b16 %v1380, %v1377
    %v1492 = vpack.c.b16 %v1381, %v1378
    %v1493 = vpack.c.b16 %v1385, %v1382
    %v1494 = vpack.c.b16 %v1386, %v1383
    %v1495 = vpack.c.b16 %v1387, %v1384
    %v1496 = vpack.c.b16 %v1391, %v1388
    %v1497 = vpack.c.b16 %v1392, %v1389
    %v1498 = vpack.c.b16 %v1393, %v1390
    %v1499 = vpack.c.b16 %v1397, %v1394
    %v1500 = vpack.c.b16 %v1398, %v1395
    %v1501 = vpack.c.b16 %v1399, %v1396
    %v1502 = vpack.c.b16 %v1403, %v1400
    %v1503 = vpack.c.b16 %v1404, %v1401
    %v1504 = vpack.c.b16 %v1405, %v1402
    %v1505 = vpack.c.b16 %v1406, %v1406
    %v1506 = vpack.c.b16 %v1407, %v1407
    %v1507 = vpack.c.b16 %v1408, %v1408
    %v1605 = vsel %vm678, %v953, 0
    %v1608 = vand.u32 %v1505, %v684
    %v1611 = vand.u32 %v1506, %v684
    %v1614 = vand.u32 %v1507, %v684
    %1616 = vmatprep.subr.bf16.mxu0 %v1410
    %1617 = vmatpush1.bf16.msra.mxu0 %v1409
    %1618 = vmatprep.subr.bf16.mxu0 %v1413
    %1619 = vmatpush1.bf16.msra.mxu0 %v1412
    %1620 = vmatprep.subr.bf16.mxu0 %v1416
    %1621 = vmatpush1.bf16.msra.mxu0 %v1415
    %1622 = vmatprep.subr.bf16.mxu0 %v1419
    %1623 = vmatpush1.bf16.msra.mxu0 %v1418
    %1624 = vmatprep.subr.bf16.mxu0 %v1422
    %1625 = vmatpush1.bf16.msra.mxu0 %v1421
    %1626 = vmatprep.subr.bf16.mxu0 %v1425
    %1627 = vmatpush1.bf16.msra.mxu0 %v1424
    %1628 = vmatprep.subr.bf16.mxu0 %v1428
    %1629 = vmatpush1.bf16.msra.mxu0 %v1427
    %1630 = vmatprep.subr.bf16.mxu0 %v1431
    %1631 = vmatpush1.bf16.msra.mxu0 %v1430
    %1632 = vmatprep.subr.bf16.mxu0 %v1434
    %1633 = vmatpush1.bf16.msra.mxu0 %v1433
    %1634 = vmatprep.subr.bf16.mxu0 %v1437
    %1635 = vmatpush1.bf16.msra.mxu0 %v1436
    %1636 = vmatprep.subr.bf16.mxu0 %v1440
    %1637 = vmatpush1.bf16.msra.mxu0 %v1439
    %1638 = vmatprep.subr.bf16.mxu0 %v1443
    %1639 = vmatpush1.bf16.msra.mxu0 %v1442
    %1640 = vmatprep.subr.bf16.mxu0 %v1446
    %1641 = vmatpush1.bf16.msra.mxu0 %v1445
    %1642 = vmatprep.subr.bf16.mxu0 %v1449
    %1643 = vmatpush1.bf16.msra.mxu0 %v1448
    %1644 = vmatprep.subr.bf16.mxu0 %v1452
    %1645 = vmatpush1.bf16.msra.mxu0 %v1451
    %1646 = vmatprep.subr.bf16.mxu0 %v1455
    %1647 = vmatpush1.bf16.msra.mxu0 %v1454
    %1648 = vmatprep.mubr.bf16.mxu0 %v950
    %1649 = vmatmul.mubr.bf16.gmra.mrb[0].mxu0 %v949
    %v1650 = vpop.f32.mrb[0].mxu0
    %v1651 = vadd.f32 0.0, %v1650
    %v1652 = vpop.f32.mrb[0].mxu0
    %v1653 = vadd.f32 0.0, %v1652
    %v1654 = vpop.f32.mrb[0].mxu0
    %v1655 = vpop.f32.mrb[0].mxu0
    %1656 = vdwg.mxu0
    %1657 = vmatprep.subr.bf16.mxu0 %v1458
    %1658 = vmatpush1.bf16.msra.mxu0 %v1457
    %1659 = vmatprep.subr.bf16.mxu0 %v1461
    %1660 = vmatpush1.bf16.msra.mxu0 %v1460
    %1661 = vmatprep.subr.bf16.mxu0 %v1464
    %1662 = vmatpush1.bf16.msra.mxu0 %v1463
    %1663 = vmatprep.subr.bf16.mxu0 %v1467
    %1664 = vmatpush1.bf16.msra.mxu0 %v1466
    %1665 = vmatprep.subr.bf16.mxu0 %v1470
    %1666 = vmatpush1.bf16.msra.mxu0 %v1469
    %1667 = vmatprep.subr.bf16.mxu0 %v1473
    %1668 = vmatpush1.bf16.msra.mxu0 %v1472
    %1669 = vmatprep.subr.bf16.mxu0 %v1476
    %1670 = vmatpush1.bf16.msra.mxu0 %v1475
    %1671 = vmatprep.subr.bf16.mxu0 %v1479
    %1672 = vmatpush1.bf16.msra.mxu0 %v1478
    %1673 = vmatprep.subr.bf16.mxu0 %v1482
    %1674 = vmatpush1.bf16.msra.mxu0 %v1481
    %1675 = vmatprep.subr.bf16.mxu0 %v1485
    %1676 = vmatpush1.bf16.msra.mxu0 %v1484
    %1677 = vmatprep.subr.bf16.mxu0 %v1488
    %1678 = vmatpush1.bf16.msra.mxu0 %v1487
    %1679 = vmatprep.subr.bf16.mxu0 %v1491
    %1680 = vmatpush1.bf16.msra.mxu0 %v1490
    %1681 = vmatprep.subr.bf16.mxu0 %v1494
    %1682 = vmatpush1.bf16.msra.mxu0 %v1493
    %1683 = vmatprep.subr.bf16.mxu0 %v1497
    %1684 = vmatpush1.bf16.msra.mxu0 %v1496
    %1685 = vmatprep.subr.bf16.mxu0 %v1500
    %1686 = vmatpush1.bf16.msra.mxu0 %v1499
    %1687 = vmatprep.subr.bf16.mxu0 %v1503
    %1688 = vmatpush1.bf16.msra.mxu0 %v1502
    %1689 = vmatprep.mubr.bf16.mxu0 %v952
    %1690 = vmatmul.mubr.bf16.gmra.mrb[0].mxu0 %v951
    %v1691 = vpop.f32.mrb[0].mxu0
    %v1692 = vadd.f32 %v1651, %v1691
    %v1693 = vpop.f32.mrb[0].mxu0
    %v1694 = vadd.f32 %v1653, %v1693
    %v1695 = vpop.f32.mrb[0].mxu0
    %v1696 = vpop.f32.mrb[0].mxu0
    %1697 = vdwg.mxu0
    %1698 = vmatprep.subr.bf16.mxu0 %v1611
    %1699 = vmatpush1.bf16.msra.mxu0 %v1608
    %1700 = vmatprep.subr.bf16.mxu0 0
    %1701 = vmatpush1.bf16.msra.mxu0 0
    %1702 = vmatprep.subr.bf16.mxu0 0
    %1703 = vmatpush1.bf16.msra.mxu0 0
    %1704 = vmatprep.subr.bf16.mxu0 0
    %1705 = vmatpush1.bf16.msra.mxu0 0
    %1706 = vmatprep.subr.bf16.mxu0 0
    %1707 = vmatpush1.bf16.msra.mxu0 0
    %1708 = vmatprep.subr.bf16.mxu0 0
    %1709 = vmatpush1.bf16.msra.mxu0 0
    %1710 = vmatprep.subr.bf16.mxu0 0
    %1711 = vmatpush1.bf16.msra.mxu0 0
    %1712 = vmatprep.subr.bf16.mxu0 0
    %1713 = vmatpush1.bf16.msra.mxu0 0
    %1714 = vmatprep.subr.bf16.mxu0 0
    %1715 = vmatpush1.bf16.msra.mxu0 0
    %1716 = vmatprep.subr.bf16.mxu0 0
    %1717 = vmatpush1.bf16.msra.mxu0 0
    %1718 = vmatprep.subr.bf16.mxu0 0
    %1719 = vmatpush1.bf16.msra.mxu0 0
    %1720 = vmatprep.subr.bf16.mxu0 0
    %1721 = vmatpush1.bf16.msra.mxu0 0
    %1722 = vmatprep.subr.bf16.mxu0 0
    %1723 = vmatpush1.bf16.msra.mxu0 0
    %1724 = vmatprep.subr.bf16.mxu0 0
    %1725 = vmatpush1.bf16.msra.mxu0 0
    %1726 = vmatprep.subr.bf16.mxu0 0
    %1727 = vmatpush1.bf16.msra.mxu0 0
    %1728 = vmatprep.subr.bf16.mxu0 0
    %1729 = vmatpush1.bf16.msra.mxu0 0
    %1730 = vmatprep.mubr.bf16.mxu0 0
    %1731 = vmatmul.mubr.bf16.gmra.mrb[0].mxu0 %v1605
    %v1732 = vpop.f32.mrb[0].mxu0
    %v1733 = vadd.f32 %v1692, %v1732
    %v1734 = vpop.f32.mrb[0].mxu0
    %v1735 = vadd.f32 %v1694, %v1734
    %v1736 = vpop.f32.mrb[0].mxu0
    %v1737 = vpop.f32.mrb[0].mxu0
    %1738 = vdwg.mxu0
    %1739 = vmatprep.subr.bf16.mxu0 0
    %1740 = vmatpush1.bf16.msra.mxu0 %v1411
    %1741 = vmatprep.subr.bf16.mxu0 0
    %1742 = vmatpush1.bf16.msra.mxu0 %v1414
    %1743 = vmatprep.subr.bf16.mxu0 0
    %1744 = vmatpush1.bf16.msra.mxu0 %v1417
    %1745 = vmatprep.subr.bf16.mxu0 0
    %1746 = vmatpush1.bf16.msra.mxu0 %v1420
    %1747 = vmatprep.subr.bf16.mxu0 0
    %1748 = vmatpush1.bf16.msra.mxu0 %v1423
    %1749 = vmatprep.subr.bf16.mxu0 0
    %1750 = vmatpush1.bf16.msra.mxu0 %v1426
    %1751 = vmatprep.subr.bf16.mxu0 0
    %1752 = vmatpush1.bf16.msra.mxu0 %v1429
    %1753 = vmatprep.subr.bf16.mxu0 0
    %1754 = vmatpush1.bf16.msra.mxu0 %v1432
    %1755 = vmatprep.subr.bf16.mxu0 0
    %1756 = vmatpush1.bf16.msra.mxu0 %v1435
    %1757 = vmatprep.subr.bf16.mxu0 0
    %1758 = vmatpush1.bf16.msra.mxu0 %v1438
    %1759 = vmatprep.subr.bf16.mxu0 0
    %1760 = vmatpush1.bf16.msra.mxu0 %v1441
    %1761 = vmatprep.subr.bf16.mxu0 0
    %1762 = vmatpush1.bf16.msra.mxu0 %v1444
    %1763 = vmatprep.subr.bf16.mxu0 0
    %1764 = vmatpush1.bf16.msra.mxu0 %v1447
    %1765 = vmatprep.subr.bf16.mxu0 0
    %1766 = vmatpush1.bf16.msra.mxu0 %v1450
    %1767 = vmatprep.subr.bf16.mxu0 0
    %1768 = vmatpush1.bf16.msra.mxu0 %v1453
    %1769 = vmatprep.subr.bf16.mxu0 0
    %1770 = vmatpush1.bf16.msra.mxu0 %v1456
    %1771 = vmatprep.mubr.bf16.mxu0 %v950
    %1772 = vmatmul.mubr.bf16.gmra.mrb[0].mxu0 %v949
    %v1773 = vpop.f32.mrb[0].mxu0
    %v1774 = vadd.f32 0.0, %v1773
    %v1775 = vpop.f32.mrb[0].mxu0
    %v1776 = vpop.f32.mrb[0].mxu0
    %v1777 = vpop.f32.mrb[0].mxu0
    %1778 = vdwg.mxu0
    %1779 = vmatprep.subr.bf16.mxu0 0
    %1780 = vmatpush1.bf16.msra.mxu0 %v1459
    %1781 = vmatprep.subr.bf16.mxu0 0
    %1782 = vmatpush1.bf16.msra.mxu0 %v1462
    %1783 = vmatprep.subr.bf16.mxu0 0
    %1784 = vmatpush1.bf16.msra.mxu0 %v1465
    %1785 = vmatprep.subr.bf16.mxu0 0
    %1786 = vmatpush1.bf16.msra.mxu0 %v1468
    %1787 = vmatprep.subr.bf16.mxu0 0
    %1788 = vmatpush1.bf16.msra.mxu0 %v1471
    %1789 = vmatprep.subr.bf16.mxu0 0
    %1790 = vmatpush1.bf16.msra.mxu0 %v1474
    %1791 = vmatprep.subr.bf16.mxu0 0
    %1792 = vmatpush1.bf16.msra.mxu0 %v1477
    %1793 = vmatprep.subr.bf16.mxu0 0
    %1794 = vmatpush1.bf16.msra.mxu0 %v1480
    %1795 = vmatprep.subr.bf16.mxu0 0
    %1796 = vmatpush1.bf16.msra.mxu0 %v1483
    %1797 = vmatprep.subr.bf16.mxu0 0
    %1798 = vmatpush1.bf16.msra.mxu0 %v1486
    %1799 = vmatprep.subr.bf16.mxu0 0
    %1800 = vmatpush1.bf16.msra.mxu0 %v1489
    %1801 = vmatprep.subr.bf16.mxu0 0
    %1802 = vmatpush1.bf16.msra.mxu0 %v1492
    %1803 = vmatprep.subr.bf16.mxu0 0
    %1804 = vmatpush1.bf16.msra.mxu0 %v1495
    %1805 = vmatprep.subr.bf16.mxu0 0
    %1806 = vmatpush1.bf16.msra.mxu0 %v1498
    %1807 = vmatprep.subr.bf16.mxu0 0
    %1808 = vmatpush1.bf16.msra.mxu0 %v1501
    %1809 = vmatprep.subr.bf16.mxu0 0
    %1810 = vmatpush1.bf16.msra.mxu0 %v1504
    %1811 = vmatprep.mubr.bf16.mxu0 %v952
    %1812 = vmatmul.mubr.bf16.gmra.mrb[0].mxu0 %v951
    %v1813 = vpop.f32.mrb[0].mxu0
    %v1814 = vadd.f32 %v1774, %v1813
    %v1815 = vpop.f32.mrb[0].mxu0
    %v1816 = vpop.f32.mrb[0].mxu0
    %v1817 = vpop.f32.mrb[0].mxu0
    %1818 = vdwg.mxu0
    %1819 = vmatprep.subr.bf16.mxu0 0
    %1820 = vmatpush1.bf16.msra.mxu0 %v1614
    %1821 = vmatprep.subr.bf16.mxu0 0
    %1822 = vmatpush1.bf16.msra.mxu0 0
    %1823 = vmatprep.subr.bf16.mxu0 0
    %1824 = vmatpush1.bf16.msra.mxu0 0
    %1825 = vmatprep.subr.bf16.mxu0 0
    %1826 = vmatpush1.bf16.msra.mxu0 0
    %1827 = vmatprep.subr.bf16.mxu0 0
    %1828 = vmatpush1.bf16.msra.mxu0 0
    %1829 = vmatprep.subr.bf16.mxu0 0
    %1830 = vmatpush1.bf16.msra.mxu0 0
    %1831 = vmatprep.subr.bf16.mxu0 0
    %1832 = vmatpush1.bf16.msra.mxu0 0
    %1833 = vmatprep.subr.bf16.mxu0 0
    %1834 = vmatpush1.bf16.msra.mxu0 0
    %1835 = vmatprep.subr.bf16.mxu0 0
    %1836 = vmatpush1.bf16.msra.mxu0 0
    %1837 = vmatprep.subr.bf16.mxu0 0
    %1838 = vmatpush1.bf16.msra.mxu0 0
    %1839 = vmatprep.subr.bf16.mxu0 0
    %1840 = vmatpush1.bf16.msra.mxu0 0
    %1841 = vmatprep.subr.bf16.mxu0 0
    %1842 = vmatpush1.bf16.msra.mxu0 0
    %1843 = vmatprep.subr.bf16.mxu0 0
    %1844 = vmatpush1.bf16.msra.mxu0 0
    %1845 = vmatprep.subr.bf16.mxu0 0
    %1846 = vmatpush1.bf16.msra.mxu0 0
    %1847 = vmatprep.subr.bf16.mxu0 0
    %1848 = vmatpush1.bf16.msra.mxu0 0
    %1849 = vmatprep.subr.bf16.mxu0 0
    %1850 = vmatpush1.bf16.msra.mxu0 0
    %1851 = vmatprep.mubr.bf16.mxu0 0
    %1852 = vmatmul.mubr.bf16.gmra.mrb[0].mxu0 %v1605
    %v1853 = vpop.f32.mrb[0].mxu0
    %v1854 = vadd.f32 %v1814, %v1853
    %v1855 = vpop.f32.mrb[0].mxu0
    %v1856 = vpop.f32.mrb[0].mxu0
    %v1857 = vpop.f32.mrb[0].mxu0
    %1858 = vdwg.mxu0
    %v1859 = vmax.f32 %v1733, 0.0
    %v1860 = vmax.f32 %v1735, 0.0
    %v1861 = vmax.f32 %v1854, 0.0
    %v1862 = vpack.c.bf16 %v1859, %v1859
    %v1863 = vpack.c.bf16 %v1860, %v1860
    %v1864 = vpack.c.bf16 %v1861, %v1861
    %v1865 = vld [vmem:[%s4] sm:$0xff]
    %v1866 = vld [vmem:[%s4 + $0x8] sm:$0xff]
    %v1867 = vld [vmem:[%s4 + $0x10] sm:$0xf]
    %v1868 = vld [vmem:[%s4 + $0x14] sm:$0xff]
    %v1869 = vld [vmem:[%s4 + $0x1c] sm:$0xff]
    %v1870 = vld [vmem:[%s4 + $0x24] sm:$0xf]
    %v1871 = vld [vmem:[%s4 + $0x28] sm:$0xff]
    %v1872 = vld [vmem:[%s4 + $0x30] sm:$0xff]
    %v1873 = vld [vmem:[%s4 + $0x38] sm:$0xf]
    %v1874 = vld [vmem:[%s4 + $0x3c] sm:$0xff]
    %v1875 = vld [vmem:[%s4 + $0x44] sm:$0xff]
    %v1876 = vld [vmem:[%s4 + $0x4c] sm:$0xf]
    %v1877 = vld [vmem:[%s4 + $0x50] sm:$0xff]
    %v1878 = vld [vmem:[%s4 + $0x58] sm:$0xff]
    %v1879 = vld [vmem:[%s4 + $0x60] sm:$0xf]
    %v1880 = vld [vmem:[%s4 + $0x64] sm:$0xff]
    %v1881 = vld [vmem:[%s4 + $0x6c] sm:$0xff]
    %v1882 = vld [vmem:[%s4 + $0x74] sm:$0xf]
    %v1883 = vld [vmem:[%s4 + $0x78] sm:$0xff]
    %v1884 = vld [vmem:[%s4 + $0x80] sm:$0xff]
    %v1885 = vld [vmem:[%s4 + $0x88] sm:$0xf]
    %v1886 = vld [vmem:[%s4 + $0x8c] sm:$0xff]
    %v1887 = vld [vmem:[%s4 + $0x94] sm:$0xff]
    %v1888 = vld [vmem:[%s4 + $0x9c] sm:$0xf]
    %v1889 = vld [vmem:[%s4 + $0xa0] sm:$0xff]
    %v1890 = vld [vmem:[%s4 + $0xa8] sm:$0xff]
    %v1891 = vld [vmem:[%s4 + $0xb0] sm:$0xf]
    %v1892 = vld [vmem:[%s4 + $0xb4] sm:$0xff]
    %v1893 = vld [vmem:[%s4 + $0xbc] sm:$0xff]
    %v1894 = vld [vmem:[%s4 + $0xc4] sm:$0xf]
    %v1895 = vld [vmem:[%s4 + $0xc8] sm:$0xff]
    %v1896 = vld [vmem:[%s4 + $0xd0] sm:$0xff]
    %v1897 = vld [vmem:[%s4 + $0xd8] sm:$0xf]
    %v1898 = vld [vmem:[%s4 + $0xdc] sm:$0xff]
    %v1899 = vld [vmem:[%s4 + $0xe4] sm:$0xff]
    %v1900 = vld [vmem:[%s4 + $0xec] sm:$0xf]
    %v1901 = vld [vmem:[%s4 + $0xf0] sm:$0xff]
    %v1902 = vld [vmem:[%s4 + $0xf8] sm:$0xff]
    %v1903 = vld [vmem:[%s4 + $0x100] sm:$0xf]
    %v1904 = vld [vmem:[%s4 + $0x104] sm:$0xff]
    %v1905 = vld [vmem:[%s4 + $0x10c] sm:$0xff]
    %v1906 = vld [vmem:[%s4 + $0x114] sm:$0xf]
    %v1907 = vld [vmem:[%s4 + $0x118] sm:$0xff]
    %v1908 = vld [vmem:[%s4 + $0x120] sm:$0xff]
    %v1909 = vld [vmem:[%s4 + $0x128] sm:$0xf]
    %v1910 = vld [vmem:[%s4 + $0x12c] sm:$0xff]
    %v1911 = vld [vmem:[%s4 + $0x134] sm:$0xff]
    %v1912 = vld [vmem:[%s4 + $0x13c] sm:$0xf]
    %v1913 = vld [vmem:[%s4 + $0x140] sm:$0xff]
    %v1914 = vld [vmem:[%s4 + $0x148] sm:$0xff]
    %v1915 = vld [vmem:[%s4 + $0x150] sm:$0xf]
    %v1916 = vld [vmem:[%s4 + $0x154] sm:$0xff]
    %v1917 = vld [vmem:[%s4 + $0x15c] sm:$0xff]
    %v1918 = vld [vmem:[%s4 + $0x164] sm:$0xf]
    %v1919 = vld [vmem:[%s4 + $0x168] sm:$0xff]
    %v1920 = vld [vmem:[%s4 + $0x170] sm:$0xff]
    %v1921 = vld [vmem:[%s4 + $0x178] sm:$0xf]
    %v1922 = vld [vmem:[%s4 + $0x17c] sm:$0xff]
    %v1923 = vld [vmem:[%s4 + $0x184] sm:$0xff]
    %v1924 = vld [vmem:[%s4 + $0x18c] sm:$0xf]
    %v1925 = vld [vmem:[%s4 + $0x190] sm:$0xff]
    %v1926 = vld [vmem:[%s4 + $0x198] sm:$0xff]
    %v1927 = vld [vmem:[%s4 + $0x1a0] sm:$0xf]
    %v1928 = vld [vmem:[%s4 + $0x1a4] sm:$0xff]
    %v1929 = vld [vmem:[%s4 + $0x1ac] sm:$0xff]
    %v1930 = vld [vmem:[%s4 + $0x1b4] sm:$0xf]
    %v1931 = vld [vmem:[%s4 + $0x1b8] sm:$0xff]
    %v1932 = vld [vmem:[%s4 + $0x1c0] sm:$0xff]
    %v1933 = vld [vmem:[%s4 + $0x1c8] sm:$0xf]
    %v1934 = vld [vmem:[%s4 + $0x1cc] sm:$0xff]
    %v1935 = vld [vmem:[%s4 + $0x1d4] sm:$0xff]
    %v1936 = vld [vmem:[%s4 + $0x1dc] sm:$0xf]
    %v1937 = vld [vmem:[%s4 + $0x1e0] sm:$0xff]
    %v1938 = vld [vmem:[%s4 + $0x1e8] sm:$0xff]
    %v1939 = vld [vmem:[%s4 + $0x1f0] sm:$0xf]
    %v1940 = vld [vmem:[%s4 + $0x1f4] sm:$0xff]
    %v1941 = vld [vmem:[%s4 + $0x1fc] sm:$0xff]
    %v1942 = vld [vmem:[%s4 + $0x204] sm:$0xf]
    %v1943 = vld [vmem:[%s4 + $0x208] sm:$0xff]
    %v1944 = vld [vmem:[%s4 + $0x210] sm:$0xff]
    %v1945 = vld [vmem:[%s4 + $0x218] sm:$0xf]
    %v1946 = vld [vmem:[%s4 + $0x21c] sm:$0xff]
    %v1947 = vld [vmem:[%s4 + $0x224] sm:$0xff]
    %v1948 = vld [vmem:[%s4 + $0x22c] sm:$0xf]
    %v1949 = vld [vmem:[%s4 + $0x230] sm:$0xff]
    %v1950 = vld [vmem:[%s4 + $0x238] sm:$0xff]
    %v1951 = vld [vmem:[%s4 + $0x240] sm:$0xf]
    %v1952 = vld [vmem:[%s4 + $0x244] sm:$0xff]
    %v1953 = vld [vmem:[%s4 + $0x24c] sm:$0xff]
    %v1954 = vld [vmem:[%s4 + $0x254] sm:$0xf]
    %v1955 = vld [vmem:[%s4 + $0x258] sm:$0xff]
    %v1956 = vld [vmem:[%s4 + $0x260] sm:$0xff]
    %v1957 = vld [vmem:[%s4 + $0x268] sm:$0xf]
    %v1958 = vld [vmem:[%s4 + $0x26c] sm:$0xff]
    %v1959 = vld [vmem:[%s4 + $0x274] sm:$0xff]
    %v1960 = vld [vmem:[%s4 + $0x27c] sm:$0xf]
    %v1961 = vld [vmem:[%s4 + $0x280] sm:$0x11]
    %v1962 = vld [vmem:[%s4 + $0x288] sm:$0x11]
    %v1963 = vld [vmem:[%s4 + $0x290] sm:$0x1]
    %v2063 = vunpack.c.l.b16 %v1865
    %v2064 = vunpack.c.h.b16 %v1865
    %v2065 = vunpack.c.l.b16 %v1866
    %v2066 = vunpack.c.h.b16 %v1866
    %v2067 = vunpack.c.l.b16 %v1867
    %v2068 = vunpack.c.l.b16 %v1868
    %v2069 = vunpack.c.h.b16 %v1868
    %v2070 = vunpack.c.l.b16 %v1869
    %v2071 = vunpack.c.h.b16 %v1869
    %v2072 = vunpack.c.l.b16 %v1870
    %v2073 = vunpack.c.l.b16 %v1871
    %v2074 = vunpack.c.h.b16 %v1871
    %v2075 = vunpack.c.l.b16 %v1872
    %v2076 = vunpack.c.h.b16 %v1872
    %v2077 = vunpack.c.l.b16 %v1873
    %v2078 = vunpack.c.l.b16 %v1874
    %v2079 = vunpack.c.h.b16 %v1874
    %v2080 = vunpack.c.l.b16 %v1875
    %v2081 = vunpack.c.h.b16 %v1875
    %v2082 = vunpack.c.l.b16 %v1876
    %v2083 = vunpack.c.l.b16 %v1877
    %v2084 = vunpack.c.h.b16 %v1877
    %v2085 = vunpack.c.l.b16 %v1878
    %v2086 = vunpack.c.h.b16 %v1878
    %v2087 = vunpack.c.l.b16 %v1879
    %v2088 = vunpack.c.l.b16 %v1880
    %v2089 = vunpack.c.h.b16 %v1880
    %v2090 = vunpack.c.l.b16 %v1881
    %v2091 = vunpack.c.h.b16 %v1881
    %v2092 = vunpack.c.l.b16 %v1882
    %v2093 = vunpack.c.l.b16 %v1883
    %v2094 = vunpack.c.h.b16 %v1883
    %v2095 = vunpack.c.l.b16 %v1884
    %v2096 = vunpack.c.h.b16 %v1884
    %v2097 = vunpack.c.l.b16 %v1885
    %v2098 = vunpack.c.l.b16 %v1886
    %v2099 = vunpack.c.h.b16 %v1886
    %v2100 = vunpack.c.l.b16 %v1887
    %v2101 = vunpack.c.h.b16 %v1887
    %v2102 = vunpack.c.l.b16 %v1888
    %v2103 = vunpack.c.l.b16 %v1889
    %v2104 = vunpack.c.h.b16 %v1889
    %v2105 = vunpack.c.l.b16 %v1890
    %v2106 = vunpack.c.h.b16 %v1890
    %v2107 = vunpack.c.l.b16 %v1891
    %v2108 = vunpack.c.l.b16 %v1892
    %v2109 = vunpack.c.h.b16 %v1892
    %v2110 = vunpack.c.l.b16 %v1893
    %v2111 = vunpack.c.h.b16 %v1893
    %v2112 = vunpack.c.l.b16 %v1894
    %v2113 = vunpack.c.l.b16 %v1895
    %v2114 = vunpack.c.h.b16 %v1895
    %v2115 = vunpack.c.l.b16 %v1896
    %v2116 = vunpack.c.h.b16 %v1896
    %v2117 = vunpack.c.l.b16 %v1897
    %v2118 = vunpack.c.l.b16 %v1898
    %v2119 = vunpack.c.h.b16 %v1898
    %v2120 = vunpack.c.l.b16 %v1899
    %v2121 = vunpack.c.h.b16 %v1899
    %v2122 = vunpack.c.l.b16 %v1900
    %v2123 = vunpack.c.l.b16 %v1901
    %v2124 = vunpack.c.h.b16 %v1901
    %v2125 = vunpack.c.l.b16 %v1902
    %v2126 = vunpack.c.h.b16 %v1902
    %v2127 = vunpack.c.l.b16 %v1903
    %v2128 = vunpack.c.l.b16 %v1904
    %v2129 = vunpack.c.h.b16 %v1904
    %v2130 = vunpack.c.l.b16 %v1905
    %v2131 = vunpack.c.h.b16 %v1905
    %v2132 = vunpack.c.l.b16 %v1906
    %v2133 = vunpack.c.l.b16 %v1907
    %v2134 = vunpack.c.h.b16 %v1907
    %v2135 = vunpack.c.l.b16 %v1908
    %v2136 = vunpack.c.h.b16 %v1908
    %v2137 = vunpack.c.l.b16 %v1909
    %v2138 = vunpack.c.l.b16 %v1910
    %v2139 = vunpack.c.h.b16 %v1910
    %v2140 = vunpack.c.l.b16 %v1911
    %v2141 = vunpack.c.h.b16 %v1911
    %v2142 = vunpack.c.l.b16 %v1912
    %v2143 = vunpack.c.l.b16 %v1913
    %v2144 = vunpack.c.h.b16 %v1913
    %v2145 = vunpack.c.l.b16 %v1914
    %v2146 = vunpack.c.h.b16 %v1914
    %v2147 = vunpack.c.l.b16 %v1915
    %v2148 = vunpack.c.l.b16 %v1916
    %v2149 = vunpack.c.h.b16 %v1916
    %v2150 = vunpack.c.l.b16 %v1917
    %v2151 = vunpack.c.h.b16 %v1917
    %v2152 = vunpack.c.l.b16 %v1918
    %v2153 = vunpack.c.l.b16 %v1919
    %v2154 = vunpack.c.h.b16 %v1919
    %v2155 = vunpack.c.l.b16 %v1920
    %v2156 = vunpack.c.h.b16 %v1920
    %v2157 = vunpack.c.l.b16 %v1921
    %v2158 = vunpack.c.l.b16 %v1922
    %v2159 = vunpack.c.h.b16 %v1922
    %v2160 = vunpack.c.l.b16 %v1923
    %v2161 = vunpack.c.h.b16 %v1923
    %v2162 = vunpack.c.l.b16 %v1924
    %v2163 = vunpack.c.l.b16 %v1925
    %v2164 = vunpack.c.h.b16 %v1925
    %v2165 = vunpack.c.l.b16 %v1926
    %v2166 = vunpack.c.h.b16 %v1926
    %v2167 = vunpack.c.l.b16 %v1927
    %v2168 = vunpack.c.l.b16 %v1928
    %v2169 = vunpack.c.h.b16 %v1928
    %v2170 = vunpack.c.l.b16 %v1929
    %v2171 = vunpack.c.h.b16 %v1929
    %v2172 = vunpack.c.l.b16 %v1930
    %v2173 = vunpack.c.l.b16 %v1931
    %v2174 = vunpack.c.h.b16 %v1931
    %v2175 = vunpack.c.l.b16 %v1932
    %v2176 = vunpack.c.h.b16 %v1932
    %v2177 = vunpack.c.l.b16 %v1933
    %v2178 = vunpack.c.l.b16 %v1934
    %v2179 = vunpack.c.h.b16 %v1934
    %v2180 = vunpack.c.l.b16 %v1935
    %v2181 = vunpack.c.h.b16 %v1935
    %v2182 = vunpack.c.l.b16 %v1936
    %v2183 = vunpack.c.l.b16 %v1937
    %v2184 = vunpack.c.h.b16 %v1937
    %v2185 = vunpack.c.l.b16 %v1938
    %v2186 = vunpack.c.h.b16 %v1938
    %v2187 = vunpack.c.l.b16 %v1939
    %v2188 = vunpack.c.l.b16 %v1940
    %v2189 = vunpack.c.h.b16 %v1940
    %v2190 = vunpack.c.l.b16 %v1941
    %v2191 = vunpack.c.h.b16 %v1941
    %v2192 = vunpack.c.l.b16 %v1942
    %v2193 = vunpack.c.l.b16 %v1943
    %v2194 = vunpack.c.h.b16 %v1943
    %v2195 = vunpack.c.l.b16 %v1944
    %v2196 = vunpack.c.h.b16 %v1944
    %v2197 = vunpack.c.l.b16 %v1945
    %v2198 = vunpack.c.l.b16 %v1946
    %v2199 = vunpack.c.h.b16 %v1946
    %v2200 = vunpack.c.l.b16 %v1947
    %v2201 = vunpack.c.h.b16 %v1947
    %v2202 = vunpack.c.l.b16 %v1948
    %v2203 = vunpack.c.l.b16 %v1949
    %v2204 = vunpack.c.h.b16 %v1949
    %v2205 = vunpack.c.l.b16 %v1950
    %v2206 = vunpack.c.h.b16 %v1950
    %v2207 = vunpack.c.l.b16 %v1951
    %v2208 = vunpack.c.l.b16 %v1952
    %v2209 = vunpack.c.h.b16 %v1952
    %v2210 = vunpack.c.l.b16 %v1953
    %v2211 = vunpack.c.h.b16 %v1953
    %v2212 = vunpack.c.l.b16 %v1954
    %v2213 = vunpack.c.l.b16 %v1955
    %v2214 = vunpack.c.h.b16 %v1955
    %v2215 = vunpack.c.l.b16 %v1956
    %v2216 = vunpack.c.h.b16 %v1956
    %v2217 = vunpack.c.l.b16 %v1957
    %v2218 = vunpack.c.l.b16 %v1958
    %v2219 = vunpack.c.h.b16 %v1958
    %v2220 = vunpack.c.l.b16 %v1959
    %v2221 = vunpack.c.h.b16 %v1959
    %v2222 = vunpack.c.l.b16 %v1960
    %v2223 = vunpack.c.l.b16 %v1961
    %v2224 = vunpack.c.h.b16 %v1961
    %v2225 = vunpack.c.l.b16 %v1962
    %v2226 = vunpack.c.h.b16 %v1962
    %v2227 = vunpack.c.l.b16 %v1963
    %v2228 = vpack.c.b16 %v2068, %v2063
    %v2229 = vpack.c.b16 %v2069, %v2064
    %v2230 = vpack.c.b16 %v2070, %v2065
    %v2231 = vpack.c.b16 %v2071, %v2066
    %v2232 = vpack.c.b16 %v2072, %v2067
    %v2233 = vpack.c.b16 %v2078, %v2073
    %v2234 = vpack.c.b16 %v2079, %v2074
    %v2235 = vpack.c.b16 %v2080, %v2075
    %v2236 = vpack.c.b16 %v2081, %v2076
    %v2237 = vpack.c.b16 %v2082, %v2077
    %v2238 = vpack.c.b16 %v2088, %v2083
    %v2239 = vpack.c.b16 %v2089, %v2084
    %v2240 = vpack.c.b16 %v2090, %v2085
    %v2241 = vpack.c.b16 %v2091, %v2086
    %v2242 = vpack.c.b16 %v2092, %v2087
    %v2243 = vpack.c.b16 %v2098, %v2093
    %v2244 = vpack.c.b16 %v2099, %v2094
    %v2245 = vpack.c.b16 %v2100, %v2095
    %v2246 = vpack.c.b16 %v2101, %v2096
    %v2247 = vpack.c.b16 %v2102, %v2097
    %v2248 = vpack.c.b16 %v2108, %v2103
    %v2249 = vpack.c.b16 %v2109, %v2104
    %v2250 = vpack.c.b16 %v2110, %v2105
    %v2251 = vpack.c.b16 %v2111, %v2106
    %v2252 = vpack.c.b16 %v2112, %v2107
    %v2253 = vpack.c.b16 %v2118, %v2113
    %v2254 = vpack.c.b16 %v2119, %v2114
    %v2255 = vpack.c.b16 %v2120, %v2115
    %v2256 = vpack.c.b16 %v2121, %v2116
    %v2257 = vpack.c.b16 %v2122, %v2117
    %v2258 = vpack.c.b16 %v2128, %v2123
    %v2259 = vpack.c.b16 %v2129, %v2124
    %v2260 = vpack.c.b16 %v2130, %v2125
    %v2261 = vpack.c.b16 %v2131, %v2126
    %v2262 = vpack.c.b16 %v2132, %v2127
    %v2263 = vpack.c.b16 %v2138, %v2133
    %v2264 = vpack.c.b16 %v2139, %v2134
    %v2265 = vpack.c.b16 %v2140, %v2135
    %v2266 = vpack.c.b16 %v2141, %v2136
    %v2267 = vpack.c.b16 %v2142, %v2137
    %v2268 = vpack.c.b16 %v2148, %v2143
    %v2269 = vpack.c.b16 %v2149, %v2144
    %v2270 = vpack.c.b16 %v2150, %v2145
    %v2271 = vpack.c.b16 %v2151, %v2146
    %v2272 = vpack.c.b16 %v2152, %v2147
    %v2273 = vpack.c.b16 %v2158, %v2153
    %v2274 = vpack.c.b16 %v2159, %v2154
    %v2275 = vpack.c.b16 %v2160, %v2155
    %v2276 = vpack.c.b16 %v2161, %v2156
    %v2277 = vpack.c.b16 %v2162, %v2157
    %v2278 = vpack.c.b16 %v2168, %v2163
    %v2279 = vpack.c.b16 %v2169, %v2164
    %v2280 = vpack.c.b16 %v2170, %v2165
    %v2281 = vpack.c.b16 %v2171, %v2166
    %v2282 = vpack.c.b16 %v2172, %v2167
    %v2283 = vpack.c.b16 %v2178, %v2173
    %v2284 = vpack.c.b16 %v2179, %v2174
    %v2285 = vpack.c.b16 %v2180, %v2175
    %v2286 = vpack.c.b16 %v2181, %v2176
    %v2287 = vpack.c.b16 %v2182, %v2177
    %v2288 = vpack.c.b16 %v2188, %v2183
    %v2289 = vpack.c.b16 %v2189, %v2184
    %v2290 = vpack.c.b16 %v2190, %v2185
    %v2291 = vpack.c.b16 %v2191, %v2186
    %v2292 = vpack.c.b16 %v2192, %v2187
    %v2293 = vpack.c.b16 %v2198, %v2193
    %v2294 = vpack.c.b16 %v2199, %v2194
    %v2295 = vpack.c.b16 %v2200, %v2195
    %v2296 = vpack.c.b16 %v2201, %v2196
    %v2297 = vpack.c.b16 %v2202, %v2197
    %v2298 = vpack.c.b16 %v2208, %v2203
    %v2299 = vpack.c.b16 %v2209, %v2204
    %v2300 = vpack.c.b16 %v2210, %v2205
    %v2301 = vpack.c.b16 %v2211, %v2206
    %v2302 = vpack.c.b16 %v2212, %v2207
    %v2303 = vpack.c.b16 %v2218, %v2213
    %v2304 = vpack.c.b16 %v2219, %v2214
    %v2305 = vpack.c.b16 %v2220, %v2215
    %v2306 = vpack.c.b16 %v2221, %v2216
    %v2307 = vpack.c.b16 %v2222, %v2217
    %v2308 = vpack.c.b16 %v2223, %v2223
    %v2309 = vpack.c.b16 %v2224, %v2224
    %v2310 = vpack.c.b16 %v2225, %v2225
    %v2311 = vpack.c.b16 %v2226, %v2226
    %v2312 = vpack.c.b16 %v2227, %v2227
    %v2394 = vsel %vm678, %v1864, 0
    %v2397 = vand.u32 %v2308, %v684
    %v2400 = vand.u32 %v2309, %v684
    %v2403 = vand.u32 %v2310, %v684
    %v2406 = vand.u32 %v2311, %v684
    %v2409 = vand.u32 %v2312, %v684
    %2411 = vmatprep.subr.bf16.mxu0 %v2229
    %2412 = vmatpush1.bf16.msra.mxu0 %v2228
    %2413 = vmatprep.subr.bf16.mxu0 %v2234
    %2414 = vmatpush1.bf16.msra.mxu0 %v2233
    %2415 = vmatprep.subr.bf16.mxu0 %v2239
    %2416 = vmatpush1.bf16.msra.mxu0 %v2238
    %2417 = vmatprep.subr.bf16.mxu0 %v2244
    %2418 = vmatpush1.bf16.msra.mxu0 %v2243
    %2419 = vmatprep.subr.bf16.mxu0 %v2249
    %2420 = vmatpush1.bf16.msra.mxu0 %v2248
    %2421 = vmatprep.subr.bf16.mxu0 %v2254
    %2422 = vmatpush1.bf16.msra.mxu0 %v2253
    %2423 = vmatprep.subr.bf16.mxu0 %v2259
    %2424 = vmatpush1.bf16.msra.mxu0 %v2258
    %2425 = vmatprep.subr.bf16.mxu0 %v2264
    %2426 = vmatpush1.bf16.msra.mxu0 %v2263
    %2427 = vmatprep.subr.bf16.mxu0 %v2269
    %2428 = vmatpush1.bf16.msra.mxu0 %v2268
    %2429 = vmatprep.subr.bf16.mxu0 %v2274
    %2430 = vmatpush1.bf16.msra.mxu0 %v2273
    %2431 = vmatprep.subr.bf16.mxu0 %v2279
    %2432 = vmatpush1.bf16.msra.mxu0 %v2278
    %2433 = vmatprep.subr.bf16.mxu0 %v2284
    %2434 = vmatpush1.bf16.msra.mxu0 %v2283
    %2435 = vmatprep.subr.bf16.mxu0 %v2289
    %2436 = vmatpush1.bf16.msra.mxu0 %v2288
    %2437 = vmatprep.subr.bf16.mxu0 %v2294
    %2438 = vmatpush1.bf16.msra.mxu0 %v2293
    %2439 = vmatprep.subr.bf16.mxu0 %v2299
    %2440 = vmatpush1.bf16.msra.mxu0 %v2298
    %2441 = vmatprep.subr.bf16.mxu0 %v2304
    %2442 = vmatpush1.bf16.msra.mxu0 %v2303
    %2443 = vmatprep.mubr.bf16.mxu0 %v1863
    %2444 = vmatmul.mubr.bf16.gmra.mrb[0].mxu0 %v1862
    %v2445 = vpop.f32.mrb[0].mxu0
    %v2446 = vadd.f32 0.0, %v2445
    %v2447 = vpop.f32.mrb[0].mxu0
    %v2448 = vadd.f32 0.0, %v2447
    %v2449 = vpop.f32.mrb[0].mxu0
    %v2450 = vpop.f32.mrb[0].mxu0
    %2451 = vdwg.mxu0
    %2452 = vmatprep.subr.bf16.mxu0 %v2400
    %2453 = vmatpush1.bf16.msra.mxu0 %v2397
    %2454 = vmatprep.subr.bf16.mxu0 0
    %2455 = vmatpush1.bf16.msra.mxu0 0
    %2456 = vmatprep.subr.bf16.mxu0 0
    %2457 = vmatpush1.bf16.msra.mxu0 0
    %2458 = vmatprep.subr.bf16.mxu0 0
    %2459 = vmatpush1.bf16.msra.mxu0 0
    %2460 = vmatprep.subr.bf16.mxu0 0
    %2461 = vmatpush1.bf16.msra.mxu0 0
    %2462 = vmatprep.subr.bf16.mxu0 0
    %2463 = vmatpush1.bf16.msra.mxu0 0
    %2464 = vmatprep.subr.bf16.mxu0 0
    %2465 = vmatpush1.bf16.msra.mxu0 0
    %2466 = vmatprep.subr.bf16.mxu0 0
    %2467 = vmatpush1.bf16.msra.mxu0 0
    %2468 = vmatprep.subr.bf16.mxu0 0
    %2469 = vmatpush1.bf16.msra.mxu0 0
    %2470 = vmatprep.subr.bf16.mxu0 0
    %2471 = vmatpush1.bf16.msra.mxu0 0
    %2472 = vmatprep.subr.bf16.mxu0 0
    %2473 = vmatpush1.bf16.msra.mxu0 0
    %2474 = vmatprep.subr.bf16.mxu0 0
    %2475 = vmatpush1.bf16.msra.mxu0 0
    %2476 = vmatprep.subr.bf16.mxu0 0
    %2477 = vmatpush1.bf16.msra.mxu0 0
    %2478 = vmatprep.subr.bf16.mxu0 0
    %2479 = vmatpush1.bf16.msra.mxu0 0
    %2480 = vmatprep.subr.bf16.mxu0 0
    %2481 = vmatpush1.bf16.msra.mxu0 0
    %2482 = vmatprep.subr.bf16.mxu0 0
    %2483 = vmatpush1.bf16.msra.mxu0 0
    %2484 = vmatprep.mubr.bf16.mxu0 0
    %2485 = vmatmul.mubr.bf16.gmra.mrb[0].mxu0 %v2394
    %v2486 = vpop.f32.mrb[0].mxu0
    %v2487 = vadd.f32 %v2446, %v2486
    %v2488 = vpop.f32.mrb[0].mxu0
    %v2489 = vadd.f32 %v2448, %v2488
    %v2490 = vpop.f32.mrb[0].mxu0
    %v2491 = vpop.f32.mrb[0].mxu0
    %2492 = vdwg.mxu0
    %2493 = vmatprep.subr.bf16.mxu0 %v2231
    %2494 = vmatpush1.bf16.msra.mxu0 %v2230
    %2495 = vmatprep.subr.bf16.mxu0 %v2236
    %2496 = vmatpush1.bf16.msra.mxu0 %v2235
    %2497 = vmatprep.subr.bf16.mxu0 %v2241
    %2498 = vmatpush1.bf16.msra.mxu0 %v2240
    %2499 = vmatprep.subr.bf16.mxu0 %v2246
    %2500 = vmatpush1.bf16.msra.mxu0 %v2245
    %2501 = vmatprep.subr.bf16.mxu0 %v2251
    %2502 = vmatpush1.bf16.msra.mxu0 %v2250
    %2503 = vmatprep.subr.bf16.mxu0 %v2256
    %2504 = vmatpush1.bf16.msra.mxu0 %v2255
    %2505 = vmatprep.subr.bf16.mxu0 %v2261
    %2506 = vmatpush1.bf16.msra.mxu0 %v2260
    %2507 = vmatprep.subr.bf16.mxu0 %v2266
    %2508 = vmatpush1.bf16.msra.mxu0 %v2265
    %2509 = vmatprep.subr.bf16.mxu0 %v2271
    %2510 = vmatpush1.bf16.msra.mxu0 %v2270
    %2511 = vmatprep.subr.bf16.mxu0 %v2276
    %2512 = vmatpush1.bf16.msra.mxu0 %v2275
    %2513 = vmatprep.subr.bf16.mxu0 %v2281
    %2514 = vmatpush1.bf16.msra.mxu0 %v2280
    %2515 = vmatprep.subr.bf16.mxu0 %v2286
    %2516 = vmatpush1.bf16.msra.mxu0 %v2285
    %2517 = vmatprep.subr.bf16.mxu0 %v2291
    %2518 = vmatpush1.bf16.msra.mxu0 %v2290
    %2519 = vmatprep.subr.bf16.mxu0 %v2296
    %2520 = vmatpush1.bf16.msra.mxu0 %v2295
    %2521 = vmatprep.subr.bf16.mxu0 %v2301
    %2522 = vmatpush1.bf16.msra.mxu0 %v2300
    %2523 = vmatprep.subr.bf16.mxu0 %v2306
    %2524 = vmatpush1.bf16.msra.mxu0 %v2305
    %2525 = vmatprep.mubr.bf16.mxu0 %v1863
    %2526 = vmatmul.mubr.bf16.gmra.mrb[0].mxu0 %v1862
    %v2527 = vpop.f32.mrb[0].mxu0
    %v2528 = vadd.f32 0.0, %v2527
    %v2529 = vpop.f32.mrb[0].mxu0
    %v2530 = vadd.f32 0.0, %v2529
    %v2531 = vpop.f32.mrb[0].mxu0
    %v2532 = vpop.f32.mrb[0].mxu0
    %2533 = vdwg.mxu0
    %2534 = vmatprep.subr.bf16.mxu0 %v2406
    %2535 = vmatpush1.bf16.msra.mxu0 %v2403
    %2536 = vmatprep.subr.bf16.mxu0 0
    %2537 = vmatpush1.bf16.msra.mxu0 0
    %2538 = vmatprep.subr.bf16.mxu0 0
    %2539 = vmatpush1.bf16.msra.mxu0 0
    %2540 = vmatprep.subr.bf16.mxu0 0
    %2541 = vmatpush1.bf16.msra.mxu0 0
    %2542 = vmatprep.subr.bf16.mxu0 0
    %2543 = vmatpush1.bf16.msra.mxu0 0
    %2544 = vmatprep.subr.bf16.mxu0 0
    %2545 = vmatpush1.bf16.msra.mxu0 0
    %2546 = vmatprep.subr.bf16.mxu0 0
    %2547 = vmatpush1.bf16.msra.mxu0 0
    %2548 = vmatprep.subr.bf16.mxu0 0
    %2549 = vmatpush1.bf16.msra.mxu0 0
    %2550 = vmatprep.subr.bf16.mxu0 0
    %2551 = vmatpush1.bf16.msra.mxu0 0
    %2552 = vmatprep.subr.bf16.mxu0 0
    %2553 = vmatpush1.bf16.msra.mxu0 0
    %2554 = vmatprep.subr.bf16.mxu0 0
    %2555 = vmatpush1.bf16.msra.mxu0 0
    %2556 = vmatprep.subr.bf16.mxu0 0
    %2557 = vmatpush1.bf16.msra.mxu0 0
    %2558 = vmatprep.subr.bf16.mxu0 0
    %2559 = vmatpush1.bf16.msra.mxu0 0
    %2560 = vmatprep.subr.bf16.mxu0 0
    %2561 = vmatpush1.bf16.msra.mxu0 0
    %2562 = vmatprep.subr.bf16.mxu0 0
    %2563 = vmatpush1.bf16.msra.mxu0 0
    %2564 = vmatprep.subr.bf16.mxu0 0
    %2565 = vmatpush1.bf16.msra.mxu0 0
    %2566 = vmatprep.mubr.bf16.mxu0 0
    %2567 = vmatmul.mubr.bf16.gmra.mrb[0].mxu0 %v2394
    %v2568 = vpop.f32.mrb[0].mxu0
    %v2569 = vadd.f32 %v2528, %v2568
    %v2570 = vpop.f32.mrb[0].mxu0
    %v2571 = vadd.f32 %v2530, %v2570
    %v2572 = vpop.f32.mrb[0].mxu0
    %v2573 = vpop.f32.mrb[0].mxu0
    %2574 = vdwg.mxu0
    %2575 = vmatprep.subr.bf16.mxu0 0
    %2576 = vmatpush1.bf16.msra.mxu0 %v2232
    %2577 = vmatprep.subr.bf16.mxu0 0
    %2578 = vmatpush1.bf16.msra.mxu0 %v2237
    %2579 = vmatprep.subr.bf16.mxu0 0
    %2580 = vmatpush1.bf16.msra.mxu0 %v2242
    %2581 = vmatprep.subr.bf16.mxu0 0
    %2582 = vmatpush1.bf16.msra.mxu0 %v2247
    %2583 = vmatprep.subr.bf16.mxu0 0
    %2584 = vmatpush1.bf16.msra.mxu0 %v2252
    %2585 = vmatprep.subr.bf16.mxu0 0
    %2586 = vmatpush1.bf16.msra.mxu0 %v2257
    %2587 = vmatprep.subr.bf16.mxu0 0
    %2588 = vmatpush1.bf16.msra.mxu0 %v2262
    %2589 = vmatprep.subr.bf16.mxu0 0
    %2590 = vmatpush1.bf16.msra.mxu0 %v2267
    %2591 = vmatprep.subr.bf16.mxu0 0
    %2592 = vmatpush1.bf16.msra.mxu0 %v2272
    %2593 = vmatprep.subr.bf16.mxu0 0
    %2594 = vmatpush1.bf16.msra.mxu0 %v2277
    %2595 = vmatprep.subr.bf16.mxu0 0
    %2596 = vmatpush1.bf16.msra.mxu0 %v2282
    %2597 = vmatprep.subr.bf16.mxu0 0
    %2598 = vmatpush1.bf16.msra.mxu0 %v2287
    %2599 = vmatprep.subr.bf16.mxu0 0
    %2600 = vmatpush1.bf16.msra.mxu0 %v2292
    %2601 = vmatprep.subr.bf16.mxu0 0
    %2602 = vmatpush1.bf16.msra.mxu0 %v2297
    %2603 = vmatprep.subr.bf16.mxu0 0
    %2604 = vmatpush1.bf16.msra.mxu0 %v2302
    %2605 = vmatprep.subr.bf16.mxu0 0
    %2606 = vmatpush1.bf16.msra.mxu0 %v2307
    %2607 = vmatprep.mubr.bf16.mxu0 %v1863
    %2608 = vmatmul.mubr.bf16.gmra.mrb[0].mxu0 %v1862
    %v2609 = vpop.f32.mrb[0].mxu0
    %v2610 = vadd.f32 0.0, %v2609
    %v2611 = vpop.f32.mrb[0].mxu0
    %v2612 = vpop.f32.mrb[0].mxu0
    %v2613 = vpop.f32.mrb[0].mxu0
    %2614 = vdwg.mxu0
    %2615 = vmatprep.subr.bf16.mxu0 0
    %2616 = vmatpush1.bf16.msra.mxu0 %v2409
    %2617 = vmatprep.subr.bf16.mxu0 0
    %2618 = vmatpush1.bf16.msra.mxu0 0
    %2619 = vmatprep.subr.bf16.mxu0 0
    %2620 = vmatpush1.bf16.msra.mxu0 0
    %2621 = vmatprep.subr.bf16.mxu0 0
    %2622 = vmatpush1.bf16.msra.mxu0 0
    %2623 = vmatprep.subr.bf16.mxu0 0
    %2624 = vmatpush1.bf16.msra.mxu0 0
    %2625 = vmatprep.subr.bf16.mxu0 0
    %2626 = vmatpush1.bf16.msra.mxu0 0
    %2627 = vmatprep.subr.bf16.mxu0 0
    %2628 = vmatpush1.bf16.msra.mxu0 0
    %2629 = vmatprep.subr.bf16.mxu0 0
    %2630 = vmatpush1.bf16.msra.mxu0 0
    %2631 = vmatprep.subr.bf16.mxu0 0
    %2632 = vmatpush1.bf16.msra.mxu0 0
    %2633 = vmatprep.subr.bf16.mxu0 0
    %2634 = vmatpush1.bf16.msra.mxu0 0
    %2635 = vmatprep.subr.bf16.mxu0 0
    %2636 = vmatpush1.bf16.msra.mxu0 0
    %2637 = vmatprep.subr.bf16.mxu0 0
    %2638 = vmatpush1.bf16.msra.mxu0 0
    %2639 = vmatprep.subr.bf16.mxu0 0
    %2640 = vmatpush1.bf16.msra.mxu0 0
    %2641 = vmatprep.subr.bf16.mxu0 0
    %2642 = vmatpush1.bf16.msra.mxu0 0
    %2643 = vmatprep.subr.bf16.mxu0 0
    %2644 = vmatpush1.bf16.msra.mxu0 0
    %2645 = vmatprep.subr.bf16.mxu0 0
    %2646 = vmatpush1.bf16.msra.mxu0 0
    %2647 = vmatprep.mubr.bf16.mxu0 0
    %2648 = vmatmul.mubr.bf16.gmra.mrb[0].mxu0 %v2394
    %v2649 = vpop.f32.mrb[0].mxu0
    %v2650 = vadd.f32 %v2610, %v2649
    %v2651 = vpop.f32.mrb[0].mxu0
    %v2652 = vpop.f32.mrb[0].mxu0
    %v2653 = vpop.f32.mrb[0].mxu0
    %2654 = vdwg.mxu0
    %v2655 = vmax.f32 %v2487, 0.0
    %v2656 = vmax.f32 %v2489, 0.0
    %v2657 = vmax.f32 %v2569, 0.0
    %v2658 = vmax.f32 %v2571, 0.0
    %v2659 = vmax.f32 %v2650, 0.0
    %v2660 = vpack.c.bf16 %v2655, %v2655
    %v2661 = vpack.c.bf16 %v2656, %v2656
    %v2662 = vpack.c.bf16 %v2657, %v2657
    %v2663 = vpack.c.bf16 %v2658, %v2658
    %v2664 = vpack.c.bf16 %v2659, %v2659
    %v2665 = vld [vmem:[%s5] sm:$0xff]
    %v2666 = vld [vmem:[%s5 + $0x8] sm:$0xf]
    %v2667 = vld [vmem:[%s5 + $0xc] sm:$0xff]
    %v2668 = vld [vmem:[%s5 + $0x14] sm:$0xf]
    %v2669 = vld [vmem:[%s5 + $0x18] sm:$0xff]
    %v2670 = vld [vmem:[%s5 + $0x20] sm:$0xf]
    %v2671 = vld [vmem:[%s5 + $0x24] sm:$0xff]
    %v2672 = vld [vmem:[%s5 + $0x2c] sm:$0xf]
    %v2673 = vld [vmem:[%s5 + $0x30] sm:$0xff]
    %v2674 = vld [vmem:[%s5 + $0x38] sm:$0xf]
    %v2675 = vld [vmem:[%s5 + $0x3c] sm:$0xff]
    %v2676 = vld [vmem:[%s5 + $0x44] sm:$0xf]
    %v2677 = vld [vmem:[%s5 + $0x48] sm:$0xff]
    %v2678 = vld [vmem:[%s5 + $0x50] sm:$0xf]
    %v2679 = vld [vmem:[%s5 + $0x54] sm:$0xff]
    %v2680 = vld [vmem:[%s5 + $0x5c] sm:$0xf]
    %v2681 = vld [vmem:[%s5 + $0x60] sm:$0xff]
    %v2682 = vld [vmem:[%s5 + $0x68] sm:$0xf]
    %v2683 = vld [vmem:[%s5 + $0x6c] sm:$0xff]
    %v2684 = vld [vmem:[%s5 + $0x74] sm:$0xf]
    %v2685 = vld [vmem:[%s5 + $0x78] sm:$0xff]
    %v2686 = vld [vmem:[%s5 + $0x80] sm:$0xf]
    %v2687 = vld [vmem:[%s5 + $0x84] sm:$0xff]
    %v2688 = vld [vmem:[%s5 + $0x8c] sm:$0xf]
    %v2689 = vld [vmem:[%s5 + $0x90] sm:$0xff]
    %v2690 = vld [vmem:[%s5 + $0x98] sm:$0xf]
    %v2691 = vld [vmem:[%s5 + $0x9c] sm:$0xff]
    %v2692 = vld [vmem:[%s5 + $0xa4] sm:$0xf]
    %v2693 = vld [vmem:[%s5 + $0xa8] sm:$0xff]
    %v2694 = vld [vmem:[%s5 + $0xb0] sm:$0xf]
    %v2695 = vld [vmem:[%s5 + $0xb4] sm:$0xff]
    %v2696 = vld [vmem:[%s5 + $0xbc] sm:$0xf]
    %v2697 = vld [vmem:[%s5 + $0xc0] sm:$0xff]
    %v2698 = vld [vmem:[%s5 + $0xc8] sm:$0xf]
    %v2699 = vld [vmem:[%s5 + $0xcc] sm:$0xff]
    %v2700 = vld [vmem:[%s5 + $0xd4] sm:$0xf]
    %v2701 = vld [vmem:[%s5 + $0xd8] sm:$0xff]
    %v2702 = vld [vmem:[%s5 + $0xe0] sm:$0xf]
    %v2703 = vld [vmem:[%s5 + $0xe4] sm:$0xff]
    %v2704 = vld [vmem:[%s5 + $0xec] sm:$0xf]
    %v2705 = vld [vmem:[%s5 + $0xf0] sm:$0xff]
    %v2706 = vld [vmem:[%s5 + $0xf8] sm:$0xf]
    %v2707 = vld [vmem:[%s5 + $0xfc] sm:$0xff]
    %v2708 = vld [vmem:[%s5 + $0x104] sm:$0xf]
    %v2709 = vld [vmem:[%s5 + $0x108] sm:$0xff]
    %v2710 = vld [vmem:[%s5 + $0x110] sm:$0xf]
    %v2711 = vld [vmem:[%s5 + $0x114] sm:$0xff]
    %v2712 = vld [vmem:[%s5 + $0x11c] sm:$0xf]
    %v2713 = vld [vmem:[%s5 + $0x120] sm:$0xff]
    %v2714 = vld [vmem:[%s5 + $0x128] sm:$0xf]
    %v2715 = vld [vmem:[%s5 + $0x12c] sm:$0xff]
    %v2716 = vld [vmem:[%s5 + $0x134] sm:$0xf]
    %v2717 = vld [vmem:[%s5 + $0x138] sm:$0xff]
    %v2718 = vld [vmem:[%s5 + $0x140] sm:$0xf]
    %v2719 = vld [vmem:[%s5 + $0x144] sm:$0xff]
    %v2720 = vld [vmem:[%s5 + $0x14c] sm:$0xf]
    %v2721 = vld [vmem:[%s5 + $0x150] sm:$0xff]
    %v2722 = vld [vmem:[%s5 + $0x158] sm:$0xf]
    %v2723 = vld [vmem:[%s5 + $0x15c] sm:$0xff]
    %v2724 = vld [vmem:[%s5 + $0x164] sm:$0xf]
    %v2725 = vld [vmem:[%s5 + $0x168] sm:$0xff]
    %v2726 = vld [vmem:[%s5 + $0x170] sm:$0xf]
    %v2727 = vld [vmem:[%s5 + $0x174] sm:$0xff]
    %v2728 = vld [vmem:[%s5 + $0x17c] sm:$0xf]
    %v2729 = vld [vmem:[%s5 + $0x180] sm:$0xff]
    %v2730 = vld [vmem:[%s5 + $0x188] sm:$0xf]
    %v2731 = vld [vmem:[%s5 + $0x18c] sm:$0xff]
    %v2732 = vld [vmem:[%s5 + $0x194] sm:$0xf]
    %v2733 = vld [vmem:[%s5 + $0x198] sm:$0xff]
    %v2734 = vld [vmem:[%s5 + $0x1a0] sm:$0xf]
    %v2735 = vld [vmem:[%s5 + $0x1a4] sm:$0xff]
    %v2736 = vld [vmem:[%s5 + $0x1ac] sm:$0xf]
    %v2737 = vld [vmem:[%s5 + $0x1b0] sm:$0xff]
    %v2738 = vld [vmem:[%s5 + $0x1b8] sm:$0xf]
    %v2739 = vld [vmem:[%s5 + $0x1bc] sm:$0xff]
    %v2740 = vld [vmem:[%s5 + $0x1c4] sm:$0xf]
    %v2741 = vld [vmem:[%s5 + $0x1c8] sm:$0xff]
    %v2742 = vld [vmem:[%s5 + $0x1d0] sm:$0xf]
    %v2743 = vld [vmem:[%s5 + $0x1d4] sm:$0xff]
    %v2744 = vld [vmem:[%s5 + $0x1dc] sm:$0xf]
    %v2745 = vld [vmem:[%s5 + $0x1e0] sm:$0xff]
    %v2746 = vld [vmem:[%s5 + $0x1e8] sm:$0xf]
    %v2747 = vld [vmem:[%s5 + $0x1ec] sm:$0xff]
    %v2748 = vld [vmem:[%s5 + $0x1f4] sm:$0xf]
    %v2749 = vld [vmem:[%s5 + $0x1f8] sm:$0xff]
    %v2750 = vld [vmem:[%s5 + $0x200] sm:$0xf]
    %v2751 = vld [vmem:[%s5 + $0x204] sm:$0xff]
    %v2752 = vld [vmem:[%s5 + $0x20c] sm:$0xf]
    %v2753 = vld [vmem:[%s5 + $0x210] sm:$0xff]
    %v2754 = vld [vmem:[%s5 + $0x218] sm:$0xf]
    %v2755 = vld [vmem:[%s5 + $0x21c] sm:$0xff]
    %v2756 = vld [vmem:[%s5 + $0x224] sm:$0xf]
    %v2757 = vld [vmem:[%s5 + $0x228] sm:$0xff]
    %v2758 = vld [vmem:[%s5 + $0x230] sm:$0xf]
    %v2759 = vld [vmem:[%s5 + $0x234] sm:$0xff]
    %v2760 = vld [vmem:[%s5 + $0x23c] sm:$0xf]
    %v2761 = vld [vmem:[%s5 + $0x240] sm:$0xff]
    %v2762 = vld [vmem:[%s5 + $0x248] sm:$0xf]
    %v2763 = vld [vmem:[%s5 + $0x24c] sm:$0xff]
    %v2764 = vld [vmem:[%s5 + $0x254] sm:$0xf]
    %v2765 = vld [vmem:[%s5 + $0x258] sm:$0xff]
    %v2766 = vld [vmem:[%s5 + $0x260] sm:$0xf]
    %v2767 = vld [vmem:[%s5 + $0x264] sm:$0xff]
    %v2768 = vld [vmem:[%s5 + $0x26c] sm:$0xf]
    %v2769 = vld [vmem:[%s5 + $0x270] sm:$0xff]
    %v2770 = vld [vmem:[%s5 + $0x278] sm:$0xf]
    %v2771 = vld [vmem:[%s5 + $0x27c] sm:$0xff]
    %v2772 = vld [vmem:[%s5 + $0x284] sm:$0xf]
    %v2773 = vld [vmem:[%s5 + $0x288] sm:$0xff]
    %v2774 = vld [vmem:[%s5 + $0x290] sm:$0xf]
    %v2775 = vld [vmem:[%s5 + $0x294] sm:$0xff]
    %v2776 = vld [vmem:[%s5 + $0x29c] sm:$0xf]
    %v2777 = vld [vmem:[%s5 + $0x2a0] sm:$0xff]
    %v2778 = vld [vmem:[%s5 + $0x2a8] sm:$0xf]
    %v2779 = vld [vmem:[%s5 + $0x2ac] sm:$0xff]
    %v2780 = vld [vmem:[%s5 + $0x2b4] sm:$0xf]
    %v2781 = vld [vmem:[%s5 + $0x2b8] sm:$0xff]
    %v2782 = vld [vmem:[%s5 + $0x2c0] sm:$0xf]
    %v2783 = vld [vmem:[%s5 + $0x2c4] sm:$0xff]
    %v2784 = vld [vmem:[%s5 + $0x2cc] sm:$0xf]
    %v2785 = vld [vmem:[%s5 + $0x2d0] sm:$0xff]
    %v2786 = vld [vmem:[%s5 + $0x2d8] sm:$0xf]
    %v2787 = vld [vmem:[%s5 + $0x2dc] sm:$0xff]
    %v2788 = vld [vmem:[%s5 + $0x2e4] sm:$0xf]
    %v2789 = vld [vmem:[%s5 + $0x2e8] sm:$0xff]
    %v2790 = vld [vmem:[%s5 + $0x2f0] sm:$0xf]
    %v2791 = vld [vmem:[%s5 + $0x2f4] sm:$0xff]
    %v2792 = vld [vmem:[%s5 + $0x2fc] sm:$0xf]
    %v2793 = vld [vmem:[%s5 + $0x300] sm:$0x11]
    %v2794 = vld [vmem:[%s5 + $0x308] sm:$0x1]
    %v2925 = vunpack.c.l.b16 %v2665
    %v2926 = vunpack.c.h.b16 %v2665
    %v2927 = vunpack.c.l.b16 %v2666
    %v2928 = vunpack.c.l.b16 %v2667
    %v2929 = vunpack.c.h.b16 %v2667
    %v2930 = vunpack.c.l.b16 %v2668
    %v2931 = vunpack.c.l.b16 %v2669
    %v2932 = vunpack.c.h.b16 %v2669
    %v2933 = vunpack.c.l.b16 %v2670
    %v2934 = vunpack.c.l.b16 %v2671
    %v2935 = vunpack.c.h.b16 %v2671
    %v2936 = vunpack.c.l.b16 %v2672
    %v2937 = vunpack.c.l.b16 %v2673
    %v2938 = vunpack.c.h.b16 %v2673
    %v2939 = vunpack.c.l.b16 %v2674
    %v2940 = vunpack.c.l.b16 %v2675
    %v2941 = vunpack.c.h.b16 %v2675
    %v2942 = vunpack.c.l.b16 %v2676
    %v2943 = vunpack.c.l.b16 %v2677
    %v2944 = vunpack.c.h.b16 %v2677
    %v2945 = vunpack.c.l.b16 %v2678
    %v2946 = vunpack.c.l.b16 %v2679
    %v2947 = vunpack.c.h.b16 %v2679
    %v2948 = vunpack.c.l.b16 %v2680
    %v2949 = vunpack.c.l.b16 %v2681
    %v2950 = vunpack.c.h.b16 %v2681
    %v2951 = vunpack.c.l.b16 %v2682
    %v2952 = vunpack.c.l.b16 %v2683
    %v2953 = vunpack.c.h.b16 %v2683
    %v2954 = vunpack.c.l.b16 %v2684
    %v2955 = vunpack.c.l.b16 %v2685
    %v2956 = vunpack.c.h.b16 %v2685
    %v2957 = vunpack.c.l.b16 %v2686
    %v2958 = vunpack.c.l.b16 %v2687
    %v2959 = vunpack.c.h.b16 %v2687
    %v2960 = vunpack.c.l.b16 %v2688
    %v2961 = vunpack.c.l.b16 %v2689
    %v2962 = vunpack.c.h.b16 %v2689
    %v2963 = vunpack.c.l.b16 %v2690
    %v2964 = vunpack.c.l.b16 %v2691
    %v2965 = vunpack.c.h.b16 %v2691
    %v2966 = vunpack.c.l.b16 %v2692
    %v2967 = vunpack.c.l.b16 %v2693
    %v2968 = vunpack.c.h.b16 %v2693
    %v2969 = vunpack.c.l.b16 %v2694
    %v2970 = vunpack.c.l.b16 %v2695
    %v2971 = vunpack.c.h.b16 %v2695
    %v2972 = vunpack.c.l.b16 %v2696
    %v2973 = vunpack.c.l.b16 %v2697
    %v2974 = vunpack.c.h.b16 %v2697
    %v2975 = vunpack.c.l.b16 %v2698
    %v2976 = vunpack.c.l.b16 %v2699
    %v2977 = vunpack.c.h.b16 %v2699
    %v2978 = vunpack.c.l.b16 %v2700
    %v2979 = vunpack.c.l.b16 %v2701
    %v2980 = vunpack.c.h.b16 %v2701
    %v2981 = vunpack.c.l.b16 %v2702
    %v2982 = vunpack.c.l.b16 %v2703
    %v2983 = vunpack.c.h.b16 %v2703
    %v2984 = vunpack.c.l.b16 %v2704
    %v2985 = vunpack.c.l.b16 %v2705
    %v2986 = vunpack.c.h.b16 %v2705
    %v2987 = vunpack.c.l.b16 %v2706
    %v2988 = vunpack.c.l.b16 %v2707
    %v2989 = vunpack.c.h.b16 %v2707
    %v2990 = vunpack.c.l.b16 %v2708
    %v2991 = vunpack.c.l.b16 %v2709
    %v2992 = vunpack.c.h.b16 %v2709
    %v2993 = vunpack.c.l.b16 %v2710
    %v2994 = vunpack.c.l.b16 %v2711
    %v2995 = vunpack.c.h.b16 %v2711
    %v2996 = vunpack.c.l.b16 %v2712
    %v2997 = vunpack.c.l.b16 %v2713
    %v2998 = vunpack.c.h.b16 %v2713
    %v2999 = vunpack.c.l.b16 %v2714
    %v3000 = vunpack.c.l.b16 %v2715
    %v3001 = vunpack.c.h.b16 %v2715
    %v3002 = vunpack.c.l.b16 %v2716
    %v3003 = vunpack.c.l.b16 %v2717
    %v3004 = vunpack.c.h.b16 %v2717
    %v3005 = vunpack.c.l.b16 %v2718
    %v3006 = vunpack.c.l.b16 %v2719
    %v3007 = vunpack.c.h.b16 %v2719
    %v3008 = vunpack.c.l.b16 %v2720
    %v3009 = vunpack.c.l.b16 %v2721
    %v3010 = vunpack.c.h.b16 %v2721
    %v3011 = vunpack.c.l.b16 %v2722
    %v3012 = vunpack.c.l.b16 %v2723
    %v3013 = vunpack.c.h.b16 %v2723
    %v3014 = vunpack.c.l.b16 %v2724
    %v3015 = vunpack.c.l.b16 %v2725
    %v3016 = vunpack.c.h.b16 %v2725
    %v3017 = vunpack.c.l.b16 %v2726
    %v3018 = vunpack.c.l.b16 %v2727
    %v3019 = vunpack.c.h.b16 %v2727
    %v3020 = vunpack.c.l.b16 %v2728
    %v3021 = vunpack.c.l.b16 %v2729
    %v3022 = vunpack.c.h.b16 %v2729
    %v3023 = vunpack.c.l.b16 %v2730
    %v3024 = vunpack.c.l.b16 %v2731
    %v3025 = vunpack.c.h.b16 %v2731
    %v3026 = vunpack.c.l.b16 %v2732
    %v3027 = vunpack.c.l.b16 %v2733
    %v3028 = vunpack.c.h.b16 %v2733
    %v3029 = vunpack.c.l.b16 %v2734
    %v3030 = vunpack.c.l.b16 %v2735
    %v3031 = vunpack.c.h.b16 %v2735
    %v3032 = vunpack.c.l.b16 %v2736
    %v3033 = vunpack.c.l.b16 %v2737
    %v3034 = vunpack.c.h.b16 %v2737
    %v3035 = vunpack.c.l.b16 %v2738
    %v3036 = vunpack.c.l.b16 %v2739
    %v3037 = vunpack.c.h.b16 %v2739
    %v3038 = vunpack.c.l.b16 %v2740
    %v3039 = vunpack.c.l.b16 %v2741
    %v3040 = vunpack.c.h.b16 %v2741
    %v3041 = vunpack.c.l.b16 %v2742
    %v3042 = vunpack.c.l.b16 %v2743
    %v3043 = vunpack.c.h.b16 %v2743
    %v3044 = vunpack.c.l.b16 %v2744
    %v3045 = vunpack.c.l.b16 %v2745
    %v3046 = vunpack.c.h.b16 %v2745
    %v3047 = vunpack.c.l.b16 %v2746
    %v3048 = vunpack.c.l.b16 %v2747
    %v3049 = vunpack.c.h.b16 %v2747
    %v3050 = vunpack.c.l.b16 %v2748
    %v3051 = vunpack.c.l.b16 %v2749
    %v3052 = vunpack.c.h.b16 %v2749
    %v3053 = vunpack.c.l.b16 %v2750
    %v3054 = vunpack.c.l.b16 %v2751
    %v3055 = vunpack.c.h.b16 %v2751
    %v3056 = vunpack.c.l.b16 %v2752
    %v3057 = vunpack.c.l.b16 %v2753
    %v3058 = vunpack.c.h.b16 %v2753
    %v3059 = vunpack.c.l.b16 %v2754
    %v3060 = vunpack.c.l.b16 %v2755
    %v3061 = vunpack.c.h.b16 %v2755
    %v3062 = vunpack.c.l.b16 %v2756
    %v3063 = vunpack.c.l.b16 %v2757
    %v3064 = vunpack.c.h.b16 %v2757
    %v3065 = vunpack.c.l.b16 %v2758
    %v3066 = vunpack.c.l.b16 %v2759
    %v3067 = vunpack.c.h.b16 %v2759
    %v3068 = vunpack.c.l.b16 %v2760
    %v3069 = vunpack.c.l.b16 %v2761
    %v3070 = vunpack.c.h.b16 %v2761
    %v3071 = vunpack.c.l.b16 %v2762
    %v3072 = vunpack.c.l.b16 %v2763
    %v3073 = vunpack.c.h.b16 %v2763
    %v3074 = vunpack.c.l.b16 %v2764
    %v3075 = vunpack.c.l.b16 %v2765
    %v3076 = vunpack.c.h.b16 %v2765
    %v3077 = vunpack.c.l.b16 %v2766
    %v3078 = vunpack.c.l.b16 %v2767
    %v3079 = vunpack.c.h.b16 %v2767
    %v3080 = vunpack.c.l.b16 %v2768
    %v3081 = vunpack.c.l.b16 %v2769
    %v3082 = vunpack.c.h.b16 %v2769
    %v3083 = vunpack.c.l.b16 %v2770
    %v3084 = vunpack.c.l.b16 %v2771
    %v3085 = vunpack.c.h.b16 %v2771
    %v3086 = vunpack.c.l.b16 %v2772
    %v3087 = vunpack.c.l.b16 %v2773
    %v3088 = vunpack.c.h.b16 %v2773
    %v3089 = vunpack.c.l.b16 %v2774
    %v3090 = vunpack.c.l.b16 %v2775
    %v3091 = vunpack.c.h.b16 %v2775
    %v3092 = vunpack.c.l.b16 %v2776
    %v3093 = vunpack.c.l.b16 %v2777
    %v3094 = vunpack.c.h.b16 %v2777
    %v3095 = vunpack.c.l.b16 %v2778
    %v3096 = vunpack.c.l.b16 %v2779
    %v3097 = vunpack.c.h.b16 %v2779
    %v3098 = vunpack.c.l.b16 %v2780
    %v3099 = vunpack.c.l.b16 %v2781
    %v3100 = vunpack.c.h.b16 %v2781
    %v3101 = vunpack.c.l.b16 %v2782
    %v3102 = vunpack.c.l.b16 %v2783
    %v3103 = vunpack.c.h.b16 %v2783
    %v3104 = vunpack.c.l.b16 %v2784
    %v3105 = vunpack.c.l.b16 %v2785
    %v3106 = vunpack.c.h.b16 %v2785
    %v3107 = vunpack.c.l.b16 %v2786
    %v3108 = vunpack.c.l.b16 %v2787
    %v3109 = vunpack.c.h.b16 %v2787
    %v3110 = vunpack.c.l.b16 %v2788
    %v3111 = vunpack.c.l.b16 %v2789
    %v3112 = vunpack.c.h.b16 %v2789
    %v3113 = vunpack.c.l.b16 %v2790
    %v3114 = vunpack.c.l.b16 %v2791
    %v3115 = vunpack.c.h.b16 %v2791
    %v3116 = vunpack.c.l.b16 %v2792
    %v3117 = vunpack.c.l.b16 %v2793
    %v3118 = vunpack.c.h.b16 %v2793
    %v3119 = vunpack.c.l.b16 %v2794
    %v3120 = vpack.c.b16 %v2928, %v2925
    %v3121 = vpack.c.b16 %v2929, %v2926
    %v3122 = vpack.c.b16 %v2930, %v2927
    %v3123 = vpack.c.b16 %v2934, %v2931
    %v3124 = vpack.c.b16 %v2935, %v2932
    %v3125 = vpack.c.b16 %v2936, %v2933
    %v3126 = vpack.c.b16 %v2940, %v2937
    %v3127 = vpack.c.b16 %v2941, %v2938
    %v3128 = vpack.c.b16 %v2942, %v2939
    %v3129 = vpack.c.b16 %v2946, %v2943
    %v3130 = vpack.c.b16 %v2947, %v2944
    %v3131 = vpack.c.b16 %v2948, %v2945
    %v3132 = vpack.c.b16 %v2952, %v2949
    %v3133 = vpack.c.b16 %v2953, %v2950
    %v3134 = vpack.c.b16 %v2954, %v2951
    %v3135 = vpack.c.b16 %v2958, %v2955
    %v3136 = vpack.c.b16 %v2959, %v2956
    %v3137 = vpack.c.b16 %v2960, %v2957
    %v3138 = vpack.c.b16 %v2964, %v2961
    %v3139 = vpack.c.b16 %v2965, %v2962
    %v3140 = vpack.c.b16 %v2966, %v2963
    %v3141 = vpack.c.b16 %v2970, %v2967
    %v3142 = vpack.c.b16 %v2971, %v2968
    %v3143 = vpack.c.b16 %v2972, %v2969
    %v3144 = vpack.c.b16 %v2976, %v2973
    %v3145 = vpack.c.b16 %v2977, %v2974
    %v3146 = vpack.c.b16 %v2978, %v2975
    %v3147 = vpack.c.b16 %v2982, %v2979
    %v3148 = vpack.c.b16 %v2983, %v2980
    %v3149 = vpack.c.b16 %v2984, %v2981
    %v3150 = vpack.c.b16 %v2988, %v2985
    %v3151 = vpack.c.b16 %v2989, %v2986
    %v3152 = vpack.c.b16 %v2990, %v2987
    %v3153 = vpack.c.b16 %v2994, %v2991
    %v3154 = vpack.c.b16 %v2995, %v2992
    %v3155 = vpack.c.b16 %v2996, %v2993
    %v3156 = vpack.c.b16 %v3000, %v2997
    %v3157 = vpack.c.b16 %v3001, %v2998
    %v3158 = vpack.c.b16 %v3002, %v2999
    %v3159 = vpack.c.b16 %v3006, %v3003
    %v3160 = vpack.c.b16 %v3007, %v3004
    %v3161 = vpack.c.b16 %v3008, %v3005
    %v3162 = vpack.c.b16 %v3012, %v3009
    %v3163 = vpack.c.b16 %v3013, %v3010
    %v3164 = vpack.c.b16 %v3014, %v3011
    %v3165 = vpack.c.b16 %v3018, %v3015
    %v3166 = vpack.c.b16 %v3019, %v3016
    %v3167 = vpack.c.b16 %v3020, %v3017
    %v3168 = vpack.c.b16 %v3024, %v3021
    %v3169 = vpack.c.b16 %v3025, %v3022
    %v3170 = vpack.c.b16 %v3026, %v3023
    %v3171 = vpack.c.b16 %v3030, %v3027
    %v3172 = vpack.c.b16 %v3031, %v3028
    %v3173 = vpack.c.b16 %v3032, %v3029
    %v3174 = vpack.c.b16 %v3036, %v3033
    %v3175 = vpack.c.b16 %v3037, %v3034
    %v3176 = vpack.c.b16 %v3038, %v3035
    %v3177 = vpack.c.b16 %v3042, %v3039
    %v3178 = vpack.c.b16 %v3043, %v3040
    %v3179 = vpack.c.b16 %v3044, %v3041
    %v3180 = vpack.c.b16 %v3048, %v3045
    %v3181 = vpack.c.b16 %v3049, %v3046
    %v3182 = vpack.c.b16 %v3050, %v3047
    %v3183 = vpack.c.b16 %v3054, %v3051
    %v3184 = vpack.c.b16 %v3055, %v3052
    %v3185 = vpack.c.b16 %v3056, %v3053
    %v3186 = vpack.c.b16 %v3060, %v3057
    %v3187 = vpack.c.b16 %v3061, %v3058
    %v3188 = vpack.c.b16 %v3062, %v3059
    %v3189 = vpack.c.b16 %v3066, %v3063
    %v3190 = vpack.c.b16 %v3067, %v3064
    %v3191 = vpack.c.b16 %v3068, %v3065
    %v3192 = vpack.c.b16 %v3072, %v3069
    %v3193 = vpack.c.b16 %v3073, %v3070
    %v3194 = vpack.c.b16 %v3074, %v3071
    %v3195 = vpack.c.b16 %v3078, %v3075
    %v3196 = vpack.c.b16 %v3079, %v3076
    %v3197 = vpack.c.b16 %v3080, %v3077
    %v3198 = vpack.c.b16 %v3084, %v3081
    %v3199 = vpack.c.b16 %v3085, %v3082
    %v3200 = vpack.c.b16 %v3086, %v3083
    %v3201 = vpack.c.b16 %v3090, %v3087
    %v3202 = vpack.c.b16 %v3091, %v3088
    %v3203 = vpack.c.b16 %v3092, %v3089
    %v3204 = vpack.c.b16 %v3096, %v3093
    %v3205 = vpack.c.b16 %v3097, %v3094
    %v3206 = vpack.c.b16 %v3098, %v3095
    %v3207 = vpack.c.b16 %v3102, %v3099
    %v3208 = vpack.c.b16 %v3103, %v3100
    %v3209 = vpack.c.b16 %v3104, %v3101
    %v3210 = vpack.c.b16 %v3108, %v3105
    %v3211 = vpack.c.b16 %v3109, %v3106
    %v3212 = vpack.c.b16 %v3110, %v3107
    %v3213 = vpack.c.b16 %v3114, %v3111
    %v3214 = vpack.c.b16 %v3115, %v3112
    %v3215 = vpack.c.b16 %v3116, %v3113
    %v3216 = vpack.c.b16 %v3117, %v3117
    %v3217 = vpack.c.b16 %v3118, %v3118
    %v3218 = vpack.c.b16 %v3119, %v3119
    %v3316 = vsel %vm678, %v2664, 0
    %v3319 = vand.u32 %v3216, %v684
    %v3322 = vand.u32 %v3217, %v684
    %v3325 = vand.u32 %v3218, %v684
    %3327 = vmatprep.subr.bf16.mxu0 %v3121
    %3328 = vmatpush1.bf16.msra.mxu0 %v3120
    %3329 = vmatprep.subr.bf16.mxu0 %v3124
    %3330 = vmatpush1.bf16.msra.mxu0 %v3123
    %3331 = vmatprep.subr.bf16.mxu0 %v3127
    %3332 = vmatpush1.bf16.msra.mxu0 %v3126
    %3333 = vmatprep.subr.bf16.mxu0 %v3130
    %3334 = vmatpush1.bf16.msra.mxu0 %v3129
    %3335 = vmatprep.subr.bf16.mxu0 %v3133
    %3336 = vmatpush1.bf16.msra.mxu0 %v3132
    %3337 = vmatprep.subr.bf16.mxu0 %v3136
    %3338 = vmatpush1.bf16.msra.mxu0 %v3135
    %3339 = vmatprep.subr.bf16.mxu0 %v3139
    %3340 = vmatpush1.bf16.msra.mxu0 %v3138
    %3341 = vmatprep.subr.bf16.mxu0 %v3142
    %3342 = vmatpush1.bf16.msra.mxu0 %v3141
    %3343 = vmatprep.subr.bf16.mxu0 %v3145
    %3344 = vmatpush1.bf16.msra.mxu0 %v3144
    %3345 = vmatprep.subr.bf16.mxu0 %v3148
    %3346 = vmatpush1.bf16.msra.mxu0 %v3147
    %3347 = vmatprep.subr.bf16.mxu0 %v3151
    %3348 = vmatpush1.bf16.msra.mxu0 %v3150
    %3349 = vmatprep.subr.bf16.mxu0 %v3154
    %3350 = vmatpush1.bf16.msra.mxu0 %v3153
    %3351 = vmatprep.subr.bf16.mxu0 %v3157
    %3352 = vmatpush1.bf16.msra.mxu0 %v3156
    %3353 = vmatprep.subr.bf16.mxu0 %v3160
    %3354 = vmatpush1.bf16.msra.mxu0 %v3159
    %3355 = vmatprep.subr.bf16.mxu0 %v3163
    %3356 = vmatpush1.bf16.msra.mxu0 %v3162
    %3357 = vmatprep.subr.bf16.mxu0 %v3166
    %3358 = vmatpush1.bf16.msra.mxu0 %v3165
    %3359 = vmatprep.mubr.bf16.mxu0 %v2661
    %3360 = vmatmul.mubr.bf16.gmra.mrb[0].mxu0 %v2660
    %v3361 = vpop.f32.mrb[0].mxu0
    %v3362 = vadd.f32 0.0, %v3361
    %v3363 = vpop.f32.mrb[0].mxu0
    %v3364 = vadd.f32 0.0, %v3363
    %v3365 = vpop.f32.mrb[0].mxu0
    %v3366 = vpop.f32.mrb[0].mxu0
    %3367 = vdwg.mxu0
    %3368 = vmatprep.subr.bf16.mxu0 %v3169
    %3369 = vmatpush1.bf16.msra.mxu0 %v3168
    %3370 = vmatprep.subr.bf16.mxu0 %v3172
    %3371 = vmatpush1.bf16.msra.mxu0 %v3171
    %3372 = vmatprep.subr.bf16.mxu0 %v3175
    %3373 = vmatpush1.bf16.msra.mxu0 %v3174
    %3374 = vmatprep.subr.bf16.mxu0 %v3178
    %3375 = vmatpush1.bf16.msra.mxu0 %v3177
    %3376 = vmatprep.subr.bf16.mxu0 %v3181
    %3377 = vmatpush1.bf16.msra.mxu0 %v3180
    %3378 = vmatprep.subr.bf16.mxu0 %v3184
    %3379 = vmatpush1.bf16.msra.mxu0 %v3183
    %3380 = vmatprep.subr.bf16.mxu0 %v3187
    %3381 = vmatpush1.bf16.msra.mxu0 %v3186
    %3382 = vmatprep.subr.bf16.mxu0 %v3190
    %3383 = vmatpush1.bf16.msra.mxu0 %v3189
    %3384 = vmatprep.subr.bf16.mxu0 %v3193
    %3385 = vmatpush1.bf16.msra.mxu0 %v3192
    %3386 = vmatprep.subr.bf16.mxu0 %v3196
    %3387 = vmatpush1.bf16.msra.mxu0 %v3195
    %3388 = vmatprep.subr.bf16.mxu0 %v3199
    %3389 = vmatpush1.bf16.msra.mxu0 %v3198
    %3390 = vmatprep.subr.bf16.mxu0 %v3202
    %3391 = vmatpush1.bf16.msra.mxu0 %v3201
    %3392 = vmatprep.subr.bf16.mxu0 %v3205
    %3393 = vmatpush1.bf16.msra.mxu0 %v3204
    %3394 = vmatprep.subr.bf16.mxu0 %v3208
    %3395 = vmatpush1.bf16.msra.mxu0 %v3207
    %3396 = vmatprep.subr.bf16.mxu0 %v3211
    %3397 = vmatpush1.bf16.msra.mxu0 %v3210
    %3398 = vmatprep.subr.bf16.mxu0 %v3214
    %3399 = vmatpush1.bf16.msra.mxu0 %v3213
    %3400 = vmatprep.mubr.bf16.mxu0 %v2663
    %3401 = vmatmul.mubr.bf16.gmra.mrb[0].mxu0 %v2662
    %v3402 = vpop.f32.mrb[0].mxu0
    %v3403 = vadd.f32 %v3362, %v3402
    %v3404 = vpop.f32.mrb[0].mxu0
    %v3405 = vadd.f32 %v3364, %v3404
    %v3406 = vpop.f32.mrb[0].mxu0
    %v3407 = vpop.f32.mrb[0].mxu0
    %3408 = vdwg.mxu0
    %3409 = vmatprep.subr.bf16.mxu0 %v3322
    %3410 = vmatpush1.bf16.msra.mxu0 %v3319
    %3411 = vmatprep.subr.bf16.mxu0 0
    %3412 = vmatpush1.bf16.msra.mxu0 0
    %3413 = vmatprep.subr.bf16.mxu0 0
    %3414 = vmatpush1.bf16.msra.mxu0 0
    %3415 = vmatprep.subr.bf16.mxu0 0
    %3416 = vmatpush1.bf16.msra.mxu0 0
    %3417 = vmatprep.subr.bf16.mxu0 0
    %3418 = vmatpush1.bf16.msra.mxu0 0
    %3419 = vmatprep.subr.bf16.mxu0 0
    %3420 = vmatpush1.bf16.msra.mxu0 0
    %3421 = vmatprep.subr.bf16.mxu0 0
    %3422 = vmatpush1.bf16.msra.mxu0 0
    %3423 = vmatprep.subr.bf16.mxu0 0
    %3424 = vmatpush1.bf16.msra.mxu0 0
    %3425 = vmatprep.subr.bf16.mxu0 0
    %3426 = vmatpush1.bf16.msra.mxu0 0
    %3427 = vmatprep.subr.bf16.mxu0 0
    %3428 = vmatpush1.bf16.msra.mxu0 0
    %3429 = vmatprep.subr.bf16.mxu0 0
    %3430 = vmatpush1.bf16.msra.mxu0 0
    %3431 = vmatprep.subr.bf16.mxu0 0
    %3432 = vmatpush1.bf16.msra.mxu0 0
    %3433 = vmatprep.subr.bf16.mxu0 0
    %3434 = vmatpush1.bf16.msra.mxu0 0
    %3435 = vmatprep.subr.bf16.mxu0 0
    %3436 = vmatpush1.bf16.msra.mxu0 0
    %3437 = vmatprep.subr.bf16.mxu0 0
    %3438 = vmatpush1.bf16.msra.mxu0 0
    %3439 = vmatprep.subr.bf16.mxu0 0
    %3440 = vmatpush1.bf16.msra.mxu0 0
    %3441 = vmatprep.mubr.bf16.mxu0 0
    %3442 = vmatmul.mubr.bf16.gmra.mrb[0].mxu0 %v3316
    %v3443 = vpop.f32.mrb[0].mxu0
    %v3444 = vadd.f32 %v3403, %v3443
    %v3445 = vpop.f32.mrb[0].mxu0
    %v3446 = vadd.f32 %v3405, %v3445
    %v3447 = vpop.f32.mrb[0].mxu0
    %v3448 = vpop.f32.mrb[0].mxu0
    %3449 = vdwg.mxu0
    %3450 = vmatprep.subr.bf16.mxu0 0
    %3451 = vmatpush1.bf16.msra.mxu0 %v3122
    %3452 = vmatprep.subr.bf16.mxu0 0
    %3453 = vmatpush1.bf16.msra.mxu0 %v3125
    %3454 = vmatprep.subr.bf16.mxu0 0
    %3455 = vmatpush1.bf16.msra.mxu0 %v3128
    %3456 = vmatprep.subr.bf16.mxu0 0
    %3457 = vmatpush1.bf16.msra.mxu0 %v3131
    %3458 = vmatprep.subr.bf16.mxu0 0
    %3459 = vmatpush1.bf16.msra.mxu0 %v3134
    %3460 = vmatprep.subr.bf16.mxu0 0
    %3461 = vmatpush1.bf16.msra.mxu0 %v3137
    %3462 = vmatprep.subr.bf16.mxu0 0
    %3463 = vmatpush1.bf16.msra.mxu0 %v3140
    %3464 = vmatprep.subr.bf16.mxu0 0
    %3465 = vmatpush1.bf16.msra.mxu0 %v3143
    %3466 = vmatprep.subr.bf16.mxu0 0
    %3467 = vmatpush1.bf16.msra.mxu0 %v3146
    %3468 = vmatprep.subr.bf16.mxu0 0
    %3469 = vmatpush1.bf16.msra.mxu0 %v3149
    %3470 = vmatprep.subr.bf16.mxu0 0
    %3471 = vmatpush1.bf16.msra.mxu0 %v3152
    %3472 = vmatprep.subr.bf16.mxu0 0
    %3473 = vmatpush1.bf16.msra.mxu0 %v3155
    %3474 = vmatprep.subr.bf16.mxu0 0
    %3475 = vmatpush1.bf16.msra.mxu0 %v3158
    %3476 = vmatprep.subr.bf16.mxu0 0
    %3477 = vmatpush1.bf16.msra.mxu0 %v3161
    %3478 = vmatprep.subr.bf16.mxu0 0
    %3479 = vmatpush1.bf16.msra.mxu0 %v3164
    %3480 = vmatprep.subr.bf16.mxu0 0
    %3481 = vmatpush1.bf16.msra.mxu0 %v3167
    %3482 = vmatprep.mubr.bf16.mxu0 %v2661
    %3483 = vmatmul.mubr.bf16.gmra.mrb[0].mxu0 %v2660
    %v3484 = vpop.f32.mrb[0].mxu0
    %v3485 = vadd.f32 0.0, %v3484
    %v3486 = vpop.f32.mrb[0].mxu0
    %v3487 = vpop.f32.mrb[0].mxu0
    %v3488 = vpop.f32.mrb[0].mxu0
    %3489 = vdwg.mxu0
    %3490 = vmatprep.subr.bf16.mxu0 0
    %3491 = vmatpush1.bf16.msra.mxu0 %v3170
    %3492 = vmatprep.subr.bf16.mxu0 0
    %3493 = vmatpush1.bf16.msra.mxu0 %v3173
    %3494 = vmatprep.subr.bf16.mxu0 0
    %3495 = vmatpush1.bf16.msra.mxu0 %v3176
    %3496 = vmatprep.subr.bf16.mxu0 0
    %3497 = vmatpush1.bf16.msra.mxu0 %v3179
    %3498 = vmatprep.subr.bf16.mxu0 0
    %3499 = vmatpush1.bf16.msra.mxu0 %v3182
    %3500 = vmatprep.subr.bf16.mxu0 0
    %3501 = vmatpush1.bf16.msra.mxu0 %v3185
    %3502 = vmatprep.subr.bf16.mxu0 0
    %3503 = vmatpush1.bf16.msra.mxu0 %v3188
    %3504 = vmatprep.subr.bf16.mxu0 0
    %3505 = vmatpush1.bf16.msra.mxu0 %v3191
    %3506 = vmatprep.subr.bf16.mxu0 0
    %3507 = vmatpush1.bf16.msra.mxu0 %v3194
    %3508 = vmatprep.subr.bf16.mxu0 0
    %3509 = vmatpush1.bf16.msra.mxu0 %v3197
    %3510 = vmatprep.subr.bf16.mxu0 0
    %3511 = vmatpush1.bf16.msra.mxu0 %v3200
    %3512 = vmatprep.subr.bf16.mxu0 0
    %3513 = vmatpush1.bf16.msra.mxu0 %v3203
    %3514 = vmatprep.subr.bf16.mxu0 0
    %3515 = vmatpush1.bf16.msra.mxu0 %v3206
    %3516 = vmatprep.subr.bf16.mxu0 0
    %3517 = vmatpush1.bf16.msra.mxu0 %v3209
    %3518 = vmatprep.subr.bf16.mxu0 0
    %3519 = vmatpush1.bf16.msra.mxu0 %v3212
    %3520 = vmatprep.subr.bf16.mxu0 0
    %3521 = vmatpush1.bf16.msra.mxu0 %v3215
    %3522 = vmatprep.mubr.bf16.mxu0 %v2663
    %3523 = vmatmul.mubr.bf16.gmra.mrb[0].mxu0 %v2662
    %v3524 = vpop.f32.mrb[0].mxu0
    %v3525 = vadd.f32 %v3485, %v3524
    %v3526 = vpop.f32.mrb[0].mxu0
    %v3527 = vpop.f32.mrb[0].mxu0
    %v3528 = vpop.f32.mrb[0].mxu0
    %3529 = vdwg.mxu0
    %3530 = vmatprep.subr.bf16.mxu0 0
    %3531 = vmatpush1.bf16.msra.mxu0 %v3325
    %3532 = vmatprep.subr.bf16.mxu0 0
    %3533 = vmatpush1.bf16.msra.mxu0 0
    %3534 = vmatprep.subr.bf16.mxu0 0
    %3535 = vmatpush1.bf16.msra.mxu0 0
    %3536 = vmatprep.subr.bf16.mxu0 0
    %3537 = vmatpush1.bf16.msra.mxu0 0
    %3538 = vmatprep.subr.bf16.mxu0 0
    %3539 = vmatpush1.bf16.msra.mxu0 0
    %3540 = vmatprep.subr.bf16.mxu0 0
    %3541 = vmatpush1.bf16.msra.mxu0 0
    %3542 = vmatprep.subr.bf16.mxu0 0
    %3543 = vmatpush1.bf16.msra.mxu0 0
    %3544 = vmatprep.subr.bf16.mxu0 0
    %3545 = vmatpush1.bf16.msra.mxu0 0
    %3546 = vmatprep.subr.bf16.mxu0 0
    %3547 = vmatpush1.bf16.msra.mxu0 0
    %3548 = vmatprep.subr.bf16.mxu0 0
    %3549 = vmatpush1.bf16.msra.mxu0 0
    %3550 = vmatprep.subr.bf16.mxu0 0
    %3551 = vmatpush1.bf16.msra.mxu0 0
    %3552 = vmatprep.subr.bf16.mxu0 0
    %3553 = vmatpush1.bf16.msra.mxu0 0
    %3554 = vmatprep.subr.bf16.mxu0 0
    %3555 = vmatpush1.bf16.msra.mxu0 0
    %3556 = vmatprep.subr.bf16.mxu0 0
    %3557 = vmatpush1.bf16.msra.mxu0 0
    %3558 = vmatprep.subr.bf16.mxu0 0
    %3559 = vmatpush1.bf16.msra.mxu0 0
    %3560 = vmatprep.subr.bf16.mxu0 0
    %3561 = vmatpush1.bf16.msra.mxu0 0
    %3562 = vmatprep.mubr.bf16.mxu0 0
    %3563 = vmatmul.mubr.bf16.gmra.mrb[0].mxu0 %v3316
    %v3564 = vpop.f32.mrb[0].mxu0
    %v3565 = vadd.f32 %v3525, %v3564
    %v3566 = vpop.f32.mrb[0].mxu0
    %v3567 = vpop.f32.mrb[0].mxu0
    %v3568 = vpop.f32.mrb[0].mxu0
    %3569 = vdwg.mxu0
    %v3570 = vmax.f32 %v3444, 0.0
    %v3571 = vmax.f32 %v3446, 0.0
    %v3572 = vmax.f32 %v3565, 0.0
    %v3573 = vpack.c.bf16 %v3570, %v3570
    %v3574 = vpack.c.bf16 %v3571, %v3571
    %v3575 = vpack.c.bf16 %v3572, %v3572
    %v3576 = vld [vmem:[%s6] sm:$0xf]
    %v3577 = vld [vmem:[%s6 + $0x4] sm:$0xf]
    %v3578 = vld [vmem:[%s6 + $0x8] sm:$0xf]
    %v3579 = vld [vmem:[%s6 + $0xc] sm:$0xf]
    %v3580 = vld [vmem:[%s6 + $0x10] sm:$0xf]
    %v3581 = vld [vmem:[%s6 + $0x14] sm:$0xf]
    %v3582 = vld [vmem:[%s6 + $0x18] sm:$0xf]
    %v3583 = vld [vmem:[%s6 + $0x1c] sm:$0xf]
    %v3584 = vld [vmem:[%s6 + $0x20] sm:$0xf]
    %v3585 = vld [vmem:[%s6 + $0x24] sm:$0xf]
    %v3586 = vld [vmem:[%s6 + $0x28] sm:$0xf]
    %v3587 = vld [vmem:[%s6 + $0x2c] sm:$0xf]
    %v3588 = vld [vmem:[%s6 + $0x30] sm:$0xf]
    %v3589 = vld [vmem:[%s6 + $0x34] sm:$0xf]
    %v3590 = vld [vmem:[%s6 + $0x38] sm:$0xf]
    %v3591 = vld [vmem:[%s6 + $0x3c] sm:$0xf]
    %v3592 = vld [vmem:[%s6 + $0x40] sm:$0xf]
    %v3593 = vld [vmem:[%s6 + $0x44] sm:$0xf]
    %v3594 = vld [vmem:[%s6 + $0x48] sm:$0xf]
    %v3595 = vld [vmem:[%s6 + $0x4c] sm:$0xf]
    %v3596 = vld [vmem:[%s6 + $0x50] sm:$0xf]
    %v3597 = vld [vmem:[%s6 + $0x54] sm:$0xf]
    %v3598 = vld [vmem:[%s6 + $0x58] sm:$0xf]
    %v3599 = vld [vmem:[%s6 + $0x5c] sm:$0xf]
    %v3600 = vld [vmem:[%s6 + $0x60] sm:$0xf]
    %v3601 = vld [vmem:[%s6 + $0x64] sm:$0xf]
    %v3602 = vld [vmem:[%s6 + $0x68] sm:$0xf]
    %v3603 = vld [vmem:[%s6 + $0x6c] sm:$0xf]
    %v3604 = vld [vmem:[%s6 + $0x70] sm:$0xf]
    %v3605 = vld [vmem:[%s6 + $0x74] sm:$0xf]
    %v3606 = vld [vmem:[%s6 + $0x78] sm:$0xf]
    %v3607 = vld [vmem:[%s6 + $0x7c] sm:$0xf]
    %v3608 = vld [vmem:[%s6 + $0x80] sm:$0x1]
    %v3642 = vunpack.c.l.b16 %v3576
    %v3643 = vunpack.c.l.b16 %v3577
    %v3644 = vunpack.c.l.b16 %v3578
    %v3645 = vunpack.c.l.b16 %v3579
    %v3646 = vunpack.c.l.b16 %v3580
    %v3647 = vunpack.c.l.b16 %v3581
    %v3648 = vunpack.c.l.b16 %v3582
    %v3649 = vunpack.c.l.b16 %v3583
    %v3650 = vunpack.c.l.b16 %v3584
    %v3651 = vunpack.c.l.b16 %v3585
    %v3652 = vunpack.c.l.b16 %v3586
    %v3653 = vunpack.c.l.b16 %v3587
    %v3654 = vunpack.c.l.b16 %v3588
    %v3655 = vunpack.c.l.b16 %v3589
    %v3656 = vunpack.c.l.b16 %v3590
    %v3657 = vunpack.c.l.b16 %v3591
    %v3658 = vunpack.c.l.b16 %v3592
    %v3659 = vunpack.c.l.b16 %v3593
    %v3660 = vunpack.c.l.b16 %v3594
    %v3661 = vunpack.c.l.b16 %v3595
    %v3662 = vunpack.c.l.b16 %v3596
    %v3663 = vunpack.c.l.b16 %v3597
    %v3664 = vunpack.c.l.b16 %v3598
    %v3665 = vunpack.c.l.b16 %v3599
    %v3666 = vunpack.c.l.b16 %v3600
    %v3667 = vunpack.c.l.b16 %v3601
    %v3668 = vunpack.c.l.b16 %v3602
    %v3669 = vunpack.c.l.b16 %v3603
    %v3670 = vunpack.c.l.b16 %v3604
    %v3671 = vunpack.c.l.b16 %v3605
    %v3672 = vunpack.c.l.b16 %v3606
    %v3673 = vunpack.c.l.b16 %v3607
    %v3674 = vunpack.c.l.b16 %v3608
    %v3675 = vpack.c.b16 %v3643, %v3642
    %v3676 = vpack.c.b16 %v3645, %v3644
    %v3677 = vpack.c.b16 %v3647, %v3646
    %v3678 = vpack.c.b16 %v3649, %v3648
    %v3679 = vpack.c.b16 %v3651, %v3650
    %v3680 = vpack.c.b16 %v3653, %v3652
    %v3681 = vpack.c.b16 %v3655, %v3654
    %v3682 = vpack.c.b16 %v3657, %v3656
    %v3683 = vpack.c.b16 %v3659, %v3658
    %v3684 = vpack.c.b16 %v3661, %v3660
    %v3685 = vpack.c.b16 %v3663, %v3662
    %v3686 = vpack.c.b16 %v3665, %v3664
    %v3687 = vpack.c.b16 %v3667, %v3666
    %v3688 = vpack.c.b16 %v3669, %v3668
    %v3689 = vpack.c.b16 %v3671, %v3670
    %v3690 = vpack.c.b16 %v3673, %v3672
    %v3691 = vpack.c.b16 %v3674, %v3674
    %v3709 = vsel %vm678, %v3575, 0
    %v3712 = vand.u32 %v3691, %v684
    %3714 = vmatprep.subr.bf16.mxu0 0
    %3715 = vmatpush1.bf16.msra.mxu0 %v3675
    %3716 = vmatprep.subr.bf16.mxu0 0
    %3717 = vmatpush1.bf16.msra.mxu0 %v3676
    %3718 = vmatprep.subr.bf16.mxu0 0
    %3719 = vmatpush1.bf16.msra.mxu0 %v3677
    %3720 = vmatprep.subr.bf16.mxu0 0
    %3721 = vmatpush1.bf16.msra.mxu0 %v3678
    %3722 = vmatprep.subr.bf16.mxu0 0
    %3723 = vmatpush1.bf16.msra.mxu0 %v3679
    %3724 = vmatprep.subr.bf16.mxu0 0
    %3725 = vmatpush1.bf16.msra.mxu0 %v3680
    %3726 = vmatprep.subr.bf16.mxu0 0
    %3727 = vmatpush1.bf16.msra.mxu0 %v3681
    %3728 = vmatprep.subr.bf16.mxu0 0
    %3729 = vmatpush1.bf16.msra.mxu0 %v3682
    %3730 = vmatprep.subr.bf16.mxu0 0
    %3731 = vmatpush1.bf16.msra.mxu0 %v3683
    %3732 = vmatprep.subr.bf16.mxu0 0
    %3733 = vmatpush1.bf16.msra.mxu0 %v3684
    %3734 = vmatprep.subr.bf16.mxu0 0
    %3735 = vmatpush1.bf16.msra.mxu0 %v3685
    %3736 = vmatprep.subr.bf16.mxu0 0
    %3737 = vmatpush1.bf16.msra.mxu0 %v3686
    %3738 = vmatprep.subr.bf16.mxu0 0
    %3739 = vmatpush1.bf16.msra.mxu0 %v3687
    %3740 = vmatprep.subr.bf16.mxu0 0
    %3741 = vmatpush1.bf16.msra.mxu0 %v3688
    %3742 = vmatprep.subr.bf16.mxu0 0
    %3743 = vmatpush1.bf16.msra.mxu0 %v3689
    %3744 = vmatprep.subr.bf16.mxu0 0
    %3745 = vmatpush1.bf16.msra.mxu0 %v3690
    %3746 = vmatprep.mubr.bf16.mxu0 %v3574
    %3747 = vmatmul.mubr.bf16.gmra.mrb[0].mxu0 %v3573
    %v3748 = vpop.f32.mrb[0].mxu0
    %v3749 = vadd.f32 0.0, %v3748
    %v3750 = vpop.f32.mrb[0].mxu0
    %v3751 = vpop.f32.mrb[0].mxu0
    %v3752 = vpop.f32.mrb[0].mxu0
    %3753 = vdwg.mxu0
    %3754 = vmatprep.subr.bf16.mxu0 0
    %3755 = vmatpush1.bf16.msra.mxu0 %v3712
    %3756 = vmatprep.subr.bf16.mxu0 0
    %3757 = vmatpush1.bf16.msra.mxu0 0
    %3758 = vmatprep.subr.bf16.mxu0 0
    %3759 = vmatpush1.bf16.msra.mxu0 0
    %3760 = vmatprep.subr.bf16.mxu0 0
    %3761 = vmatpush1.bf16.msra.mxu0 0
    %3762 = vmatprep.subr.bf16.mxu0 0
    %3763 = vmatpush1.bf16.msra.mxu0 0
    %3764 = vmatprep.subr.bf16.mxu0 0
    %3765 = vmatpush1.bf16.msra.mxu0 0
    %3766 = vmatprep.subr.bf16.mxu0 0
    %3767 = vmatpush1.bf16.msra.mxu0 0
    %3768 = vmatprep.subr.bf16.mxu0 0
    %3769 = vmatpush1.bf16.msra.mxu0 0
    %3770 = vmatprep.subr.bf16.mxu0 0
    %3771 = vmatpush1.bf16.msra.mxu0 0
    %3772 = vmatprep.subr.bf16.mxu0 0
    %3773 = vmatpush1.bf16.msra.mxu0 0
    %3774 = vmatprep.subr.bf16.mxu0 0
    %3775 = vmatpush1.bf16.msra.mxu0 0
    %3776 = vmatprep.subr.bf16.mxu0 0
    %3777 = vmatpush1.bf16.msra.mxu0 0
    %3778 = vmatprep.subr.bf16.mxu0 0
    %3779 = vmatpush1.bf16.msra.mxu0 0
    %3780 = vmatprep.subr.bf16.mxu0 0
    %3781 = vmatpush1.bf16.msra.mxu0 0
    %3782 = vmatprep.subr.bf16.mxu0 0
    %3783 = vmatpush1.bf16.msra.mxu0 0
    %3784 = vmatprep.subr.bf16.mxu0 0
    %3785 = vmatpush1.bf16.msra.mxu0 0
    %3786 = vmatprep.mubr.bf16.mxu0 0
    %3787 = vmatmul.mubr.bf16.gmra.mrb[0].mxu0 %v3709
    %v3788 = vpop.f32.mrb[0].mxu0
    %v3789 = vadd.f32 %v3749, %v3788
    %v3790 = vpop.f32.mrb[0].mxu0
    %v3791 = vpop.f32.mrb[0].mxu0
    %v3792 = vpop.f32.mrb[0].mxu0
    %3793 = vdwg.mxu0
    %v3794 = vmax.f32 %v3789, 0.0
    %3795 = vst [vmem:[#allocation2] sm:$0x3] %v3794
    // Predicated region
    $region30: #{tpu_custom_call.1} parent=1 // pred_check
      _
    $region31: #{tpu_custom_call.1} parent=1 // pred_check_branch
      %3797 = sbr.rel (0) target = $region33
    $region32: #{tpu_custom_call.1} parent=1 // pred_region
      %s3799 = ssub.s32 32, 32
      %3800 = vsyncadd [#allocation3], %s3799
      %s3802 = sshll.u32 [#allocation2], 4
      %s3803 = int_to_ptr.vmem [resolvable:$true] %s3802
      %3805 = dma.vmem_to_hbm [thread:$0]  %s3803, 32, %s7, [#allocation3]
    $region33: #{tpu_custom_call.1} parent=1 // pred_fallthru
      _
    // Predicated region
    $region34: #{tpu_custom_call.1} parent=1 // pred_check
      _
    $region35: #{tpu_custom_call.1} parent=1 // pred_check_branch
      %3807 = sbr.rel (0) target = $region37
    $region36: #{tpu_custom_call.1} parent=1 // pred_region
      %3808 = dma.done [#allocation3], 32
    $region37: #{tpu_custom_call.1} parent=1 // pred_fallthru
      _
    %3809 = vsyncpa [#allocation3], 1

</llo_original>
